<compile_context>
chip_gen: v6e
topology: v6e:2x2x1
jax: 0.10.0
libtpu: 0.0.40
codegen_flags: <defaults>
</compile_context>

<pallas_src>
import functools

import numpy as np
import jax
import jax.numpy as jnp
from jax import lax
from jax.experimental import pallas as pl
from jax.experimental.pallas import tpu as pltpu

BN_EPS = 1e-5

# Model geometry: RCNFNet(num_input=3, featuremaps=16, num_classes=3,
# pool_size=5) on 30x30 inputs (stride-3 streams -> 10x10, 2x2 max pool -> 5x5
# == pool_size, so the adaptive pools are exact / identity).
NUM_INPUT = 3
FEATUREMAPS = 16
NUM_CLASSES = 3
POOL = 5
CONV_HW = 2 * POOL                 # 10: spatial size of the concatenated streams
PAD_HW = CONV_HW + 2               # 12: one-pixel zero ring for the 3x3 convs
FLAT = PAD_HW * PAD_HW             # 144: padded-flat spatial layout used in-kernel
K_RAW = NUM_INPUT * 9              # 27: im2col K of one stream conv
KDIM = 32                          # K padded to a multiple of 8 sublanes
KCAT = 2 * KDIM                    # 64: both streams' patches stacked per image
SPATIAL = POOL * POOL              # 25
TAPS = 9
TAP_OFFSETS = tuple((kh - 1) * PAD_HW + (kw - 1) for kh in range(3) for kw in range(3))
IMG_HW = 3 * CONV_HW               # 30

# Images per grid step (stacked along sublanes -> M = IMG_TILE*16 rows).
# 8 fills the 128-row MXU on every generation; for large batches grid length is
# B/8 >= 2, so both v7x TensorCores get work via dimension_semantics=parallel.
IMG_TILE = 8
SHIFT_PAD = 16                     # zero margin used for the 3x3-conv lane shifts
OUT_LANES = 128                    # lane-dense logits block (classes in lanes 0..2)

assert max(abs(o) for o in TAP_OFFSETS) <= SHIFT_PAD


def _q(h, w):
    """Conv-output pixel (h, w) -> column index in the padded-flat layout."""
    return (h + 1) * PAD_HW + (w + 1)


def _build_selection_matrices():
    """Constant matrices that express the remaining spatial data movement
    (2x2 avg/max pooling, nearest upsample, interior mask) as MXU matmuls."""
    mask = np.zeros((1, FLAT), np.float32)
    pool_avg = np.zeros((FLAT, SPATIAL), np.float32)
    up_near = np.zeros((SPATIAL, FLAT), np.float32)
    for h in range(CONV_HW):
        for w in range(CONV_HW):
            q = _q(h, w)
            s = (h // 2) * POOL + (w // 2)
            mask[0, q] = 1.0
            pool_avg[q, s] = 0.25
            up_near[s, q] = 1.0
    gmax = np.zeros((4, FLAT, SPATIAL), np.float32)
    for dy in range(2):
        for dx in range(2):
            for ph in range(POOL):
                for pw in range(POOL):
                    gmax[dy * 2 + dx, _q(2 * ph + dy, 2 * pw + dx), ph * POOL + pw] = 1.0
    return mask, pool_avg, up_near, gmax


_MASK_NP, _POOL_NP, _UP_NP, _GMAX_NP = _build_selection_matrices()


# ---------------------------------------------------------------------------
# Fused forward kernel (one grid step == IMG_TILE images, stacked along M)
# ---------------------------------------------------------------------------

def _rcnf_kernel(pcat_ref, wstream_ref, chan_ref, we1_ref, we2_ref,
                 pool_ref, up_ref, gmax_ref, wcam_ref, rsum_ref, rbc_ref,
                 clsb_ref, mask_ref, out_ref):
    f32 = jnp.float32
    bf16 = jnp.bfloat16
    dot = functools.partial(jnp.dot, preferred_element_type=f32)

    itc = chan_ref.shape[0]        # IMG_TILE * FEATUREMAPS
    it = rsum_ref.shape[0]         # IMG_TILE

    chan = chan_ref[...]           # (itc, 8) packed per-channel params (f32)
    b_s, s_s, h_s = chan[:, 0:1], chan[:, 1:2], chan[:, 2:3]
    be1, be2 = chan[:, 3:4], chan[:, 4:5]
    mask = mask_ref[...]           # (1, FLAT) interior mask (f32)

    # Both stride-3 stream convs fused into ONE block-diagonal GEMM over the
    # image tile, then ReLU -> BN (running stats).  Dropout: eval identity.
    # Channels 0..7 come from stream1, 8..15 from stream2 (used twice, matching
    # the PyTorch forward), so rows i*16+c hold cat([x1, x2, x3]) of image i.
    conv = dot(wstream_ref[...], pcat_ref[...])                  # (itc, FLAT) f32
    xc = (jnp.maximum(conv + b_s, 0.0) * s_s + h_s) * mask
    xcb = xc.astype(bf16)

    # EmbeddingBlock.conv1: 1x1 Conv (BN folded) -> ReLU.
    y = jnp.maximum(dot(we1_ref[...], xcb) + be1, 0.0)

    # SpatialAttentionBlock over adaptive_avg_pool2d(xc, (POOL, POOL)).
    pooled = dot(xcb, pool_ref[...])                             # (itc, 25) 2x2 avg pool
    rsum = rsum_ref[...]                                         # (it, itc), 1/C per image block
    att = jnp.zeros((it, SPATIAL), f32)
    for k in range(NUM_CLASSES):
        prod = (wcam_ref[k] * pooled).astype(bf16)               # (itc, 25)
        cam = dot(rsum, prod)                                    # (it, 25): per-image CAM (mean over C)
        cam = cam - jnp.min(cam, axis=1, keepdims=True)
        # Faithful to the PyTorch reference: no eps guard on the max.
        cam = cam * pl.reciprocal(jnp.max(cam, axis=1, keepdims=True), approx=True)
        att = att + cam
    att = att * (1.0 / NUM_CLASSES)
    att_bc = dot(rbc_ref[...], att.astype(bf16))                 # (itc, 25): per-image broadcast over channels
    att_up = dot(att_bc.astype(bf16), up_ref[...])               # (itc, FLAT): nearest x2 upsample
    a = xc + att_up * y                                          # x + interpolate(att) * conv1(x)

    # conv2: 3x3 Conv (BN folded) -> ReLU.  The 9 taps are static lane slices
    # of a zero-padded copy (XLU relayouts) -- no one-hot shift matmuls -- and
    # the 9 real weight GEMMs accumulate in f32 registers.
    def conv2(v):
        vb = v.astype(bf16)
        zpad = jnp.zeros((itc, SHIFT_PAD), bf16)
        vp = jnp.concatenate([zpad, vb, zpad], axis=1)           # (itc, FLAT + 2*SHIFT_PAD)
        acc = None
        for t, off in enumerate(TAP_OFFSETS):
            shifted = vp[:, SHIFT_PAD + off: SHIFT_PAD + off + FLAT]
            term = dot(we2_ref[t], shifted)
            acc = term if acc is None else acc + term
        return jnp.maximum(acc + be2, 0.0) * mask

    z = conv2(a)
    a = a + z                                                    # x + y + z
    e = conv2(a)
    a = a + e                                                    # x + y + z + e
    out = conv2(a)

    # Downsample: 2x2 max pool via 4 tap-selection matmuls (Dropout and the
    # final AdaptiveAvgPool2d(5,5) are identities here).
    ob = out.astype(bf16)
    m = None
    for t in range(4):
        g = dot(ob, gmax_ref[t])                                 # (itc, 25)
        m = g if m is None else jnp.maximum(m, g)

    # Classifier collapsed to one small GEMM:
    #   logits[i, k] = sum_{c,s} cls_w[k, c*25+s] * m[i*C+c, s] + b[k]
    cols = [jnp.sum(wcam_ref[k] * m, axis=1, keepdims=True).astype(bf16)
            for k in range(NUM_CLASSES)]
    r3 = jnp.concatenate(cols, axis=1)                           # (itc, NUM_CLASSES)
    logits = dot(rsum, r3) * float(FEATUREMAPS) + clsb_ref[...]  # (it, NUM_CLASSES)
    out_ref[...] = jnp.concatenate(
        [logits, jnp.zeros((it, OUT_LANES - NUM_CLASSES), f32)], axis=1)


# ---------------------------------------------------------------------------
# Wrapper: patch construction, BN folding, block-diagonal tiling, pallas_call
# ---------------------------------------------------------------------------

def _im2col_padded(x, stride, padding, dilation):
    """im2col for a 3x3 conv via 9 static strided slices (no gather).

    Returns (B, KDIM, FLAT): column _q(h, w) holds the 27 patch values of
    conv-output pixel (h, w); the padding ring is zero; K is padded 27 -> 32.
    """
    # TODO(synk): the stride-3 patch extraction stays a host-side XLA prolog
    # (in bf16, already in its final layout); an in-kernel version would need
    # stride-3 lane slices which Mosaic may not lower cleanly.
    B, C, _, _ = x.shape
    xp = jnp.pad(x, ((0, 0), (0, 0), (padding, padding), (padding, padding)))
    taps = []
    for kh in range(3):
        for kw in range(3):
            r0, c0 = kh * dilation, kw * dilation
            taps.append(lax.slice(
                xp, (0, 0, r0, c0),
                (B, C, r0 + stride * (CONV_HW - 1) + 1, c0 + stride * (CONV_HW - 1) + 1),
                (1, 1, stride, stride)))                         # (B, C, 10, 10)
    pat = jnp.stack(taps, axis=2).reshape(B, K_RAW, CONV_HW, CONV_HW)
    pat = jnp.pad(pat, ((0, 0), (0, KDIM - K_RAW), (1, 1), (1, 1)))
    return pat.reshape(B, KDIM, FLAT)


def _block_diag(w, n):
    """(m, k) -> (n*m, n*k) block-diagonal replication of w."""
    m, k = w.shape
    eye = jnp.eye(n, dtype=w.dtype)
    return (eye[:, None, :, None] * w[None, :, None, :]).reshape(n * m, n * k)


def _prepare_params(p, it):
    """Fold eval-mode BN, pack per-channel vectors, and build the per-tile
    block-diagonal / tiled weight operands for an image tile of size `it`."""
    f32 = jnp.float32
    bf16 = jnp.bfloat16
    nch = FEATUREMAPS // 2
    half = nch // 2

    # Stream conv weights -> one (C, 2*KDIM) matrix [w1 | w2] (K padded 27->32).
    w1m = p["s1_w"].reshape(nch, K_RAW)
    w2m = p["s2_w"].reshape(half, K_RAW)
    wcat = jnp.zeros((FEATUREMAPS, KCAT), f32)
    wcat = wcat.at[:nch, :K_RAW].set(w1m)
    wcat = wcat.at[nch:nch + half, KDIM:KDIM + K_RAW].set(w2m)
    wcat = wcat.at[nch + half:, KDIM:KDIM + K_RAW].set(w2m)

    # Per-channel params over the concatenated 16 channels (stream2 twice).
    b_s = jnp.concatenate([p["s1_b"], p["s2_b"], p["s2_b"]])
    s_s = jnp.concatenate([p["s1_scale"], p["s2_scale"], p["s2_scale"]])
    h_s = jnp.concatenate([p["s1_shift"], p["s2_shift"], p["s2_shift"]])
    be1 = p["e1_scale"] * p["e1_b"] + p["e1_shift"]
    be2 = p["e2_scale"] * p["e2_b"] + p["e2_shift"]
    pad = jnp.zeros((FEATUREMAPS,), f32)
    chan16 = jnp.stack([b_s, s_s, h_s, be1, be2, pad, pad, pad], axis=1)   # (C, 8)

    we1 = p["e1_w"][:, :, 0, 0] * p["e1_scale"][:, None]                   # (C, C)
    we2 = (p["e2_w"] * p["e2_scale"][:, None, None, None]
           ).transpose(2, 3, 0, 1).reshape(TAPS, FEATUREMAPS, FEATUREMAPS)

    wcam = p["cls_w"].reshape(NUM_CLASSES, FEATUREMAPS, SPATIAL)
    clsb = p["cls_b"].reshape(1, NUM_CLASSES).astype(f32)

    wstream = _block_diag(wcat, it).astype(bf16)                 # (it*C, it*64)
    we1b = _block_diag(we1, it).astype(bf16)                     # (it*C, it*C)
    we2b = jnp.stack([_block_diag(we2[t], it) for t in range(TAPS)]).astype(bf16)
    chan = jnp.tile(chan16, (it, 1)).astype(f32)                 # (it*C, 8)
    wcam_t = jnp.tile(wcam, (1, it, 1)).astype(f32)              # (3, it*C, 25)
    rsum = _block_diag(jnp.full((1, FEATUREMAPS), 1.0 / FEATUREMAPS, f32), it).astype(bf16)
    rbc = _block_diag(jnp.ones((FEATUREMAPS, 1), f32), it).astype(bf16)
    return wstream, chan, we1b, we2b, wcam_t, rsum, rbc, clsb


def _shared_spec(arr):
    zeros = (0,) * arr.ndim
    return pl.BlockSpec(arr.shape, lambda b: zeros)


@jax.jit
def rcnfnet_forward(params, x):
    assert x.shape[1] == NUM_INPUT and x.shape[2] == IMG_HW and x.shape[3] == IMG_HW
    B = x.shape[0]
    it = min(IMG_TILE, B)
    num_tiles = pl.cdiv(B, it)
    b_pad = num_tiles * it

    xb = x.astype(jnp.bfloat16)
    if b_pad != B:
        # Edge-replicate so pad images are real data (keeps the CAM
        # normalisation away from 0/0 on pad rows); results are sliced off.
        xb = jnp.pad(xb, ((0, b_pad - B), (0, 0), (0, 0), (0, 0)), mode="edge")

    # im2col patches for both streams, stacked per image along K (bf16).
    p1 = _im2col_padded(xb, stride=3, padding=1, dilation=1)     # (b_pad, 32, FLAT)
    p2 = _im2col_padded(xb, stride=3, padding=2, dilation=2)
    pcat = jnp.concatenate([p1, p2], axis=1).reshape(b_pad * KCAT, FLAT)

    wstream, chan, we1b, we2b, wcam_t, rsum, rbc, clsb = _prepare_params(params, it)
    pool_avg = jnp.asarray(_POOL_NP, jnp.bfloat16)
    up_near = jnp.asarray(_UP_NP, jnp.bfloat16)
    gmax = jnp.asarray(_GMAX_NP, jnp.bfloat16)
    mask = jnp.asarray(_MASK_NP, jnp.float32)

    operands = (pcat, wstream, chan, we1b, we2b, pool_avg, up_near, gmax,
                wcam_t, rsum, rbc, clsb, mask)
    in_specs = [pl.BlockSpec((it * KCAT, FLAT), lambda b: (b, 0))] + [
        _shared_spec(a) for a in operands[1:]]

    out = pl.pallas_call(
        _rcnf_kernel,
        out_shape=jax.ShapeDtypeStruct((b_pad, OUT_LANES), jnp.float32),
        grid=(num_tiles,),
        in_specs=in_specs,
        out_specs=pl.BlockSpec((it, OUT_LANES), lambda b: (b, 0)),
        compiler_params=pltpu.CompilerParams(dimension_semantics=("parallel",)),
    )(*operands)
    return out[:B, :NUM_CLASSES]


# ---------------------------------------------------------------------------
# Pure-JAX reference (mirrors the PyTorch forward) used as a self-check.
# ---------------------------------------------------------------------------

def _conv2d(x, w, b, stride, padding, dilation):
    out = lax.conv_general_dilated(
        x, w, window_strides=(stride, stride),
        padding=((padding, padding), (padding, padding)),
        rhs_dilation=(dilation, dilation),
        dimension_numbers=("NCHW", "OIHW", "NCHW"))
    return out + b[None, :, None, None]


def _bn(t, scale, shift):
    return t * scale[None, :, None, None] + shift[None, :, None, None]


@jax.jit
def reference_forward(p, x):
    x1 = _bn(jax.nn.relu(_conv2d(x, p["s1_w"], p["s1_b"], 3, 1, 1)),
             p["s1_scale"], p["s1_shift"])
    x2 = _bn(jax.nn.relu(_conv2d(x, p["s2_w"], p["s2_b"], 3, 2, 2)),
             p["s2_scale"], p["s2_shift"])
    xc = jnp.concatenate([x1, x2, x2], axis=1)          # stream2 used twice
    B, C = xc.shape[0], xc.shape[1]

    y = jax.nn.relu(_bn(_conv2d(xc, p["e1_w"], p["e1_b"], 1, 0, 1),
                        p["e1_scale"], p["e1_shift"]))
    pooled = xc.reshape(B, C, POOL, 2, POOL, 2).mean(axis=(3, 5))
    wr = p["cls_w"].reshape(NUM_CLASSES, C, POOL, POOL)
    cams = []
    for k in range(NUM_CLASSES):
        cam = (wr[k][None] * pooled).mean(axis=1, keepdims=True)
        cam = cam - cam.min(axis=(2, 3), keepdims=True)
        cam = cam / cam.max(axis=(2, 3), keepdims=True)
        cams.append(cam)
    att = jnp.concatenate(cams, axis=1).mean(axis=1, keepdims=True)
    att_up = jnp.repeat(jnp.repeat(att, 2, axis=2), 2, axis=3)
    a = xc + att_up * y

    def conv2(t):
        return jax.nn.relu(_bn(_conv2d(t, p["e2_w"], p["e2_b"], 1, 1, 1),
                               p["e2_scale"], p["e2_shift"]))

    z = conv2(a)
    a = a + z
    e = conv2(a)
    a = a + e
    out = conv2(a)
    out = out.reshape(B, C, POOL, 2, POOL, 2).max(axis=(3, 5))
    feat = out.reshape(B, C * SPATIAL)
    return feat @ p["cls_w"].T + p["cls_b"][None, :]


# ---------------------------------------------------------------------------
# Deterministic synthetic parameters (eval-mode BN: mean=0, var=1, gamma=1, beta=0)
# ---------------------------------------------------------------------------

def init_params(key):
    nch = FEATUREMAPS // 2
    keys = jax.random.split(key, 9)

    def conv_w(k, cout, cin, ksz):            # kaiming-normal-ish (fan_out)
        fan_out = cout * ksz * ksz
        return jax.random.normal(k, (cout, cin, ksz, ksz), jnp.float32) * jnp.sqrt(2.0 / fan_out)

    def conv_b(k, cout, cin, ksz):            # torch default conv bias init
        bound = 1.0 / jnp.sqrt(cin * ksz * ksz)
        return jax.random.uniform(k, (cout,), jnp.float32, -bound, bound)

    bn_scale = lambda c: jnp.full((c,), 1.0 / jnp.sqrt(1.0 + BN_EPS), jnp.float32)
    bn_shift = lambda c: jnp.zeros((c,), jnp.float32)

    return {
        "s1_w": conv_w(keys[0], nch, NUM_INPUT, 3), "s1_b": conv_b(keys[1], nch, NUM_INPUT, 3),
        "s1_scale": bn_scale(nch), "s1_shift": bn_shift(nch),
        "s2_w": conv_w(keys[2], nch // 2, NUM_INPUT, 3), "s2_b": conv_b(keys[3], nch // 2, NUM_INPUT, 3),
        "s2_scale": bn_scale(nch // 2), "s2_shift": bn_shift(nch // 2),
        # stream3 exists in the PyTorch module but forward() never uses it (stream2 is called twice).
        "e1_w": conv_w(keys[4], FEATUREMAPS, FEATUREMAPS, 1), "e1_b": conv_b(keys[5], FEATUREMAPS, FEATUREMAPS, 1),
        "e1_scale": bn_scale(FEATUREMAPS), "e1_shift": bn_shift(FEATUREMAPS),
        "e2_w": conv_w(keys[6], FEATUREMAPS, FEATUREMAPS, 3), "e2_b": conv_b(keys[7], FEATUREMAPS, FEATUREMAPS, 3),
        "e2_scale": bn_scale(FEATUREMAPS), "e2_shift": bn_shift(FEATUREMAPS),
        "cls_w": jax.random.normal(keys[8], (NUM_CLASSES, SPATIAL * FEATUREMAPS), jnp.float32) * 0.01,
        "cls_b": jnp.zeros((NUM_CLASSES,), jnp.float32),
    }


if __name__ == "__main__":
    batch = 2
    key = jax.random.PRNGKey(0)
    pkey, xkey = jax.random.split(key)
    params = init_params(pkey)
    x = jax.random.normal(xkey, (batch, NUM_INPUT, IMG_HW, IMG_HW), jnp.float32)

    logits = rcnfnet_forward(params, x)
    jax.block_until_ready(logits)
    assert logits.shape == (batch, NUM_CLASSES)

    # Self-check against a pure-JAX reference (tolerance covers the bf16 MXU
    # operands and the approx reciprocal in the CAM normalisation).
    ref = reference_forward(params, x)
    max_err = float(jnp.max(jnp.abs(logits - ref)))
    assert max_err < 5e-2, f"kernel deviates from reference: max abs err = {max_err}"

    print("KERNEL_OK")
</pallas_src>

<mosaic_0001>
module attributes {stable_mosaic.version = 11 : i64} {
  func.func @_rcnf_kernel(%arg0: i32, %arg1: memref<128x144xbf16, #tpu.memory_space<vmem>>, %arg2: memref<32x128xbf16, #tpu.memory_space<vmem>>, %arg3: memref<32x8xf32, #tpu.memory_space<vmem>>, %arg4: memref<32x32xbf16, #tpu.memory_space<vmem>>, %arg5: memref<9x32x32xbf16, #tpu.memory_space<vmem>>, %arg6: memref<144x25xbf16, #tpu.memory_space<vmem>>, %arg7: memref<25x144xbf16, #tpu.memory_space<vmem>>, %arg8: memref<4x144x25xbf16, #tpu.memory_space<vmem>>, %arg9: memref<3x32x25xf32, #tpu.memory_space<vmem>>, %arg10: memref<2x32xbf16, #tpu.memory_space<vmem>>, %arg11: memref<32x2xbf16, #tpu.memory_space<vmem>>, %arg12: memref<1x3xf32, #tpu.memory_space<vmem>>, %arg13: memref<1x144xf32, #tpu.memory_space<vmem>>, %arg14: memref<2x128xf32, #tpu.memory_space<vmem>>) attributes {dimension_semantics = [#tpu.dimension_semantics<parallel>], iteration_bounds = array<i64: 1>, scalar_prefetch = 0 : i64, scratch_operands = 0 : i64, tpu.core_type = #tpu.core_type<tc>, window_params = [{transform_indices = @transform_0, window_bounds = array<i64: 128, 144>}, {pipeline_mode = #tpu.pipeline_mode<synchronous>, transform_indices = @transform_1, window_bounds = array<i64: 32, 128>}, {pipeline_mode = #tpu.pipeline_mode<synchronous>, transform_indices = @transform_2, window_bounds = array<i64: 32, 8>}, {pipeline_mode = #tpu.pipeline_mode<synchronous>, transform_indices = @transform_3, window_bounds = array<i64: 32, 32>}, {pipeline_mode = #tpu.pipeline_mode<synchronous>, transform_indices = @transform_4, window_bounds = array<i64: 9, 32, 32>}, {pipeline_mode = #tpu.pipeline_mode<synchronous>, transform_indices = @transform_5, window_bounds = array<i64: 144, 25>}, {pipeline_mode = #tpu.pipeline_mode<synchronous>, transform_indices = @transform_6, window_bounds = array<i64: 25, 144>}, {pipeline_mode = #tpu.pipeline_mode<synchronous>, transform_indices = @transform_7, window_bounds = array<i64: 4, 144, 25>}, {pipeline_mode = #tpu.pipeline_mode<synchronous>, transform_indices = @transform_8, window_bounds = array<i64: 3, 32, 25>}, {pipeline_mode = #tpu.pipeline_mode<synchronous>, transform_indices = @transform_9, window_bounds = array<i64: 2, 32>}, {pipeline_mode = #tpu.pipeline_mode<synchronous>, transform_indices = @transform_10, window_bounds = array<i64: 32, 2>}, {pipeline_mode = #tpu.pipeline_mode<synchronous>, transform_indices = @transform_11, window_bounds = array<i64: 1, 3>}, {pipeline_mode = #tpu.pipeline_mode<synchronous>, transform_indices = @transform_12, window_bounds = array<i64: 1, 144>}, {transform_indices = @transform_13, window_bounds = array<i64: 2, 128>}]} {
    %c0 = arith.constant 0 : index
    %c0_0 = arith.constant 0 : index
    %0 = vector.load %arg3[%c0, %c0_0] : memref<32x8xf32, #tpu.memory_space<vmem>>, vector<32x8xf32>
    %1 = vector.extract_strided_slice %0 {offsets = [0, 0], sizes = [32, 1], strides = [1, 1]} : vector<32x8xf32> to vector<32x1xf32>
    %2 = vector.extract_strided_slice %0 {offsets = [0, 1], sizes = [32, 1], strides = [1, 1]} : vector<32x8xf32> to vector<32x1xf32>
    %3 = vector.extract_strided_slice %0 {offsets = [0, 2], sizes = [32, 1], strides = [1, 1]} : vector<32x8xf32> to vector<32x1xf32>
    %4 = vector.extract_strided_slice %0 {offsets = [0, 3], sizes = [32, 1], strides = [1, 1]} : vector<32x8xf32> to vector<32x1xf32>
    %5 = vector.extract_strided_slice %0 {offsets = [0, 4], sizes = [32, 1], strides = [1, 1]} : vector<32x8xf32> to vector<32x1xf32>
    %c0_1 = arith.constant 0 : index
    %c0_2 = arith.constant 0 : index
    %6 = vector.load %arg13[%c0_1, %c0_2] : memref<1x144xf32, #tpu.memory_space<vmem>>, vector<1x144xf32>
    %c0_3 = arith.constant 0 : index
    %c0_4 = arith.constant 0 : index
    %7 = vector.load %arg2[%c0_3, %c0_4] : memref<32x128xbf16, #tpu.memory_space<vmem>>, vector<32x128xbf16>
    %c0_5 = arith.constant 0 : index
    %c0_6 = arith.constant 0 : index
    %8 = vector.load %arg1[%c0_5, %c0_6] : memref<128x144xbf16, #tpu.memory_space<vmem>>, vector<128x144xbf16>
    %cst = arith.constant dense<0.000000e+00> : vector<32x144xf32>
    %9 = tpu.matmul %7, %8, %cst {dimension_numbers = #tpu.dot_dimension_numbers<[1], [0], [0], [1], [0, 0, 1, 1], [], []>} : vector<32x128xbf16>, vector<128x144xbf16>, vector<32x144xf32> -> vector<32x144xf32>
    %10 = vector.broadcast %1 : vector<32x1xf32> to vector<32x144xf32>
    %11 = arith.addf %9, %10 : vector<32x144xf32>
    %cst_7 = arith.constant 0.000000e+00 : f32
    %12 = vector.broadcast %cst_7 : f32 to vector<32x144xf32>
    %13 = arith.maximumf %11, %12 : vector<32x144xf32>
    %14 = vector.broadcast %2 : vector<32x1xf32> to vector<32x144xf32>
    %15 = arith.mulf %13, %14 : vector<32x144xf32>
    %16 = vector.broadcast %3 : vector<32x1xf32> to vector<32x144xf32>
    %17 = arith.addf %15, %16 : vector<32x144xf32>
    %18 = vector.broadcast %6 : vector<1x144xf32> to vector<32x144xf32>
    %19 = arith.mulf %17, %18 : vector<32x144xf32>
    %20 = arith.truncf %19 : vector<32x144xf32> to vector<32x144xbf16>
    %c0_8 = arith.constant 0 : index
    %c0_9 = arith.constant 0 : index
    %21 = vector.load %arg4[%c0_8, %c0_9] : memref<32x32xbf16, #tpu.memory_space<vmem>>, vector<32x32xbf16>
    %cst_10 = arith.constant dense<0.000000e+00> : vector<32x144xf32>
    %22 = tpu.matmul %21, %20, %cst_10 {dimension_numbers = #tpu.dot_dimension_numbers<[1], [0], [0], [1], [0, 0, 1, 1], [], []>} : vector<32x32xbf16>, vector<32x144xbf16>, vector<32x144xf32> -> vector<32x144xf32>
    %23 = vector.broadcast %4 : vector<32x1xf32> to vector<32x144xf32>
    %24 = arith.addf %22, %23 : vector<32x144xf32>
    %cst_11 = arith.constant 0.000000e+00 : f32
    %25 = vector.broadcast %cst_11 : f32 to vector<32x144xf32>
    %26 = arith.maximumf %24, %25 : vector<32x144xf32>
    %c0_12 = arith.constant 0 : index
    %c0_13 = arith.constant 0 : index
    %27 = vector.load %arg6[%c0_12, %c0_13] : memref<144x25xbf16, #tpu.memory_space<vmem>>, vector<144x25xbf16>
    %cst_14 = arith.constant dense<0.000000e+00> : vector<32x25xf32>
    %28 = tpu.matmul %20, %27, %cst_14 {dimension_numbers = #tpu.dot_dimension_numbers<[1], [0], [0], [1], [0, 0, 1, 1], [], []>} : vector<32x144xbf16>, vector<144x25xbf16>, vector<32x25xf32> -> vector<32x25xf32>
    %c0_15 = arith.constant 0 : index
    %c0_16 = arith.constant 0 : index
    %29 = vector.load %arg10[%c0_15, %c0_16] : memref<2x32xbf16, #tpu.memory_space<vmem>>, vector<2x32xbf16>
    %cst_17 = arith.constant 0.000000e+00 : f32
    %30 = vector.broadcast %cst_17 : f32 to vector<2x25xf32>
    %c0_18 = arith.constant 0 : index
    %c0_19 = arith.constant 0 : index
    %c0_20 = arith.constant 0 : index
    %31 = vector.load %arg9[%c0_18, %c0_19, %c0_20] : memref<3x32x25xf32, #tpu.memory_space<vmem>>, vector<1x32x25xf32>
    %32 = vector.shape_cast %31 : vector<1x32x25xf32> to vector<32x25xf32>
    %33 = arith.mulf %32, %28 : vector<32x25xf32>
    %34 = arith.truncf %33 : vector<32x25xf32> to vector<32x25xbf16>
    %cst_21 = arith.constant dense<0.000000e+00> : vector<2x25xf32>
    %35 = tpu.matmul %29, %34, %cst_21 {dimension_numbers = #tpu.dot_dimension_numbers<[1], [0], [0], [1], [0, 0, 1, 1], [], []>} : vector<2x32xbf16>, vector<32x25xbf16>, vector<2x25xf32> -> vector<2x25xf32>
    %cst_22 = arith.constant dense<0x7F800000> : vector<2xf32>
    %36 = vector.multi_reduction <minimumf>, %35, %cst_22 [1] : vector<2x25xf32> to vector<2xf32>
    %37 = vector.shape_cast %36 : vector<2xf32> to vector<2x1xf32>
    %38 = vector.broadcast %37 : vector<2x1xf32> to vector<2x25xf32>
    %39 = arith.subf %35, %38 : vector<2x25xf32>
    %cst_23 = arith.constant dense<0xFF800000> : vector<2xf32>
    %40 = vector.multi_reduction <maximumf>, %39, %cst_23 [1] : vector<2x25xf32> to vector<2xf32>
    %41 = vector.shape_cast %40 : vector<2xf32> to vector<2x1xf32>
    %42 = tpu.reciprocal %41 {approx = true} : vector<2x1xf32> -> vector<2x1xf32>
    %43 = vector.broadcast %42 : vector<2x1xf32> to vector<2x25xf32>
    %44 = arith.mulf %39, %43 : vector<2x25xf32>
    %45 = arith.addf %30, %44 : vector<2x25xf32>
    %c1 = arith.constant 1 : index
    %c0_24 = arith.constant 0 : index
    %c0_25 = arith.constant 0 : index
    %46 = vector.load %arg9[%c1, %c0_24, %c0_25] : memref<3x32x25xf32, #tpu.memory_space<vmem>>, vector<1x32x25xf32>
    %47 = vector.shape_cast %46 : vector<1x32x25xf32> to vector<32x25xf32>
    %48 = arith.mulf %47, %28 : vector<32x25xf32>
    %49 = arith.truncf %48 : vector<32x25xf32> to vector<32x25xbf16>
    %cst_26 = arith.constant dense<0.000000e+00> : vector<2x25xf32>
    %50 = tpu.matmul %29, %49, %cst_26 {dimension_numbers = #tpu.dot_dimension_numbers<[1], [0], [0], [1], [0, 0, 1, 1], [], []>} : vector<2x32xbf16>, vector<32x25xbf16>, vector<2x25xf32> -> vector<2x25xf32>
    %cst_27 = arith.constant dense<0x7F800000> : vector<2xf32>
    %51 = vector.multi_reduction <minimumf>, %50, %cst_27 [1] : vector<2x25xf32> to vector<2xf32>
    %52 = vector.shape_cast %51 : vector<2xf32> to vector<2x1xf32>
    %53 = vector.broadcast %52 : vector<2x1xf32> to vector<2x25xf32>
    %54 = arith.subf %50, %53 : vector<2x25xf32>
    %cst_28 = arith.constant dense<0xFF800000> : vector<2xf32>
    %55 = vector.multi_reduction <maximumf>, %54, %cst_28 [1] : vector<2x25xf32> to vector<2xf32>
    %56 = vector.shape_cast %55 : vector<2xf32> to vector<2x1xf32>
    %57 = tpu.reciprocal %56 {approx = true} : vector<2x1xf32> -> vector<2x1xf32>
    %58 = vector.broadcast %57 : vector<2x1xf32> to vector<2x25xf32>
    %59 = arith.mulf %54, %58 : vector<2x25xf32>
    %60 = arith.addf %45, %59 : vector<2x25xf32>
    %c2 = arith.constant 2 : index
    %c0_29 = arith.constant 0 : index
    %c0_30 = arith.constant 0 : index
    %61 = vector.load %arg9[%c2, %c0_29, %c0_30] : memref<3x32x25xf32, #tpu.memory_space<vmem>>, vector<1x32x25xf32>
    %62 = vector.shape_cast %61 : vector<1x32x25xf32> to vector<32x25xf32>
    %63 = arith.mulf %62, %28 : vector<32x25xf32>
    %64 = arith.truncf %63 : vector<32x25xf32> to vector<32x25xbf16>
    %cst_31 = arith.constant dense<0.000000e+00> : vector<2x25xf32>
    %65 = tpu.matmul %29, %64, %cst_31 {dimension_numbers = #tpu.dot_dimension_numbers<[1], [0], [0], [1], [0, 0, 1, 1], [], []>} : vector<2x32xbf16>, vector<32x25xbf16>, vector<2x25xf32> -> vector<2x25xf32>
    %cst_32 = arith.constant dense<0x7F800000> : vector<2xf32>
    %66 = vector.multi_reduction <minimumf>, %65, %cst_32 [1] : vector<2x25xf32> to vector<2xf32>
    %67 = vector.shape_cast %66 : vector<2xf32> to vector<2x1xf32>
    %68 = vector.broadcast %67 : vector<2x1xf32> to vector<2x25xf32>
    %69 = arith.subf %65, %68 : vector<2x25xf32>
    %cst_33 = arith.constant dense<0xFF800000> : vector<2xf32>
    %70 = vector.multi_reduction <maximumf>, %69, %cst_33 [1] : vector<2x25xf32> to vector<2xf32>
    %71 = vector.shape_cast %70 : vector<2xf32> to vector<2x1xf32>
    %72 = tpu.reciprocal %71 {approx = true} : vector<2x1xf32> -> vector<2x1xf32>
    %73 = vector.broadcast %72 : vector<2x1xf32> to vector<2x25xf32>
    %74 = arith.mulf %69, %73 : vector<2x25xf32>
    %75 = arith.addf %60, %74 : vector<2x25xf32>
    %cst_34 = arith.constant 0.333333343 : f32
    %76 = vector.broadcast %cst_34 : f32 to vector<2x25xf32>
    %77 = arith.mulf %75, %76 : vector<2x25xf32>
    %c0_35 = arith.constant 0 : index
    %c0_36 = arith.constant 0 : index
    %78 = vector.load %arg11[%c0_35, %c0_36] : memref<32x2xbf16, #tpu.memory_space<vmem>>, vector<32x2xbf16>
    %79 = arith.truncf %77 : vector<2x25xf32> to vector<2x25xbf16>
    %cst_37 = arith.constant dense<0.000000e+00> : vector<32x25xf32>
    %80 = tpu.matmul %78, %79, %cst_37 {dimension_numbers = #tpu.dot_dimension_numbers<[1], [0], [0], [1], [0, 0, 1, 1], [], []>} : vector<32x2xbf16>, vector<2x25xbf16>, vector<32x25xf32> -> vector<32x25xf32>
    %81 = arith.truncf %80 : vector<32x25xf32> to vector<32x25xbf16>
    %c0_38 = arith.constant 0 : index
    %c0_39 = arith.constant 0 : index
    %82 = vector.load %arg7[%c0_38, %c0_39] : memref<25x144xbf16, #tpu.memory_space<vmem>>, vector<25x144xbf16>
    %cst_40 = arith.constant dense<0.000000e+00> : vector<32x144xf32>
    %83 = tpu.matmul %81, %82, %cst_40 {dimension_numbers = #tpu.dot_dimension_numbers<[1], [0], [0], [1], [0, 0, 1, 1], [], []>} : vector<32x25xbf16>, vector<25x144xbf16>, vector<32x144xf32> -> vector<32x144xf32>
    %84 = arith.mulf %83, %26 : vector<32x144xf32>
    %85 = arith.addf %19, %84 : vector<32x144xf32>
    %86 = arith.truncf %85 : vector<32x144xf32> to vector<32x144xbf16>
    %cst_41 = arith.constant 0.000000e+00 : bf16
    %87 = vector.broadcast %cst_41 : bf16 to vector<32x16xbf16>
    %88 = tpu.concatenate %87, %86, %87 in 1 : vector<32x16xbf16>, vector<32x144xbf16>, vector<32x16xbf16> -> vector<32x176xbf16>
    %89 = vector.extract_strided_slice %88 {offsets = [0, 3], sizes = [32, 144], strides = [1, 1]} : vector<32x176xbf16> to vector<32x144xbf16>
    %c0_42 = arith.constant 0 : index
    %c0_43 = arith.constant 0 : index
    %c0_44 = arith.constant 0 : index
    %90 = vector.load %arg5[%c0_42, %c0_43, %c0_44] : memref<9x32x32xbf16, #tpu.memory_space<vmem>>, vector<1x32x32xbf16>
    %91 = vector.shape_cast %90 : vector<1x32x32xbf16> to vector<32x32xbf16>
    %cst_45 = arith.constant dense<0.000000e+00> : vector<32x144xf32>
    %92 = tpu.matmul %91, %89, %cst_45 {dimension_numbers = #tpu.dot_dimension_numbers<[1], [0], [0], [1], [0, 0, 1, 1], [], []>} : vector<32x32xbf16>, vector<32x144xbf16>, vector<32x144xf32> -> vector<32x144xf32>
    %93 = vector.extract_strided_slice %88 {offsets = [0, 4], sizes = [32, 144], strides = [1, 1]} : vector<32x176xbf16> to vector<32x144xbf16>
    %c1_46 = arith.constant 1 : index
    %c0_47 = arith.constant 0 : index
    %c0_48 = arith.constant 0 : index
    %94 = vector.load %arg5[%c1_46, %c0_47, %c0_48] : memref<9x32x32xbf16, #tpu.memory_space<vmem>>, vector<1x32x32xbf16>
    %95 = vector.shape_cast %94 : vector<1x32x32xbf16> to vector<32x32xbf16>
    %cst_49 = arith.constant dense<0.000000e+00> : vector<32x144xf32>
    %96 = tpu.matmul %95, %93, %cst_49 {dimension_numbers = #tpu.dot_dimension_numbers<[1], [0], [0], [1], [0, 0, 1, 1], [], []>} : vector<32x32xbf16>, vector<32x144xbf16>, vector<32x144xf32> -> vector<32x144xf32>
    %97 = arith.addf %92, %96 : vector<32x144xf32>
    %98 = vector.extract_strided_slice %88 {offsets = [0, 5], sizes = [32, 144], strides = [1, 1]} : vector<32x176xbf16> to vector<32x144xbf16>
    %c2_50 = arith.constant 2 : index
    %c0_51 = arith.constant 0 : index
    %c0_52 = arith.constant 0 : index
    %99 = vector.load %arg5[%c2_50, %c0_51, %c0_52] : memref<9x32x32xbf16, #tpu.memory_space<vmem>>, vector<1x32x32xbf16>
    %100 = vector.shape_cast %99 : vector<1x32x32xbf16> to vector<32x32xbf16>
    %cst_53 = arith.constant dense<0.000000e+00> : vector<32x144xf32>
    %101 = tpu.matmul %100, %98, %cst_53 {dimension_numbers = #tpu.dot_dimension_numbers<[1], [0], [0], [1], [0, 0, 1, 1], [], []>} : vector<32x32xbf16>, vector<32x144xbf16>, vector<32x144xf32> -> vector<32x144xf32>
    %102 = arith.addf %97, %101 : vector<32x144xf32>
    %103 = vector.extract_strided_slice %88 {offsets = [0, 15], sizes = [32, 144], strides = [1, 1]} : vector<32x176xbf16> to vector<32x144xbf16>
    %c3 = arith.constant 3 : index
    %c0_54 = arith.constant 0 : index
    %c0_55 = arith.constant 0 : index
    %104 = vector.load %arg5[%c3, %c0_54, %c0_55] : memref<9x32x32xbf16, #tpu.memory_space<vmem>>, vector<1x32x32xbf16>
    %105 = vector.shape_cast %104 : vector<1x32x32xbf16> to vector<32x32xbf16>
    %cst_56 = arith.constant dense<0.000000e+00> : vector<32x144xf32>
    %106 = tpu.matmul %105, %103, %cst_56 {dimension_numbers = #tpu.dot_dimension_numbers<[1], [0], [0], [1], [0, 0, 1, 1], [], []>} : vector<32x32xbf16>, vector<32x144xbf16>, vector<32x144xf32> -> vector<32x144xf32>
    %107 = arith.addf %102, %106 : vector<32x144xf32>
    %108 = vector.extract_strided_slice %88 {offsets = [0, 16], sizes = [32, 144], strides = [1, 1]} : vector<32x176xbf16> to vector<32x144xbf16>
    %c4 = arith.constant 4 : index
    %c0_57 = arith.constant 0 : index
    %c0_58 = arith.constant 0 : index
    %109 = vector.load %arg5[%c4, %c0_57, %c0_58] : memref<9x32x32xbf16, #tpu.memory_space<vmem>>, vector<1x32x32xbf16>
    %110 = vector.shape_cast %109 : vector<1x32x32xbf16> to vector<32x32xbf16>
    %cst_59 = arith.constant dense<0.000000e+00> : vector<32x144xf32>
    %111 = tpu.matmul %110, %108, %cst_59 {dimension_numbers = #tpu.dot_dimension_numbers<[1], [0], [0], [1], [0, 0, 1, 1], [], []>} : vector<32x32xbf16>, vector<32x144xbf16>, vector<32x144xf32> -> vector<32x144xf32>
    %112 = arith.addf %107, %111 : vector<32x144xf32>
    %113 = vector.extract_strided_slice %88 {offsets = [0, 17], sizes = [32, 144], strides = [1, 1]} : vector<32x176xbf16> to vector<32x144xbf16>
    %c5 = arith.constant 5 : index
    %c0_60 = arith.constant 0 : index
    %c0_61 = arith.constant 0 : index
    %114 = vector.load %arg5[%c5, %c0_60, %c0_61] : memref<9x32x32xbf16, #tpu.memory_space<vmem>>, vector<1x32x32xbf16>
    %115 = vector.shape_cast %114 : vector<1x32x32xbf16> to vector<32x32xbf16>
    %cst_62 = arith.constant dense<0.000000e+00> : vector<32x144xf32>
    %116 = tpu.matmul %115, %113, %cst_62 {dimension_numbers = #tpu.dot_dimension_numbers<[1], [0], [0], [1], [0, 0, 1, 1], [], []>} : vector<32x32xbf16>, vector<32x144xbf16>, vector<32x144xf32> -> vector<32x144xf32>
    %117 = arith.addf %112, %116 : vector<32x144xf32>
    %118 = vector.extract_strided_slice %88 {offsets = [0, 27], sizes = [32, 144], strides = [1, 1]} : vector<32x176xbf16> to vector<32x144xbf16>
    %c6 = arith.constant 6 : index
    %c0_63 = arith.constant 0 : index
    %c0_64 = arith.constant 0 : index
    %119 = vector.load %arg5[%c6, %c0_63, %c0_64] : memref<9x32x32xbf16, #tpu.memory_space<vmem>>, vector<1x32x32xbf16>
    %120 = vector.shape_cast %119 : vector<1x32x32xbf16> to vector<32x32xbf16>
    %cst_65 = arith.constant dense<0.000000e+00> : vector<32x144xf32>
    %121 = tpu.matmul %120, %118, %cst_65 {dimension_numbers = #tpu.dot_dimension_numbers<[1], [0], [0], [1], [0, 0, 1, 1], [], []>} : vector<32x32xbf16>, vector<32x144xbf16>, vector<32x144xf32> -> vector<32x144xf32>
    %122 = arith.addf %117, %121 : vector<32x144xf32>
    %123 = vector.extract_strided_slice %88 {offsets = [0, 28], sizes = [32, 144], strides = [1, 1]} : vector<32x176xbf16> to vector<32x144xbf16>
    %c7 = arith.constant 7 : index
    %c0_66 = arith.constant 0 : index
    %c0_67 = arith.constant 0 : index
    %124 = vector.load %arg5[%c7, %c0_66, %c0_67] : memref<9x32x32xbf16, #tpu.memory_space<vmem>>, vector<1x32x32xbf16>
    %125 = vector.shape_cast %124 : vector<1x32x32xbf16> to vector<32x32xbf16>
    %cst_68 = arith.constant dense<0.000000e+00> : vector<32x144xf32>
    %126 = tpu.matmul %125, %123, %cst_68 {dimension_numbers = #tpu.dot_dimension_numbers<[1], [0], [0], [1], [0, 0, 1, 1], [], []>} : vector<32x32xbf16>, vector<32x144xbf16>, vector<32x144xf32> -> vector<32x144xf32>
    %127 = arith.addf %122, %126 : vector<32x144xf32>
    %128 = vector.extract_strided_slice %88 {offsets = [0, 29], sizes = [32, 144], strides = [1, 1]} : vector<32x176xbf16> to vector<32x144xbf16>
    %c8 = arith.constant 8 : index
    %c0_69 = arith.constant 0 : index
    %c0_70 = arith.constant 0 : index
    %129 = vector.load %arg5[%c8, %c0_69, %c0_70] : memref<9x32x32xbf16, #tpu.memory_space<vmem>>, vector<1x32x32xbf16>
    %130 = vector.shape_cast %129 : vector<1x32x32xbf16> to vector<32x32xbf16>
    %cst_71 = arith.constant dense<0.000000e+00> : vector<32x144xf32>
    %131 = tpu.matmul %130, %128, %cst_71 {dimension_numbers = #tpu.dot_dimension_numbers<[1], [0], [0], [1], [0, 0, 1, 1], [], []>} : vector<32x32xbf16>, vector<32x144xbf16>, vector<32x144xf32> -> vector<32x144xf32>
    %132 = arith.addf %127, %131 : vector<32x144xf32>
    %133 = vector.broadcast %5 : vector<32x1xf32> to vector<32x144xf32>
    %134 = arith.addf %132, %133 : vector<32x144xf32>
    %cst_72 = arith.constant 0.000000e+00 : f32
    %135 = vector.broadcast %cst_72 : f32 to vector<32x144xf32>
    %136 = arith.maximumf %134, %135 : vector<32x144xf32>
    %137 = vector.broadcast %6 : vector<1x144xf32> to vector<32x144xf32>
    %138 = arith.mulf %136, %137 : vector<32x144xf32>
    %139 = arith.addf %85, %138 : vector<32x144xf32>
    %140 = arith.truncf %139 : vector<32x144xf32> to vector<32x144xbf16>
    %cst_73 = arith.constant 0.000000e+00 : bf16
    %141 = vector.broadcast %cst_73 : bf16 to vector<32x16xbf16>
    %142 = tpu.concatenate %141, %140, %141 in 1 : vector<32x16xbf16>, vector<32x144xbf16>, vector<32x16xbf16> -> vector<32x176xbf16>
    %143 = vector.extract_strided_slice %142 {offsets = [0, 3], sizes = [32, 144], strides = [1, 1]} : vector<32x176xbf16> to vector<32x144xbf16>
    %c0_74 = arith.constant 0 : index
    %c0_75 = arith.constant 0 : index
    %c0_76 = arith.constant 0 : index
    %144 = vector.load %arg5[%c0_74, %c0_75, %c0_76] : memref<9x32x32xbf16, #tpu.memory_space<vmem>>, vector<1x32x32xbf16>
    %145 = vector.shape_cast %144 : vector<1x32x32xbf16> to vector<32x32xbf16>
    %cst_77 = arith.constant dense<0.000000e+00> : vector<32x144xf32>
    %146 = tpu.matmul %145, %143, %cst_77 {dimension_numbers = #tpu.dot_dimension_numbers<[1], [0], [0], [1], [0, 0, 1, 1], [], []>} : vector<32x32xbf16>, vector<32x144xbf16>, vector<32x144xf32> -> vector<32x144xf32>
    %147 = vector.extract_strided_slice %142 {offsets = [0, 4], sizes = [32, 144], strides = [1, 1]} : vector<32x176xbf16> to vector<32x144xbf16>
    %c1_78 = arith.constant 1 : index
    %c0_79 = arith.constant 0 : index
    %c0_80 = arith.constant 0 : index
    %148 = vector.load %arg5[%c1_78, %c0_79, %c0_80] : memref<9x32x32xbf16, #tpu.memory_space<vmem>>, vector<1x32x32xbf16>
    %149 = vector.shape_cast %148 : vector<1x32x32xbf16> to vector<32x32xbf16>
    %cst_81 = arith.constant dense<0.000000e+00> : vector<32x144xf32>
    %150 = tpu.matmul %149, %147, %cst_81 {dimension_numbers = #tpu.dot_dimension_numbers<[1], [0], [0], [1], [0, 0, 1, 1], [], []>} : vector<32x32xbf16>, vector<32x144xbf16>, vector<32x144xf32> -> vector<32x144xf32>
    %151 = arith.addf %146, %150 : vector<32x144xf32>
    %152 = vector.extract_strided_slice %142 {offsets = [0, 5], sizes = [32, 144], strides = [1, 1]} : vector<32x176xbf16> to vector<32x144xbf16>
    %c2_82 = arith.constant 2 : index
    %c0_83 = arith.constant 0 : index
    %c0_84 = arith.constant 0 : index
    %153 = vector.load %arg5[%c2_82, %c0_83, %c0_84] : memref<9x32x32xbf16, #tpu.memory_space<vmem>>, vector<1x32x32xbf16>
    %154 = vector.shape_cast %153 : vector<1x32x32xbf16> to vector<32x32xbf16>
    %cst_85 = arith.constant dense<0.000000e+00> : vector<32x144xf32>
    %155 = tpu.matmul %154, %152, %cst_85 {dimension_numbers = #tpu.dot_dimension_numbers<[1], [0], [0], [1], [0, 0, 1, 1], [], []>} : vector<32x32xbf16>, vector<32x144xbf16>, vector<32x144xf32> -> vector<32x144xf32>
    %156 = arith.addf %151, %155 : vector<32x144xf32>
    %157 = vector.extract_strided_slice %142 {offsets = [0, 15], sizes = [32, 144], strides = [1, 1]} : vector<32x176xbf16> to vector<32x144xbf16>
    %c3_86 = arith.constant 3 : index
    %c0_87 = arith.constant 0 : index
    %c0_88 = arith.constant 0 : index
    %158 = vector.load %arg5[%c3_86, %c0_87, %c0_88] : memref<9x32x32xbf16, #tpu.memory_space<vmem>>, vector<1x32x32xbf16>
    %159 = vector.shape_cast %158 : vector<1x32x32xbf16> to vector<32x32xbf16>
    %cst_89 = arith.constant dense<0.000000e+00> : vector<32x144xf32>
    %160 = tpu.matmul %159, %157, %cst_89 {dimension_numbers = #tpu.dot_dimension_numbers<[1], [0], [0], [1], [0, 0, 1, 1], [], []>} : vector<32x32xbf16>, vector<32x144xbf16>, vector<32x144xf32> -> vector<32x144xf32>
    %161 = arith.addf %156, %160 : vector<32x144xf32>
    %162 = vector.extract_strided_slice %142 {offsets = [0, 16], sizes = [32, 144], strides = [1, 1]} : vector<32x176xbf16> to vector<32x144xbf16>
    %c4_90 = arith.constant 4 : index
    %c0_91 = arith.constant 0 : index
    %c0_92 = arith.constant 0 : index
    %163 = vector.load %arg5[%c4_90, %c0_91, %c0_92] : memref<9x32x32xbf16, #tpu.memory_space<vmem>>, vector<1x32x32xbf16>
    %164 = vector.shape_cast %163 : vector<1x32x32xbf16> to vector<32x32xbf16>
    %cst_93 = arith.constant dense<0.000000e+00> : vector<32x144xf32>
    %165 = tpu.matmul %164, %162, %cst_93 {dimension_numbers = #tpu.dot_dimension_numbers<[1], [0], [0], [1], [0, 0, 1, 1], [], []>} : vector<32x32xbf16>, vector<32x144xbf16>, vector<32x144xf32> -> vector<32x144xf32>
    %166 = arith.addf %161, %165 : vector<32x144xf32>
    %167 = vector.extract_strided_slice %142 {offsets = [0, 17], sizes = [32, 144], strides = [1, 1]} : vector<32x176xbf16> to vector<32x144xbf16>
    %c5_94 = arith.constant 5 : index
    %c0_95 = arith.constant 0 : index
    %c0_96 = arith.constant 0 : index
    %168 = vector.load %arg5[%c5_94, %c0_95, %c0_96] : memref<9x32x32xbf16, #tpu.memory_space<vmem>>, vector<1x32x32xbf16>
    %169 = vector.shape_cast %168 : vector<1x32x32xbf16> to vector<32x32xbf16>
    %cst_97 = arith.constant dense<0.000000e+00> : vector<32x144xf32>
    %170 = tpu.matmul %169, %167, %cst_97 {dimension_numbers = #tpu.dot_dimension_numbers<[1], [0], [0], [1], [0, 0, 1, 1], [], []>} : vector<32x32xbf16>, vector<32x144xbf16>, vector<32x144xf32> -> vector<32x144xf32>
    %171 = arith.addf %166, %170 : vector<32x144xf32>
    %172 = vector.extract_strided_slice %142 {offsets = [0, 27], sizes = [32, 144], strides = [1, 1]} : vector<32x176xbf16> to vector<32x144xbf16>
    %c6_98 = arith.constant 6 : index
    %c0_99 = arith.constant 0 : index
    %c0_100 = arith.constant 0 : index
    %173 = vector.load %arg5[%c6_98, %c0_99, %c0_100] : memref<9x32x32xbf16, #tpu.memory_space<vmem>>, vector<1x32x32xbf16>
    %174 = vector.shape_cast %173 : vector<1x32x32xbf16> to vector<32x32xbf16>
    %cst_101 = arith.constant dense<0.000000e+00> : vector<32x144xf32>
    %175 = tpu.matmul %174, %172, %cst_101 {dimension_numbers = #tpu.dot_dimension_numbers<[1], [0], [0], [1], [0, 0, 1, 1], [], []>} : vector<32x32xbf16>, vector<32x144xbf16>, vector<32x144xf32> -> vector<32x144xf32>
    %176 = arith.addf %171, %175 : vector<32x144xf32>
    %177 = vector.extract_strided_slice %142 {offsets = [0, 28], sizes = [32, 144], strides = [1, 1]} : vector<32x176xbf16> to vector<32x144xbf16>
    %c7_102 = arith.constant 7 : index
    %c0_103 = arith.constant 0 : index
    %c0_104 = arith.constant 0 : index
    %178 = vector.load %arg5[%c7_102, %c0_103, %c0_104] : memref<9x32x32xbf16, #tpu.memory_space<vmem>>, vector<1x32x32xbf16>
    %179 = vector.shape_cast %178 : vector<1x32x32xbf16> to vector<32x32xbf16>
    %cst_105 = arith.constant dense<0.000000e+00> : vector<32x144xf32>
    %180 = tpu.matmul %179, %177, %cst_105 {dimension_numbers = #tpu.dot_dimension_numbers<[1], [0], [0], [1], [0, 0, 1, 1], [], []>} : vector<32x32xbf16>, vector<32x144xbf16>, vector<32x144xf32> -> vector<32x144xf32>
    %181 = arith.addf %176, %180 : vector<32x144xf32>
    %182 = vector.extract_strided_slice %142 {offsets = [0, 29], sizes = [32, 144], strides = [1, 1]} : vector<32x176xbf16> to vector<32x144xbf16>
    %c8_106 = arith.constant 8 : index
    %c0_107 = arith.constant 0 : index
    %c0_108 = arith.constant 0 : index
    %183 = vector.load %arg5[%c8_106, %c0_107, %c0_108] : memref<9x32x32xbf16, #tpu.memory_space<vmem>>, vector<1x32x32xbf16>
    %184 = vector.shape_cast %183 : vector<1x32x32xbf16> to vector<32x32xbf16>
    %cst_109 = arith.constant dense<0.000000e+00> : vector<32x144xf32>
    %185 = tpu.matmul %184, %182, %cst_109 {dimension_numbers = #tpu.dot_dimension_numbers<[1], [0], [0], [1], [0, 0, 1, 1], [], []>} : vector<32x32xbf16>, vector<32x144xbf16>, vector<32x144xf32> -> vector<32x144xf32>
    %186 = arith.addf %181, %185 : vector<32x144xf32>
    %187 = vector.broadcast %5 : vector<32x1xf32> to vector<32x144xf32>
    %188 = arith.addf %186, %187 : vector<32x144xf32>
    %cst_110 = arith.constant 0.000000e+00 : f32
    %189 = vector.broadcast %cst_110 : f32 to vector<32x144xf32>
    %190 = arith.maximumf %188, %189 : vector<32x144xf32>
    %191 = vector.broadcast %6 : vector<1x144xf32> to vector<32x144xf32>
    %192 = arith.mulf %190, %191 : vector<32x144xf32>
    %193 = arith.addf %139, %192 : vector<32x144xf32>
    %194 = arith.truncf %193 : vector<32x144xf32> to vector<32x144xbf16>
    %cst_111 = arith.constant 0.000000e+00 : bf16
    %195 = vector.broadcast %cst_111 : bf16 to vector<32x16xbf16>
    %196 = tpu.concatenate %195, %194, %195 in 1 : vector<32x16xbf16>, vector<32x144xbf16>, vector<32x16xbf16> -> vector<32x176xbf16>
    %197 = vector.extract_strided_slice %196 {offsets = [0, 3], sizes = [32, 144], strides = [1, 1]} : vector<32x176xbf16> to vector<32x144xbf16>
    %c0_112 = arith.constant 0 : index
    %c0_113 = arith.constant 0 : index
    %c0_114 = arith.constant 0 : index
    %198 = vector.load %arg5[%c0_112, %c0_113, %c0_114] : memref<9x32x32xbf16, #tpu.memory_space<vmem>>, vector<1x32x32xbf16>
    %199 = vector.shape_cast %198 : vector<1x32x32xbf16> to vector<32x32xbf16>
    %cst_115 = arith.constant dense<0.000000e+00> : vector<32x144xf32>
    %200 = tpu.matmul %199, %197, %cst_115 {dimension_numbers = #tpu.dot_dimension_numbers<[1], [0], [0], [1], [0, 0, 1, 1], [], []>} : vector<32x32xbf16>, vector<32x144xbf16>, vector<32x144xf32> -> vector<32x144xf32>
    %201 = vector.extract_strided_slice %196 {offsets = [0, 4], sizes = [32, 144], strides = [1, 1]} : vector<32x176xbf16> to vector<32x144xbf16>
    %c1_116 = arith.constant 1 : index
    %c0_117 = arith.constant 0 : index
    %c0_118 = arith.constant 0 : index
    %202 = vector.load %arg5[%c1_116, %c0_117, %c0_118] : memref<9x32x32xbf16, #tpu.memory_space<vmem>>, vector<1x32x32xbf16>
    %203 = vector.shape_cast %202 : vector<1x32x32xbf16> to vector<32x32xbf16>
    %cst_119 = arith.constant dense<0.000000e+00> : vector<32x144xf32>
    %204 = tpu.matmul %203, %201, %cst_119 {dimension_numbers = #tpu.dot_dimension_numbers<[1], [0], [0], [1], [0, 0, 1, 1], [], []>} : vector<32x32xbf16>, vector<32x144xbf16>, vector<32x144xf32> -> vector<32x144xf32>
    %205 = arith.addf %200, %204 : vector<32x144xf32>
    %206 = vector.extract_strided_slice %196 {offsets = [0, 5], sizes = [32, 144], strides = [1, 1]} : vector<32x176xbf16> to vector<32x144xbf16>
    %c2_120 = arith.constant 2 : index
    %c0_121 = arith.constant 0 : index
    %c0_122 = arith.constant 0 : index
    %207 = vector.load %arg5[%c2_120, %c0_121, %c0_122] : memref<9x32x32xbf16, #tpu.memory_space<vmem>>, vector<1x32x32xbf16>
    %208 = vector.shape_cast %207 : vector<1x32x32xbf16> to vector<32x32xbf16>
    %cst_123 = arith.constant dense<0.000000e+00> : vector<32x144xf32>
    %209 = tpu.matmul %208, %206, %cst_123 {dimension_numbers = #tpu.dot_dimension_numbers<[1], [0], [0], [1], [0, 0, 1, 1], [], []>} : vector<32x32xbf16>, vector<32x144xbf16>, vector<32x144xf32> -> vector<32x144xf32>
    %210 = arith.addf %205, %209 : vector<32x144xf32>
    %211 = vector.extract_strided_slice %196 {offsets = [0, 15], sizes = [32, 144], strides = [1, 1]} : vector<32x176xbf16> to vector<32x144xbf16>
    %c3_124 = arith.constant 3 : index
    %c0_125 = arith.constant 0 : index
    %c0_126 = arith.constant 0 : index
    %212 = vector.load %arg5[%c3_124, %c0_125, %c0_126] : memref<9x32x32xbf16, #tpu.memory_space<vmem>>, vector<1x32x32xbf16>
    %213 = vector.shape_cast %212 : vector<1x32x32xbf16> to vector<32x32xbf16>
    %cst_127 = arith.constant dense<0.000000e+00> : vector<32x144xf32>
    %214 = tpu.matmul %213, %211, %cst_127 {dimension_numbers = #tpu.dot_dimension_numbers<[1], [0], [0], [1], [0, 0, 1, 1], [], []>} : vector<32x32xbf16>, vector<32x144xbf16>, vector<32x144xf32> -> vector<32x144xf32>
    %215 = arith.addf %210, %214 : vector<32x144xf32>
    %216 = vector.extract_strided_slice %196 {offsets = [0, 16], sizes = [32, 144], strides = [1, 1]} : vector<32x176xbf16> to vector<32x144xbf16>
    %c4_128 = arith.constant 4 : index
    %c0_129 = arith.constant 0 : index
    %c0_130 = arith.constant 0 : index
    %217 = vector.load %arg5[%c4_128, %c0_129, %c0_130] : memref<9x32x32xbf16, #tpu.memory_space<vmem>>, vector<1x32x32xbf16>
    %218 = vector.shape_cast %217 : vector<1x32x32xbf16> to vector<32x32xbf16>
    %cst_131 = arith.constant dense<0.000000e+00> : vector<32x144xf32>
    %219 = tpu.matmul %218, %216, %cst_131 {dimension_numbers = #tpu.dot_dimension_numbers<[1], [0], [0], [1], [0, 0, 1, 1], [], []>} : vector<32x32xbf16>, vector<32x144xbf16>, vector<32x144xf32> -> vector<32x144xf32>
    %220 = arith.addf %215, %219 : vector<32x144xf32>
    %221 = vector.extract_strided_slice %196 {offsets = [0, 17], sizes = [32, 144], strides = [1, 1]} : vector<32x176xbf16> to vector<32x144xbf16>
    %c5_132 = arith.constant 5 : index
    %c0_133 = arith.constant 0 : index
    %c0_134 = arith.constant 0 : index
    %222 = vector.load %arg5[%c5_132, %c0_133, %c0_134] : memref<9x32x32xbf16, #tpu.memory_space<vmem>>, vector<1x32x32xbf16>
    %223 = vector.shape_cast %222 : vector<1x32x32xbf16> to vector<32x32xbf16>
    %cst_135 = arith.constant dense<0.000000e+00> : vector<32x144xf32>
    %224 = tpu.matmul %223, %221, %cst_135 {dimension_numbers = #tpu.dot_dimension_numbers<[1], [0], [0], [1], [0, 0, 1, 1], [], []>} : vector<32x32xbf16>, vector<32x144xbf16>, vector<32x144xf32> -> vector<32x144xf32>
    %225 = arith.addf %220, %224 : vector<32x144xf32>
    %226 = vector.extract_strided_slice %196 {offsets = [0, 27], sizes = [32, 144], strides = [1, 1]} : vector<32x176xbf16> to vector<32x144xbf16>
    %c6_136 = arith.constant 6 : index
    %c0_137 = arith.constant 0 : index
    %c0_138 = arith.constant 0 : index
    %227 = vector.load %arg5[%c6_136, %c0_137, %c0_138] : memref<9x32x32xbf16, #tpu.memory_space<vmem>>, vector<1x32x32xbf16>
    %228 = vector.shape_cast %227 : vector<1x32x32xbf16> to vector<32x32xbf16>
    %cst_139 = arith.constant dense<0.000000e+00> : vector<32x144xf32>
    %229 = tpu.matmul %228, %226, %cst_139 {dimension_numbers = #tpu.dot_dimension_numbers<[1], [0], [0], [1], [0, 0, 1, 1], [], []>} : vector<32x32xbf16>, vector<32x144xbf16>, vector<32x144xf32> -> vector<32x144xf32>
    %230 = arith.addf %225, %229 : vector<32x144xf32>
    %231 = vector.extract_strided_slice %196 {offsets = [0, 28], sizes = [32, 144], strides = [1, 1]} : vector<32x176xbf16> to vector<32x144xbf16>
    %c7_140 = arith.constant 7 : index
    %c0_141 = arith.constant 0 : index
    %c0_142 = arith.constant 0 : index
    %232 = vector.load %arg5[%c7_140, %c0_141, %c0_142] : memref<9x32x32xbf16, #tpu.memory_space<vmem>>, vector<1x32x32xbf16>
    %233 = vector.shape_cast %232 : vector<1x32x32xbf16> to vector<32x32xbf16>
    %cst_143 = arith.constant dense<0.000000e+00> : vector<32x144xf32>
    %234 = tpu.matmul %233, %231, %cst_143 {dimension_numbers = #tpu.dot_dimension_numbers<[1], [0], [0], [1], [0, 0, 1, 1], [], []>} : vector<32x32xbf16>, vector<32x144xbf16>, vector<32x144xf32> -> vector<32x144xf32>
    %235 = arith.addf %230, %234 : vector<32x144xf32>
    %236 = vector.extract_strided_slice %196 {offsets = [0, 29], sizes = [32, 144], strides = [1, 1]} : vector<32x176xbf16> to vector<32x144xbf16>
    %c8_144 = arith.constant 8 : index
    %c0_145 = arith.constant 0 : index
    %c0_146 = arith.constant 0 : index
    %237 = vector.load %arg5[%c8_144, %c0_145, %c0_146] : memref<9x32x32xbf16, #tpu.memory_space<vmem>>, vector<1x32x32xbf16>
    %238 = vector.shape_cast %237 : vector<1x32x32xbf16> to vector<32x32xbf16>
    %cst_147 = arith.constant dense<0.000000e+00> : vector<32x144xf32>
    %239 = tpu.matmul %238, %236, %cst_147 {dimension_numbers = #tpu.dot_dimension_numbers<[1], [0], [0], [1], [0, 0, 1, 1], [], []>} : vector<32x32xbf16>, vector<32x144xbf16>, vector<32x144xf32> -> vector<32x144xf32>
    %240 = arith.addf %235, %239 : vector<32x144xf32>
    %241 = vector.broadcast %5 : vector<32x1xf32> to vector<32x144xf32>
    %242 = arith.addf %240, %241 : vector<32x144xf32>
    %cst_148 = arith.constant 0.000000e+00 : f32
    %243 = vector.broadcast %cst_148 : f32 to vector<32x144xf32>
    %244 = arith.maximumf %242, %243 : vector<32x144xf32>
    %245 = vector.broadcast %6 : vector<1x144xf32> to vector<32x144xf32>
    %246 = arith.mulf %244, %245 : vector<32x144xf32>
    %247 = arith.truncf %246 : vector<32x144xf32> to vector<32x144xbf16>
    %c0_149 = arith.constant 0 : index
    %c0_150 = arith.constant 0 : index
    %c0_151 = arith.constant 0 : index
    %248 = vector.load %arg8[%c0_149, %c0_150, %c0_151] : memref<4x144x25xbf16, #tpu.memory_space<vmem>>, vector<1x144x25xbf16>
    %249 = vector.shape_cast %248 : vector<1x144x25xbf16> to vector<144x25xbf16>
    %cst_152 = arith.constant dense<0.000000e+00> : vector<32x25xf32>
    %250 = tpu.matmul %247, %249, %cst_152 {dimension_numbers = #tpu.dot_dimension_numbers<[1], [0], [0], [1], [0, 0, 1, 1], [], []>} : vector<32x144xbf16>, vector<144x25xbf16>, vector<32x25xf32> -> vector<32x25xf32>
    %c1_153 = arith.constant 1 : index
    %c0_154 = arith.constant 0 : index
    %c0_155 = arith.constant 0 : index
    %251 = vector.load %arg8[%c1_153, %c0_154, %c0_155] : memref<4x144x25xbf16, #tpu.memory_space<vmem>>, vector<1x144x25xbf16>
    %252 = vector.shape_cast %251 : vector<1x144x25xbf16> to vector<144x25xbf16>
    %cst_156 = arith.constant dense<0.000000e+00> : vector<32x25xf32>
    %253 = tpu.matmul %247, %252, %cst_156 {dimension_numbers = #tpu.dot_dimension_numbers<[1], [0], [0], [1], [0, 0, 1, 1], [], []>} : vector<32x144xbf16>, vector<144x25xbf16>, vector<32x25xf32> -> vector<32x25xf32>
    %254 = arith.maximumf %250, %253 : vector<32x25xf32>
    %c2_157 = arith.constant 2 : index
    %c0_158 = arith.constant 0 : index
    %c0_159 = arith.constant 0 : index
    %255 = vector.load %arg8[%c2_157, %c0_158, %c0_159] : memref<4x144x25xbf16, #tpu.memory_space<vmem>>, vector<1x144x25xbf16>
    %256 = vector.shape_cast %255 : vector<1x144x25xbf16> to vector<144x25xbf16>
    %cst_160 = arith.constant dense<0.000000e+00> : vector<32x25xf32>
    %257 = tpu.matmul %247, %256, %cst_160 {dimension_numbers = #tpu.dot_dimension_numbers<[1], [0], [0], [1], [0, 0, 1, 1], [], []>} : vector<32x144xbf16>, vector<144x25xbf16>, vector<32x25xf32> -> vector<32x25xf32>
    %258 = arith.maximumf %254, %257 : vector<32x25xf32>
    %c3_161 = arith.constant 3 : index
    %c0_162 = arith.constant 0 : index
    %c0_163 = arith.constant 0 : index
    %259 = vector.load %arg8[%c3_161, %c0_162, %c0_163] : memref<4x144x25xbf16, #tpu.memory_space<vmem>>, vector<1x144x25xbf16>
    %260 = vector.shape_cast %259 : vector<1x144x25xbf16> to vector<144x25xbf16>
    %cst_164 = arith.constant dense<0.000000e+00> : vector<32x25xf32>
    %261 = tpu.matmul %247, %260, %cst_164 {dimension_numbers = #tpu.dot_dimension_numbers<[1], [0], [0], [1], [0, 0, 1, 1], [], []>} : vector<32x144xbf16>, vector<144x25xbf16>, vector<32x25xf32> -> vector<32x25xf32>
    %262 = arith.maximumf %258, %261 : vector<32x25xf32>
    %c0_165 = arith.constant 0 : index
    %c0_166 = arith.constant 0 : index
    %c0_167 = arith.constant 0 : index
    %263 = vector.load %arg9[%c0_165, %c0_166, %c0_167] : memref<3x32x25xf32, #tpu.memory_space<vmem>>, vector<1x32x25xf32>
    %264 = vector.shape_cast %263 : vector<1x32x25xf32> to vector<32x25xf32>
    %265 = arith.mulf %264, %262 : vector<32x25xf32>
    %cst_168 = arith.constant dense<0.000000e+00> : vector<32xf32>
    %266 = vector.multi_reduction <add>, %265, %cst_168 [1] : vector<32x25xf32> to vector<32xf32>
    %267 = vector.shape_cast %266 : vector<32xf32> to vector<32x1xf32>
    %268 = arith.truncf %267 : vector<32x1xf32> to vector<32x1xbf16>
    %c1_169 = arith.constant 1 : index
    %c0_170 = arith.constant 0 : index
    %c0_171 = arith.constant 0 : index
    %269 = vector.load %arg9[%c1_169, %c0_170, %c0_171] : memref<3x32x25xf32, #tpu.memory_space<vmem>>, vector<1x32x25xf32>
    %270 = vector.shape_cast %269 : vector<1x32x25xf32> to vector<32x25xf32>
    %271 = arith.mulf %270, %262 : vector<32x25xf32>
    %cst_172 = arith.constant dense<0.000000e+00> : vector<32xf32>
    %272 = vector.multi_reduction <add>, %271, %cst_172 [1] : vector<32x25xf32> to vector<32xf32>
    %273 = vector.shape_cast %272 : vector<32xf32> to vector<32x1xf32>
    %274 = arith.truncf %273 : vector<32x1xf32> to vector<32x1xbf16>
    %c2_173 = arith.constant 2 : index
    %c0_174 = arith.constant 0 : index
    %c0_175 = arith.constant 0 : index
    %275 = vector.load %arg9[%c2_173, %c0_174, %c0_175] : memref<3x32x25xf32, #tpu.memory_space<vmem>>, vector<1x32x25xf32>
    %276 = vector.shape_cast %275 : vector<1x32x25xf32> to vector<32x25xf32>
    %277 = arith.mulf %276, %262 : vector<32x25xf32>
    %cst_176 = arith.constant dense<0.000000e+00> : vector<32xf32>
    %278 = vector.multi_reduction <add>, %277, %cst_176 [1] : vector<32x25xf32> to vector<32xf32>
    %279 = vector.shape_cast %278 : vector<32xf32> to vector<32x1xf32>
    %280 = arith.truncf %279 : vector<32x1xf32> to vector<32x1xbf16>
    %281 = tpu.concatenate %268, %274, %280 in 1 : vector<32x1xbf16>, vector<32x1xbf16>, vector<32x1xbf16> -> vector<32x3xbf16>
    %cst_177 = arith.constant dense<0.000000e+00> : vector<2x3xf32>
    %282 = tpu.matmul %29, %281, %cst_177 {dimension_numbers = #tpu.dot_dimension_numbers<[1], [0], [0], [1], [0, 0, 1, 1], [], []>} : vector<2x32xbf16>, vector<32x3xbf16>, vector<2x3xf32> -> vector<2x3xf32>
    %cst_178 = arith.constant 1.600000e+01 : f32
    %283 = vector.broadcast %cst_178 : f32 to vector<2x3xf32>
    %284 = arith.mulf %282, %283 : vector<2x3xf32>
    %c0_179 = arith.constant 0 : index
    %c0_180 = arith.constant 0 : index
    %285 = vector.load %arg12[%c0_179, %c0_180] : memref<1x3xf32, #tpu.memory_space<vmem>>, vector<1x3xf32>
    %286 = vector.broadcast %285 : vector<1x3xf32> to vector<2x3xf32>
    %287 = arith.addf %284, %286 : vector<2x3xf32>
    %cst_181 = arith.constant 0.000000e+00 : f32
    %288 = vector.broadcast %cst_181 : f32 to vector<2x125xf32>
    %289 = tpu.concatenate %287, %288 in 1 : vector<2x3xf32>, vector<2x125xf32> -> vector<2x128xf32>
    %c0_182 = arith.constant 0 : index
    %c0_183 = arith.constant 0 : index
    %290 = vector.load %arg14[%c0_182, %c0_183] : memref<2x128xf32, #tpu.memory_space<vmem>>, vector<2x128xf32>
    tpu.vector_store %arg14[%c0_182, %c0_183], %289 {strides = array<i32>} : memref<2x128xf32, #tpu.memory_space<vmem>>, vector<2x128xf32>,
    return
  }
  func.func @transform_0(%arg0: i32) -> (i32, i32) {
    %c0_i32 = arith.constant 0 : i32
    %c0_i32_0 = arith.constant 0 : i32
    return %arg0, %c0_i32 : i32, i32
  }
  func.func @transform_1(%arg0: i32) -> (i32, i32) {
    %c0_i32 = arith.constant 0 : i32
    %c0_i32_0 = arith.constant 0 : i32
    %c0_i32_1 = arith.constant 0 : i32
    return %c0_i32, %c0_i32_0 : i32, i32
  }
  func.func @transform_2(%arg0: i32) -> (i32, i32) {
    %c0_i32 = arith.constant 0 : i32
    %c0_i32_0 = arith.constant 0 : i32
    %c0_i32_1 = arith.constant 0 : i32
    return %c0_i32, %c0_i32_0 : i32, i32
  }
  func.func @transform_3(%arg0: i32) -> (i32, i32) {
    %c0_i32 = arith.constant 0 : i32
    %c0_i32_0 = arith.constant 0 : i32
    %c0_i32_1 = arith.constant 0 : i32
    return %c0_i32, %c0_i32_0 : i32, i32
  }
  func.func @transform_4(%arg0: i32) -> (i32, i32, i32) {
    %c0_i32 = arith.constant 0 : i32
    %c0_i32_0 = arith.constant 0 : i32
    %c0_i32_1 = arith.constant 0 : i32
    %c0_i32_2 = arith.constant 0 : i32
    return %c0_i32, %c0_i32_0, %c0_i32_1 : i32, i32, i32
  }
  func.func @transform_5(%arg0: i32) -> (i32, i32) {
    %c0_i32 = arith.constant 0 : i32
    %c0_i32_0 = arith.constant 0 : i32
    %c0_i32_1 = arith.constant 0 : i32
    return %c0_i32, %c0_i32_0 : i32, i32
  }
  func.func @transform_6(%arg0: i32) -> (i32, i32) {
    %c0_i32 = arith.constant 0 : i32
    %c0_i32_0 = arith.constant 0 : i32
    %c0_i32_1 = arith.constant 0 : i32
    return %c0_i32, %c0_i32_0 : i32, i32
  }
  func.func @transform_7(%arg0: i32) -> (i32, i32, i32) {
    %c0_i32 = arith.constant 0 : i32
    %c0_i32_0 = arith.constant 0 : i32
    %c0_i32_1 = arith.constant 0 : i32
    %c0_i32_2 = arith.constant 0 : i32
    return %c0_i32, %c0_i32_0, %c0_i32_1 : i32, i32, i32
  }
  func.func @transform_8(%arg0: i32) -> (i32, i32, i32) {
    %c0_i32 = arith.constant 0 : i32
    %c0_i32_0 = arith.constant 0 : i32
    %c0_i32_1 = arith.constant 0 : i32
    %c0_i32_2 = arith.constant 0 : i32
    return %c0_i32, %c0_i32_0, %c0_i32_1 : i32, i32, i32
  }
  func.func @transform_9(%arg0: i32) -> (i32, i32) {
    %c0_i32 = arith.constant 0 : i32
    %c0_i32_0 = arith.constant 0 : i32
    %c0_i32_1 = arith.constant 0 : i32
    return %c0_i32, %c0_i32_0 : i32, i32
  }
  func.func @transform_10(%arg0: i32) -> (i32, i32) {
    %c0_i32 = arith.constant 0 : i32
    %c0_i32_0 = arith.constant 0 : i32
    %c0_i32_1 = arith.constant 0 : i32
    return %c0_i32, %c0_i32_0 : i32, i32
  }
  func.func @transform_11(%arg0: i32) -> (i32, i32) {
    %c0_i32 = arith.constant 0 : i32
    %c0_i32_0 = arith.constant 0 : i32
    %c0_i32_1 = arith.constant 0 : i32
    return %c0_i32, %c0_i32_0 : i32, i32
  }
  func.func @transform_12(%arg0: i32) -> (i32, i32) {
    %c0_i32 = arith.constant 0 : i32
    %c0_i32_0 = arith.constant 0 : i32
    %c0_i32_1 = arith.constant 0 : i32
    return %c0_i32, %c0_i32_0 : i32, i32
  }
  func.func @transform_13(%arg0: i32) -> (i32, i32) {
    %c0_i32 = arith.constant 0 : i32
    %c0_i32_0 = arith.constant 0 : i32
    return %arg0, %c0_i32 : i32, i32
  }
}

</mosaic_0001>

<llo_original>
// kernel: rcnfnet_forward.1
$region0: #{rcnfnet_forward.1}
  #allocation0 [shape = 'u32[]', space=smem, size = 0x4, offset = 0x4, fixed_abs, tag = 'smem constant byte address 0x4 - core index']
  #allocation1 [shape = 'u32[144,128]{1,0:T(1,128)}', space=vmem, size = 0x12000, scoped, tag = 'internal scratch']
  %s0 = inlined_call_operand.vmem [shape: bf16[128,144], index: 0, kind: input, shape index: {}]
  %s1 = inlined_call_operand.vmem [shape: bf16[32,128], index: 1, kind: input, shape index: {}]
  %s2 = inlined_call_operand.vmem [shape: f32[32,8], index: 2, kind: input, shape index: {}]
  %s3 = inlined_call_operand.vmem [shape: bf16[32,32], index: 3, kind: input, shape index: {}]
  %s4 = inlined_call_operand.vmem [shape: bf16[9,32,32], index: 4, kind: input, shape index: {}]
  %s5 = inlined_call_operand.vmem [shape: bf16[144,25], index: 5, kind: input, shape index: {}]
  %s6 = inlined_call_operand.vmem [shape: bf16[25,144], index: 6, kind: input, shape index: {}]
  %s7 = inlined_call_operand.vmem [shape: bf16[4,144,25], index: 7, kind: input, shape index: {}]
  %s8 = inlined_call_operand.vmem [shape: f32[3,32,25], index: 8, kind: input, shape index: {}]
  %s9 = inlined_call_operand.vmem [shape: bf16[2,32], index: 9, kind: input, shape index: {}]
  %s10 = inlined_call_operand.vmem [shape: bf16[32,2], index: 10, kind: input, shape index: {}]
  %s11 = inlined_call_operand.vmem [shape: f32[1,3], index: 11, kind: input, shape index: {}]
  %s12 = inlined_call_operand.vmem [shape: f32[1,144], index: 12, kind: input, shape index: {}]
  %s13 = inlined_call_operand.hbm [shape: f32[2,128], index: 13, kind: output, shape index: {}]
  %s14 = sld [smem:[#allocation0]]
  $region62: #{rcnfnet_forward.1} parent=0
    _
  %s16 = ssub.s32 1, %s14
  %s17 = scalar_select 0, %s16, %s14
  $region1: #{rcnfnet_forward.1} parent=0
    #allocation2 [shape = 'u8[1024]{0}', space=vmem, size = 0x400, scoped, tag = 'output window, operand 0, single buffered']
    #allocation3 [shape = 's32[1]{0}', space=sflag, size = 0x4, scoped, tag = 'scoped memory for rcnfnet_forward.1']
    %18 = vsyncpa [#allocation3], 0
    // Predicated region
    $region2: #{rcnfnet_forward.1} parent=1 // pred_check
      _
    $region3: #{rcnfnet_forward.1} parent=1 // pred_check_branch
      %20 = sbr.rel (0) target = $region5
    $region4: #{rcnfnet_forward.1} parent=1 // pred_region
      _
    $region5: #{rcnfnet_forward.1} parent=1 // pred_fallthru
      _
    // Predicated region
    $region6: #{rcnfnet_forward.1} parent=1 // pred_check
      _
    $region7: #{rcnfnet_forward.1} parent=1 // pred_check_branch
      %22 = sbr.rel (0) target = $region9
    $region8: #{rcnfnet_forward.1} parent=1 // pred_region
      _
    $region9: #{rcnfnet_forward.1} parent=1 // pred_fallthru
      _
    // Predicated region
    $region10: #{rcnfnet_forward.1} parent=1 // pred_check
      _
    $region11: #{rcnfnet_forward.1} parent=1 // pred_check_branch
      %24 = sbr.rel (0) target = $region13
    $region12: #{rcnfnet_forward.1} parent=1 // pred_region
      _
    $region13: #{rcnfnet_forward.1} parent=1 // pred_fallthru
      _
    // Predicated region
    $region14: #{rcnfnet_forward.1} parent=1 // pred_check
      _
    $region15: #{rcnfnet_forward.1} parent=1 // pred_check_branch
      %26 = sbr.rel (0) target = $region17
    $region16: #{rcnfnet_forward.1} parent=1 // pred_region
      _
    $region17: #{rcnfnet_forward.1} parent=1 // pred_fallthru
      _
    // Predicated region
    $region18: #{rcnfnet_forward.1} parent=1 // pred_check
      _
    $region19: #{rcnfnet_forward.1} parent=1 // pred_check_branch
      %28 = sbr.rel (0) target = $region21
    $region20: #{rcnfnet_forward.1} parent=1 // pred_region
      _
    $region21: #{rcnfnet_forward.1} parent=1 // pred_fallthru
      _
    // Predicated region
    $region22: #{rcnfnet_forward.1} parent=1 // pred_check
      _
    $region23: #{rcnfnet_forward.1} parent=1 // pred_check_branch
      %30 = sbr.rel (0) target = $region25
    $region24: #{rcnfnet_forward.1} parent=1 // pred_region
      _
    $region25: #{rcnfnet_forward.1} parent=1 // pred_fallthru
      _
    // Predicated region
    $region26: #{rcnfnet_forward.1} parent=1 // pred_check
      _
    $region27: #{rcnfnet_forward.1} parent=1 // pred_check_branch
      %32 = sbr.rel (0) target = $region29
    $region28: #{rcnfnet_forward.1} parent=1 // pred_region
      _
    $region29: #{rcnfnet_forward.1} parent=1 // pred_fallthru
      _
    // Predicated region
    $region30: #{rcnfnet_forward.1} parent=1 // pred_check
      _
    $region31: #{rcnfnet_forward.1} parent=1 // pred_check_branch
      %34 = sbr.rel (0) target = $region33
    $region32: #{rcnfnet_forward.1} parent=1 // pred_region
      _
    $region33: #{rcnfnet_forward.1} parent=1 // pred_fallthru
      _
    // Predicated region
    $region34: #{rcnfnet_forward.1} parent=1 // pred_check
      _
    $region35: #{rcnfnet_forward.1} parent=1 // pred_check_branch
      %36 = sbr.rel (0) target = $region37
    $region36: #{rcnfnet_forward.1} parent=1 // pred_region
      _
    $region37: #{rcnfnet_forward.1} parent=1 // pred_fallthru
      _
    // Predicated region
    $region38: #{rcnfnet_forward.1} parent=1 // pred_check
      _
    $region39: #{rcnfnet_forward.1} parent=1 // pred_check_branch
      %38 = sbr.rel (0) target = $region41
    $region40: #{rcnfnet_forward.1} parent=1 // pred_region
      _
    $region41: #{rcnfnet_forward.1} parent=1 // pred_fallthru
      _
    // Predicated region
    $region42: #{rcnfnet_forward.1} parent=1 // pred_check
      _
    $region43: #{rcnfnet_forward.1} parent=1 // pred_check_branch
      %40 = sbr.rel (0) target = $region45
    $region44: #{rcnfnet_forward.1} parent=1 // pred_region
      _
    $region45: #{rcnfnet_forward.1} parent=1 // pred_fallthru
      _
    // Predicated region
    $region46: #{rcnfnet_forward.1} parent=1 // pred_check
      _
    $region47: #{rcnfnet_forward.1} parent=1 // pred_check_branch
      %42 = sbr.rel (0) target = $region49
    $region48: #{rcnfnet_forward.1} parent=1 // pred_region
      _
    $region49: #{rcnfnet_forward.1} parent=1 // pred_fallthru
      _
    // Predicated region
    $region50: #{rcnfnet_forward.1} parent=1 // pred_check
      _
    $region51: #{rcnfnet_forward.1} parent=1 // pred_check_branch
      %44 = sbr.rel (0) target = $region53
    $region52: #{rcnfnet_forward.1} parent=1 // pred_region
      _
    $region53: #{rcnfnet_forward.1} parent=1 // pred_fallthru
      _
    %v46 = vld [vmem:[%s2] sm:$0xff]
    %v47 = vld [vmem:[%s2 + $0x8] sm:$0xff]
    %v48 = vld [vmem:[%s2 + $0x10] sm:$0xff]
    %v49 = vld [vmem:[%s2 + $0x18] sm:$0xff]
    %v50 = vld [vmem:[%s12] sm:$0x3]
    %v51 = vld [vmem:[%s1] sm:$0xf]
    %v52 = vld [vmem:[%s1 + $0x4] sm:$0xf]
    %v53 = vld [vmem:[%s1 + $0x8] sm:$0xf]
    %v54 = vld [vmem:[%s1 + $0xc] sm:$0xf]
    %v55 = vld [vmem:[%s0] sm:$0xff]
    %v56 = vld [vmem:[%s0 + $0x8] sm:$0xff]
    %v57 = vld [vmem:[%s0 + $0x10] sm:$0xff]
    %v58 = vld [vmem:[%s0 + $0x18] sm:$0xff]
    %v59 = vld [vmem:[%s0 + $0x20] sm:$0xff]
    %v60 = vld [vmem:[%s0 + $0x28] sm:$0xff]
    %v61 = vld [vmem:[%s0 + $0x30] sm:$0xff]
    %v62 = vld [vmem:[%s0 + $0x38] sm:$0xff]
    %v63 = vld [vmem:[%s0 + $0x40] sm:$0xff]
    %v64 = vld [vmem:[%s0 + $0x48] sm:$0xff]
    %v65 = vld [vmem:[%s0 + $0x50] sm:$0xff]
    %v66 = vld [vmem:[%s0 + $0x58] sm:$0xff]
    %v67 = vld [vmem:[%s0 + $0x60] sm:$0xff]
    %v68 = vld [vmem:[%s0 + $0x68] sm:$0xff]
    %v69 = vld [vmem:[%s0 + $0x70] sm:$0xff]
    %v70 = vld [vmem:[%s0 + $0x78] sm:$0xff]
    %72 = vset.pattern.permute.xlu0 0
    %73 = vperm.xlu0 %72, %v46
    %v74 = vpop.permute.xlu0 %73
    %77 = vset.pattern.permute.xlu0 0
    %78 = vperm.xlu0 %77, %v47
    %v79 = vpop.permute.xlu0 %78
    %82 = vset.pattern.permute.xlu0 0
    %83 = vperm.xlu0 %82, %v48
    %v84 = vpop.permute.xlu0 %83
    %87 = vset.pattern.permute.xlu0 0
    %88 = vperm.xlu0 %87, %v49
    %v89 = vpop.permute.xlu0 %88
    %v95 = vunpack.c.l.b16 %v51
    %v96 = vunpack.c.l.b16 %v52
    %v97 = vunpack.c.l.b16 %v53
    %v98 = vunpack.c.l.b16 %v54
    %v99 = vpack.c.b16 %v96, %v95
    %v100 = vpack.c.b16 %v98, %v97
    %v119 = vunpack.c.l.b16 %v55
    %v120 = vunpack.c.h.b16 %v55
    %v121 = vunpack.c.l.b16 %v56
    %v122 = vunpack.c.h.b16 %v56
    %v123 = vunpack.c.l.b16 %v57
    %v124 = vunpack.c.h.b16 %v57
    %v125 = vunpack.c.l.b16 %v58
    %v126 = vunpack.c.h.b16 %v58
    %v127 = vunpack.c.l.b16 %v59
    %v128 = vunpack.c.h.b16 %v59
    %v129 = vunpack.c.l.b16 %v60
    %v130 = vunpack.c.h.b16 %v60
    %v131 = vunpack.c.l.b16 %v61
    %v132 = vunpack.c.h.b16 %v61
    %v133 = vunpack.c.l.b16 %v62
    %v134 = vunpack.c.h.b16 %v62
    %v135 = vunpack.c.l.b16 %v63
    %v136 = vunpack.c.h.b16 %v63
    %v137 = vunpack.c.l.b16 %v64
    %v138 = vunpack.c.h.b16 %v64
    %v139 = vunpack.c.l.b16 %v65
    %v140 = vunpack.c.h.b16 %v65
    %v141 = vunpack.c.l.b16 %v66
    %v142 = vunpack.c.h.b16 %v66
    %v143 = vunpack.c.l.b16 %v67
    %v144 = vunpack.c.h.b16 %v67
    %v145 = vunpack.c.l.b16 %v68
    %v146 = vunpack.c.h.b16 %v68
    %v147 = vunpack.c.l.b16 %v69
    %v148 = vunpack.c.h.b16 %v69
    %v149 = vunpack.c.l.b16 %v70
    %v150 = vunpack.c.h.b16 %v70
    %v151 = vpack.c.b16 %v121, %v119
    %v152 = vpack.c.b16 %v122, %v120
    %v153 = vpack.c.b16 %v125, %v123
    %v154 = vpack.c.b16 %v126, %v124
    %v155 = vpack.c.b16 %v129, %v127
    %v156 = vpack.c.b16 %v130, %v128
    %v157 = vpack.c.b16 %v133, %v131
    %v158 = vpack.c.b16 %v134, %v132
    %v159 = vpack.c.b16 %v137, %v135
    %v160 = vpack.c.b16 %v138, %v136
    %v161 = vpack.c.b16 %v141, %v139
    %v162 = vpack.c.b16 %v142, %v140
    %v163 = vpack.c.b16 %v145, %v143
    %v164 = vpack.c.b16 %v146, %v144
    %v165 = vpack.c.b16 %v149, %v147
    %v166 = vpack.c.b16 %v150, %v148
    %183 = vmatprep.subr.bf16.mxu0 %v166
    %184 = vmatpush1.bf16.msra.mxu0 %v165
    %185 = vmatprep.subr.bf16.mxu0 %v164
    %186 = vmatpush1.bf16.msra.mxu0 %v163
    %187 = vmatprep.subr.bf16.mxu0 %v162
    %188 = vmatpush1.bf16.msra.mxu0 %v161
    %189 = vmatprep.subr.bf16.mxu0 %v160
    %190 = vmatpush1.bf16.msra.mxu0 %v159
    %191 = vmatprep.subr.bf16.mxu0 %v158
    %192 = vmatpush1.bf16.msra.mxu0 %v157
    %193 = vmatprep.subr.bf16.mxu0 %v156
    %194 = vmatpush1.bf16.msra.mxu0 %v155
    %195 = vmatprep.subr.bf16.mxu0 %v154
    %196 = vmatpush1.bf16.msra.mxu0 %v153
    %197 = vmatprep.subr.bf16.mxu0 %v152
    %198 = vmatpush1.bf16.msra.mxu0 %v151
    %199 = vmatprep.subr.bf16.mxu0 0
    %200 = vmatpush2.bf16.msra.mxu0 0
    %201 = vmatprep.subr.bf16.mxu0 0
    %202 = vmatpush2.bf16.msra.mxu0 0
    %203 = vmatprep.subr.bf16.mxu0 0
    %204 = vmatpush2.bf16.msra.mxu0 0
    %205 = vmatprep.subr.bf16.mxu0 0
    %206 = vmatpush2.bf16.msra.mxu0 0
    %207 = vmatprep.subr.bf16.mxu0 0
    %208 = vmatpush2.bf16.msra.mxu0 0
    %209 = vmatprep.subr.bf16.mxu0 0
    %210 = vmatpush2.bf16.msra.mxu0 0
    %211 = vmatprep.subr.bf16.mxu0 0
    %212 = vmatpush2.bf16.msra.mxu0 0
    %213 = vmatprep.subr.bf16.mxu0 0
    %214 = vmatpush2.bf16.msra.mxu0 0
    %215 = vmatprep.mubr.bf16.mxu0 0
    %216 = vmatmul.mubr.bf16.gmra.mxu0 %v99
    %v217 = vpop.f32.mrf.mxu0
    %v218 = vadd.f32 %v74, %v217
    %v219 = vpop.f32.mrf.mxu0
    %v220 = vadd.f32 %v74, %v219
    %v221 = vpop.f32.mrf.mxu0
    %v222 = vadd.f32 %v79, %v221
    %v223 = vpop.f32.mrf.mxu0
    %v224 = vadd.f32 %v79, %v223
    %225 = vmatprep.mubr.bf16.mxu0 0
    %226 = vmatmul.mubr.bf16.gmra.mxu0 %v100
    %v227 = vpop.f32.mrf.mxu0
    %v228 = vadd.f32 %v84, %v227
    %v229 = vpop.f32.mrf.mxu0
    %v230 = vadd.f32 %v84, %v229
    %v231 = vpop.f32.mrf.mxu0
    %v232 = vadd.f32 %v89, %v231
    %v233 = vpop.f32.mrf.mxu0
    %v234 = vadd.f32 %v89, %v233
    %235 = vdwg.mxu0
    %v236 = vmax.f32 %v218, 0.0
    %v237 = vmax.f32 %v220, 0.0
    %v238 = vmax.f32 %v222, 0.0
    %v239 = vmax.f32 %v224, 0.0
    %v240 = vmax.f32 %v228, 0.0
    %v241 = vmax.f32 %v230, 0.0
    %v242 = vmax.f32 %v232, 0.0
    %v243 = vmax.f32 %v234, 0.0
    %244 = vset.pattern.permute.xlu0 1
    %245 = vperm.xlu0 %244, %v46
    %v246 = vpop.permute.xlu0 %245
    %248 = vset.pattern.permute.xlu0 1
    %249 = vperm.xlu0 %248, %v47
    %v250 = vpop.permute.xlu0 %249
    %252 = vset.pattern.permute.xlu0 1
    %253 = vperm.xlu0 %252, %v48
    %v254 = vpop.permute.xlu0 %253
    %256 = vset.pattern.permute.xlu0 1
    %257 = vperm.xlu0 %256, %v49
    %v258 = vpop.permute.xlu0 %257
    %v260 = vmul.f32 %v236, %v246
    %v261 = vmul.f32 %v237, %v246
    %v262 = vmul.f32 %v238, %v250
    %v263 = vmul.f32 %v239, %v250
    %v264 = vmul.f32 %v240, %v254
    %v265 = vmul.f32 %v241, %v254
    %v266 = vmul.f32 %v242, %v258
    %v267 = vmul.f32 %v243, %v258
    %268 = vset.pattern.permute.xlu0 2
    %269 = vperm.xlu0 %268, %v46
    %v270 = vpop.permute.xlu0 %269
    %272 = vset.pattern.permute.xlu0 2
    %273 = vperm.xlu0 %272, %v47
    %v274 = vpop.permute.xlu0 %273
    %276 = vset.pattern.permute.xlu0 2
    %277 = vperm.xlu0 %276, %v48
    %v278 = vpop.permute.xlu0 %277
    %280 = vset.pattern.permute.xlu0 2
    %281 = vperm.xlu0 %280, %v49
    %v282 = vpop.permute.xlu0 %281
    %v284 = vadd.f32 %v260, %v270
    %v285 = vadd.f32 %v261, %v270
    %v286 = vadd.f32 %v262, %v274
    %v287 = vadd.f32 %v263, %v274
    %v288 = vadd.f32 %v264, %v278
    %v289 = vadd.f32 %v265, %v278
    %v290 = vadd.f32 %v266, %v282
    %v291 = vadd.f32 %v267, %v282
    %v293 = vlaneseq
    %v294 = vshrl.u32 %v293, 7
    %v295 = vsub.s32 0, %v294
    %v296 = vrot.slane %v50, %v295
    %v297 = vlaneseq
    %v298 = vshrl.u32 %v297, 7
    %v299 = vsub.s32 1, %v298
    %v300 = vrot.slane %v50, %v299
    %v303 = vmul.f32 %v284, %v296
    %v304 = vmul.f32 %v285, %v300
    %v305 = vmul.f32 %v286, %v296
    %v306 = vmul.f32 %v287, %v300
    %v307 = vmul.f32 %v288, %v296
    %v308 = vmul.f32 %v289, %v300
    %v309 = vmul.f32 %v290, %v296
    %v310 = vmul.f32 %v291, %v300
    %v311 = vpack.c.bf16 %v305, %v303
    %v312 = vpack.c.bf16 %v306, %v304
    %v313 = vpack.c.bf16 %v309, %v307
    %v314 = vpack.c.bf16 %v310, %v308
    %v315 = vld [vmem:[%s3] sm:$0xf]
    %v316 = vld [vmem:[%s3 + $0x4] sm:$0xf]
    %v317 = vld [vmem:[%s3 + $0x8] sm:$0xf]
    %v318 = vld [vmem:[%s3 + $0xc] sm:$0xf]
    %319 = vset.pattern.permute.xlu0 3
    %320 = vperm.xlu0 %319, %v46
    %v321 = vpop.permute.xlu0 %320
    %323 = vset.pattern.permute.xlu0 3
    %324 = vperm.xlu0 %323, %v47
    %v325 = vpop.permute.xlu0 %324
    %327 = vset.pattern.permute.xlu0 3
    %328 = vperm.xlu0 %327, %v48
    %v329 = vpop.permute.xlu0 %328
    %331 = vset.pattern.permute.xlu0 3
    %332 = vperm.xlu0 %331, %v49
    %v333 = vpop.permute.xlu0 %332
    %v339 = vunpack.c.l.b16 %v315
    %v340 = vunpack.c.l.b16 %v316
    %v341 = vunpack.c.l.b16 %v317
    %v342 = vunpack.c.l.b16 %v318
    %v343 = vpack.c.b16 %v340, %v339
    %v344 = vpack.c.b16 %v342, %v341
    %vm345 = vcmask 261120
    %v347 = vsel %vm345, %v343, 0
    %v350 = vsel %vm345, %v344, 0
    %352 = vmatprep.subr.bf16.mxu0 0
    %353 = vmatpush1.bf16.msra.mxu0 0
    %354 = vmatprep.subr.bf16.mxu0 0
    %355 = vmatpush1.bf16.msra.mxu0 0
    %356 = vmatprep.subr.bf16.mxu0 0
    %357 = vmatpush1.bf16.msra.mxu0 0
    %358 = vmatprep.subr.bf16.mxu0 0
    %359 = vmatpush1.bf16.msra.mxu0 0
    %360 = vmatprep.subr.bf16.mxu0 0
    %361 = vmatpush1.bf16.msra.mxu0 0
    %362 = vmatprep.subr.bf16.mxu0 0
    %363 = vmatpush1.bf16.msra.mxu0 0
    %364 = vmatprep.subr.bf16.mxu0 %v314
    %365 = vmatpush1.bf16.msra.mxu0 %v313
    %366 = vmatprep.subr.bf16.mxu0 %v312
    %367 = vmatpush1.bf16.msra.mxu0 %v311
    %368 = vmatprep.subr.bf16.mxu0 0
    %369 = vmatpush2.bf16.msra.mxu0 0
    %370 = vmatprep.subr.bf16.mxu0 0
    %371 = vmatpush2.bf16.msra.mxu0 0
    %372 = vmatprep.subr.bf16.mxu0 0
    %373 = vmatpush2.bf16.msra.mxu0 0
    %374 = vmatprep.subr.bf16.mxu0 0
    %375 = vmatpush2.bf16.msra.mxu0 0
    %376 = vmatprep.subr.bf16.mxu0 0
    %377 = vmatpush2.bf16.msra.mxu0 0
    %378 = vmatprep.subr.bf16.mxu0 0
    %379 = vmatpush2.bf16.msra.mxu0 0
    %380 = vmatprep.subr.bf16.mxu0 0
    %381 = vmatpush2.bf16.msra.mxu0 0
    %382 = vmatprep.subr.bf16.mxu0 0
    %383 = vmatpush2.bf16.msra.mxu0 0
    %384 = vmatprep.mubr.bf16.mxu0 0
    %385 = vmatmul.mubr.bf16.gmra.mxu0 %v347
    %v386 = vpop.f32.mrf.mxu0
    %v387 = vadd.f32 %v321, %v386
    %v388 = vpop.f32.mrf.mxu0
    %v389 = vadd.f32 %v321, %v388
    %v390 = vpop.f32.mrf.mxu0
    %v391 = vadd.f32 %v325, %v390
    %v392 = vpop.f32.mrf.mxu0
    %v393 = vadd.f32 %v325, %v392
    %394 = vmatprep.mubr.bf16.mxu0 0
    %395 = vmatmul.mubr.bf16.gmra.mxu0 %v350
    %v396 = vpop.f32.mrf.mxu0
    %v397 = vadd.f32 %v329, %v396
    %v398 = vpop.f32.mrf.mxu0
    %v399 = vadd.f32 %v329, %v398
    %v400 = vpop.f32.mrf.mxu0
    %v401 = vadd.f32 %v333, %v400
    %v402 = vpop.f32.mrf.mxu0
    %v403 = vadd.f32 %v333, %v402
    %404 = vdwg.mxu0
    %v405 = vmax.f32 %v387, 0.0
    %v406 = vmax.f32 %v389, 0.0
    %v407 = vmax.f32 %v391, 0.0
    %v408 = vmax.f32 %v393, 0.0
    %v409 = vmax.f32 %v397, 0.0
    %v410 = vmax.f32 %v399, 0.0
    %v411 = vmax.f32 %v401, 0.0
    %v412 = vmax.f32 %v403, 0.0
    %v413 = vld [vmem:[%s5] sm:$0xf]
    %v414 = vld [vmem:[%s5 + $0x4] sm:$0xf]
    %v415 = vld [vmem:[%s5 + $0x8] sm:$0xf]
    %v416 = vld [vmem:[%s5 + $0xc] sm:$0xf]
    %v417 = vld [vmem:[%s5 + $0x10] sm:$0xf]
    %v418 = vld [vmem:[%s5 + $0x14] sm:$0xf]
    %v419 = vld [vmem:[%s5 + $0x18] sm:$0xf]
    %v420 = vld [vmem:[%s5 + $0x1c] sm:$0xf]
    %v421 = vld [vmem:[%s5 + $0x20] sm:$0xf]
    %v422 = vld [vmem:[%s5 + $0x24] sm:$0xf]
    %v423 = vld [vmem:[%s5 + $0x28] sm:$0xf]
    %v424 = vld [vmem:[%s5 + $0x2c] sm:$0xf]
    %v425 = vld [vmem:[%s5 + $0x30] sm:$0xf]
    %v426 = vld [vmem:[%s5 + $0x34] sm:$0xf]
    %v427 = vld [vmem:[%s5 + $0x38] sm:$0xf]
    %v428 = vld [vmem:[%s5 + $0x3c] sm:$0xf]
    %v429 = vld [vmem:[%s5 + $0x40] sm:$0xf]
    %v430 = vld [vmem:[%s5 + $0x44] sm:$0xf]
    %v449 = vunpack.c.l.b16 %v413
    %v450 = vunpack.c.l.b16 %v414
    %v451 = vunpack.c.l.b16 %v415
    %v452 = vunpack.c.l.b16 %v416
    %v453 = vunpack.c.l.b16 %v417
    %v454 = vunpack.c.l.b16 %v418
    %v455 = vunpack.c.l.b16 %v419
    %v456 = vunpack.c.l.b16 %v420
    %v457 = vunpack.c.l.b16 %v421
    %v458 = vunpack.c.l.b16 %v422
    %v459 = vunpack.c.l.b16 %v423
    %v460 = vunpack.c.l.b16 %v424
    %v461 = vunpack.c.l.b16 %v425
    %v462 = vunpack.c.l.b16 %v426
    %v463 = vunpack.c.l.b16 %v427
    %v464 = vunpack.c.l.b16 %v428
    %v465 = vunpack.c.l.b16 %v429
    %v466 = vunpack.c.l.b16 %v430
    %v467 = vpack.c.b16 %v450, %v449
    %v468 = vpack.c.b16 %v452, %v451
    %v469 = vpack.c.b16 %v454, %v453
    %v470 = vpack.c.b16 %v456, %v455
    %v471 = vpack.c.b16 %v458, %v457
    %v472 = vpack.c.b16 %v460, %v459
    %v473 = vpack.c.b16 %v462, %v461
    %v474 = vpack.c.b16 %v464, %v463
    %v475 = vpack.c.b16 %v466, %v465
    %vm485 = vcmask 130048
    %v487 = vsel %vm485, %v312, 0
    %v490 = vsel %vm485, %v314, 0
    %492 = vmatprep.subr.bf16.mxu0 0
    %493 = vmatpush1.bf16.msra.mxu0 %v474
    %494 = vmatprep.subr.bf16.mxu0 0
    %495 = vmatpush1.bf16.msra.mxu0 %v473
    %496 = vmatprep.subr.bf16.mxu0 0
    %497 = vmatpush1.bf16.msra.mxu0 %v472
    %498 = vmatprep.subr.bf16.mxu0 0
    %499 = vmatpush1.bf16.msra.mxu0 %v471
    %500 = vmatprep.subr.bf16.mxu0 0
    %501 = vmatpush1.bf16.msra.mxu0 %v470
    %502 = vmatprep.subr.bf16.mxu0 0
    %503 = vmatpush1.bf16.msra.mxu0 %v469
    %504 = vmatprep.subr.bf16.mxu0 0
    %505 = vmatpush1.bf16.msra.mxu0 %v468
    %506 = vmatprep.subr.bf16.mxu0 0
    %507 = vmatpush1.bf16.msra.mxu0 %v467
    %508 = vmatprep.subr.bf16.mxu0 0
    %509 = vmatpush2.bf16.msra.mxu0 0
    %510 = vmatprep.subr.bf16.mxu0 0
    %511 = vmatpush2.bf16.msra.mxu0 0
    %512 = vmatprep.subr.bf16.mxu0 0
    %513 = vmatpush2.bf16.msra.mxu0 0
    %514 = vmatprep.subr.bf16.mxu0 0
    %515 = vmatpush2.bf16.msra.mxu0 0
    %516 = vmatprep.subr.bf16.mxu0 0
    %517 = vmatpush2.bf16.msra.mxu0 0
    %518 = vmatprep.subr.bf16.mxu0 0
    %519 = vmatpush2.bf16.msra.mxu0 0
    %520 = vmatprep.subr.bf16.mxu0 0
    %521 = vmatpush2.bf16.msra.mxu0 0
    %522 = vmatprep.subr.bf16.mxu0 0
    %523 = vmatpush2.bf16.msra.mxu0 %v475
    %524 = vmatprep.mubr.bf16.mxu0 %v487
    %525 = vmatmul.mubr.bf16.gmra.mxu0 %v311
    %v526 = vpop.f32.mrf.mxu0
    %v527 = vadd.f32 0.0, %v526
    %v528 = vpop.f32.mrf.mxu0
    %v529 = vpop.f32.mrf.mxu0
    %v530 = vadd.f32 0.0, %v529
    %v531 = vpop.f32.mrf.mxu0
    %532 = vmatprep.mubr.bf16.mxu0 %v490
    %533 = vmatmul.mubr.bf16.gmra.mxu0 %v313
    %v534 = vpop.f32.mrf.mxu0
    %v535 = vadd.f32 0.0, %v534
    %v536 = vpop.f32.mrf.mxu0
    %v537 = vpop.f32.mrf.mxu0
    %v538 = vadd.f32 0.0, %v537
    %v539 = vpop.f32.mrf.mxu0
    %540 = vdwg.mxu0
    %v541 = vld [vmem:[%s9] sm:$0x1]
    %v542 = vld [vmem:[%s8] sm:$0xff]
    %v543 = vld [vmem:[%s8 + $0x8] sm:$0xff]
    %v544 = vld [vmem:[%s8 + $0x10] sm:$0xff]
    %v545 = vld [vmem:[%s8 + $0x18] sm:$0xff]
    %v546 = vmul.f32 %v542, %v527
    %v547 = vmul.f32 %v543, %v530
    %v548 = vmul.f32 %v544, %v535
    %v549 = vmul.f32 %v545, %v538
    %v550 = vpack.c.bf16 %v547, %v546
    %v551 = vpack.c.bf16 %v549, %v548
    %v553 = vsel %vm345, %v541, 0
    %555 = vmatprep.subr.bf16.mxu0 0
    %556 = vmatpush1.bf16.msra.mxu0 0
    %557 = vmatprep.subr.bf16.mxu0 0
    %558 = vmatpush1.bf16.msra.mxu0 0
    %559 = vmatprep.subr.bf16.mxu0 0
    %560 = vmatpush1.bf16.msra.mxu0 0
    %561 = vmatprep.subr.bf16.mxu0 0
    %562 = vmatpush1.bf16.msra.mxu0 0
    %563 = vmatprep.subr.bf16.mxu0 0
    %564 = vmatpush1.bf16.msra.mxu0 0
    %565 = vmatprep.subr.bf16.mxu0 0
    %566 = vmatpush1.bf16.msra.mxu0 0
    %567 = vmatprep.subr.bf16.mxu0 0
    %568 = vmatpush1.bf16.msra.mxu0 %v551
    %569 = vmatprep.subr.bf16.mxu0 0
    %570 = vmatpush1.bf16.msra.mxu0 %v550
    %571 = vmatprep.subr.bf16.mxu0 0
    %572 = vmatpush2.bf16.msra.mxu0 0
    %573 = vmatprep.subr.bf16.mxu0 0
    %574 = vmatpush2.bf16.msra.mxu0 0
    %575 = vmatprep.subr.bf16.mxu0 0
    %576 = vmatpush2.bf16.msra.mxu0 0
    %577 = vmatprep.subr.bf16.mxu0 0
    %578 = vmatpush2.bf16.msra.mxu0 0
    %579 = vmatprep.subr.bf16.mxu0 0
    %580 = vmatpush2.bf16.msra.mxu0 0
    %581 = vmatprep.subr.bf16.mxu0 0
    %582 = vmatpush2.bf16.msra.mxu0 0
    %583 = vmatprep.subr.bf16.mxu0 0
    %584 = vmatpush2.bf16.msra.mxu0 0
    %585 = vmatprep.subr.bf16.mxu0 0
    %586 = vmatpush2.bf16.msra.mxu0 0
    %587 = vmatprep.mubr.bf16.mxu0 0
    %588 = vmatmul.mubr.bf16.gmra.mxu0 %v553
    %v589 = vpop.f32.mrf.mxu0
    %v590 = vadd.f32 0.0, %v589
    %v591 = vpop.f32.mrf.mxu0
    %v592 = vpop.f32.mrf.mxu0
    %v593 = vpop.f32.mrf.mxu0
    %594 = vdwg.mxu0
    %vm595 = vcmask 197632
    %v596 = vsel %vm595, %v590, inf
    %597 = vmin.xlane.f32.xlu0 %v596
    %v598 = vpop.xlane.xlu0 %597
    %v599 = vsub.f32 %v590, %v598
    %v600 = vsel %vm595, %v599, -inf
    %601 = vmax.xlane.f32.xlu0 %v600
    %v602 = vpop.xlane.xlu0 %601
    %v603 = vrcp.pop %v602
    %v604 = vmul.f32 %v599, %v603
    %v605 = vadd.f32 %v604, 0.0
    %s606 = scalar_lea.vmem %s8, 32
    %v607 = vld [vmem:[%s606] sm:$0xff]
    %v608 = vld [vmem:[%s606 + $0x8] sm:$0xff]
    %v609 = vld [vmem:[%s606 + $0x10] sm:$0xff]
    %v610 = vld [vmem:[%s606 + $0x18] sm:$0xff]
    %v611 = vmul.f32 %v607, %v527
    %v612 = vmul.f32 %v608, %v530
    %v613 = vmul.f32 %v609, %v535
    %v614 = vmul.f32 %v610, %v538
    %v615 = vpack.c.bf16 %v612, %v611
    %v616 = vpack.c.bf16 %v614, %v613
    %617 = vmatprep.subr.bf16.mxu0 0
    %618 = vmatpush1.bf16.msra.mxu0 0
    %619 = vmatprep.subr.bf16.mxu0 0
    %620 = vmatpush1.bf16.msra.mxu0 0
    %621 = vmatprep.subr.bf16.mxu0 0
    %622 = vmatpush1.bf16.msra.mxu0 0
    %623 = vmatprep.subr.bf16.mxu0 0
    %624 = vmatpush1.bf16.msra.mxu0 0
    %625 = vmatprep.subr.bf16.mxu0 0
    %626 = vmatpush1.bf16.msra.mxu0 0
    %627 = vmatprep.subr.bf16.mxu0 0
    %628 = vmatpush1.bf16.msra.mxu0 0
    %629 = vmatprep.subr.bf16.mxu0 0
    %630 = vmatpush1.bf16.msra.mxu0 %v616
    %631 = vmatprep.subr.bf16.mxu0 0
    %632 = vmatpush1.bf16.msra.mxu0 %v615
    %633 = vmatprep.subr.bf16.mxu0 0
    %634 = vmatpush2.bf16.msra.mxu0 0
    %635 = vmatprep.subr.bf16.mxu0 0
    %636 = vmatpush2.bf16.msra.mxu0 0
    %637 = vmatprep.subr.bf16.mxu0 0
    %638 = vmatpush2.bf16.msra.mxu0 0
    %639 = vmatprep.subr.bf16.mxu0 0
    %640 = vmatpush2.bf16.msra.mxu0 0
    %641 = vmatprep.subr.bf16.mxu0 0
    %642 = vmatpush2.bf16.msra.mxu0 0
    %643 = vmatprep.subr.bf16.mxu0 0
    %644 = vmatpush2.bf16.msra.mxu0 0
    %645 = vmatprep.subr.bf16.mxu0 0
    %646 = vmatpush2.bf16.msra.mxu0 0
    %647 = vmatprep.subr.bf16.mxu0 0
    %648 = vmatpush2.bf16.msra.mxu0 0
    %649 = vmatprep.mubr.bf16.mxu0 0
    %650 = vmatmul.mubr.bf16.gmra.mxu0 %v553
    %v651 = vpop.f32.mrf.mxu0
    %v652 = vadd.f32 0.0, %v651
    %v653 = vpop.f32.mrf.mxu0
    %v654 = vpop.f32.mrf.mxu0
    %v655 = vpop.f32.mrf.mxu0
    %656 = vdwg.mxu0
    %v657 = vsel %vm595, %v652, inf
    %658 = vmin.xlane.f32.xlu0 %v657
    %v659 = vpop.xlane.xlu0 %658
    %v660 = vsub.f32 %v652, %v659
    %v661 = vsel %vm595, %v660, -inf
    %662 = vmax.xlane.f32.xlu0 %v661
    %v663 = vpop.xlane.xlu0 %662
    %v664 = vrcp.pop %v663
    %v665 = vmul.f32 %v660, %v664
    %v666 = vadd.f32 %v605, %v665
    %s667 = scalar_lea.vmem %s8, 64
    %v668 = vld [vmem:[%s667] sm:$0xff]
    %v669 = vld [vmem:[%s667 + $0x8] sm:$0xff]
    %v670 = vld [vmem:[%s667 + $0x10] sm:$0xff]
    %v671 = vld [vmem:[%s667 + $0x18] sm:$0xff]
    %v672 = vmul.f32 %v668, %v527
    %v673 = vmul.f32 %v669, %v530
    %v674 = vmul.f32 %v670, %v535
    %v675 = vmul.f32 %v671, %v538
    %v676 = vpack.c.bf16 %v673, %v672
    %v677 = vpack.c.bf16 %v675, %v674
    %678 = vmatprep.subr.bf16.mxu0 0
    %679 = vmatpush1.bf16.msra.mxu0 0
    %680 = vmatprep.subr.bf16.mxu0 0
    %681 = vmatpush1.bf16.msra.mxu0 0
    %682 = vmatprep.subr.bf16.mxu0 0
    %683 = vmatpush1.bf16.msra.mxu0 0
    %684 = vmatprep.subr.bf16.mxu0 0
    %685 = vmatpush1.bf16.msra.mxu0 0
    %686 = vmatprep.subr.bf16.mxu0 0
    %687 = vmatpush1.bf16.msra.mxu0 0
    %688 = vmatprep.subr.bf16.mxu0 0
    %689 = vmatpush1.bf16.msra.mxu0 0
    %690 = vmatprep.subr.bf16.mxu0 0
    %691 = vmatpush1.bf16.msra.mxu0 %v677
    %692 = vmatprep.subr.bf16.mxu0 0
    %693 = vmatpush1.bf16.msra.mxu0 %v676
    %694 = vmatprep.subr.bf16.mxu0 0
    %695 = vmatpush2.bf16.msra.mxu0 0
    %696 = vmatprep.subr.bf16.mxu0 0
    %697 = vmatpush2.bf16.msra.mxu0 0
    %698 = vmatprep.subr.bf16.mxu0 0
    %699 = vmatpush2.bf16.msra.mxu0 0
    %700 = vmatprep.subr.bf16.mxu0 0
    %701 = vmatpush2.bf16.msra.mxu0 0
    %702 = vmatprep.subr.bf16.mxu0 0
    %703 = vmatpush2.bf16.msra.mxu0 0
    %704 = vmatprep.subr.bf16.mxu0 0
    %705 = vmatpush2.bf16.msra.mxu0 0
    %706 = vmatprep.subr.bf16.mxu0 0
    %707 = vmatpush2.bf16.msra.mxu0 0
    %708 = vmatprep.subr.bf16.mxu0 0
    %709 = vmatpush2.bf16.msra.mxu0 0
    %710 = vmatprep.mubr.bf16.mxu0 0
    %711 = vmatmul.mubr.bf16.gmra.mxu0 %v553
    %v712 = vpop.f32.mrf.mxu0
    %v713 = vadd.f32 0.0, %v712
    %v714 = vpop.f32.mrf.mxu0
    %v715 = vpop.f32.mrf.mxu0
    %v716 = vpop.f32.mrf.mxu0
    %717 = vdwg.mxu0
    %v718 = vsel %vm595, %v713, inf
    %719 = vmin.xlane.f32.xlu0 %v718
    %v720 = vpop.xlane.xlu0 %719
    %v721 = vsub.f32 %v713, %v720
    %v722 = vsel %vm595, %v721, -inf
    %723 = vmax.xlane.f32.xlu0 %v722
    %v724 = vpop.xlane.xlu0 %723
    %v725 = vrcp.pop %v724
    %v726 = vmul.f32 %v721, %v725
    %v727 = vadd.f32 %v666, %v726
    %v728 = vmul.f32 %v727, 0.33333334
    %v729 = vld [vmem:[%s10] sm:$0xf]
    %v730 = vld [vmem:[%s10 + $0x4] sm:$0xf]
    %v731 = vld [vmem:[%s10 + $0x8] sm:$0xf]
    %v732 = vld [vmem:[%s10 + $0xc] sm:$0xf]
    %v733 = vpack.c.bf16 %v728, %v728
    %v738 = vunpack.c.l.b16 %v729
    %v739 = vunpack.c.l.b16 %v730
    %v740 = vunpack.c.l.b16 %v731
    %v741 = vunpack.c.l.b16 %v732
    %v742 = vpack.c.b16 %v739, %v738
    %v743 = vpack.c.b16 %v741, %v740
    %vm744 = vcmask 15360
    %v746 = vsel %vm744, %v742, 0
    %v749 = vsel %vm744, %v743, 0
    %vm751 = vcmask 1040384
    %v753 = vsel %vm751, %v733, 0
    %755 = vmatprep.subr.bf16.mxu0 0
    %756 = vmatpush1.bf16.msra.mxu0 0
    %757 = vmatprep.subr.bf16.mxu0 0
    %758 = vmatpush1.bf16.msra.mxu0 0
    %759 = vmatprep.subr.bf16.mxu0 0
    %760 = vmatpush1.bf16.msra.mxu0 0
    %761 = vmatprep.subr.bf16.mxu0 0
    %762 = vmatpush1.bf16.msra.mxu0 0
    %763 = vmatprep.subr.bf16.mxu0 0
    %764 = vmatpush1.bf16.msra.mxu0 0
    %765 = vmatprep.subr.bf16.mxu0 0
    %766 = vmatpush1.bf16.msra.mxu0 0
    %767 = vmatprep.subr.bf16.mxu0 0
    %768 = vmatpush1.bf16.msra.mxu0 0
    %769 = vmatprep.subr.bf16.mxu0 0
    %770 = vmatpush1.bf16.msra.mxu0 %v753
    %771 = vmatprep.subr.bf16.mxu0 0
    %772 = vmatpush2.bf16.msra.mxu0 0
    %773 = vmatprep.subr.bf16.mxu0 0
    %774 = vmatpush2.bf16.msra.mxu0 0
    %775 = vmatprep.subr.bf16.mxu0 0
    %776 = vmatpush2.bf16.msra.mxu0 0
    %777 = vmatprep.subr.bf16.mxu0 0
    %778 = vmatpush2.bf16.msra.mxu0 0
    %779 = vmatprep.subr.bf16.mxu0 0
    %780 = vmatpush2.bf16.msra.mxu0 0
    %781 = vmatprep.subr.bf16.mxu0 0
    %782 = vmatpush2.bf16.msra.mxu0 0
    %783 = vmatprep.subr.bf16.mxu0 0
    %784 = vmatpush2.bf16.msra.mxu0 0
    %785 = vmatprep.subr.bf16.mxu0 0
    %786 = vmatpush2.bf16.msra.mxu0 0
    %787 = vmatprep.mubr.bf16.mxu0 0
    %788 = vmatmul.mubr.bf16.gmra.mxu0 %v746
    %v789 = vpop.f32.mrf.mxu0
    %v790 = vadd.f32 0.0, %v789
    %v791 = vpop.f32.mrf.mxu0
    %v792 = vpop.f32.mrf.mxu0
    %v793 = vadd.f32 0.0, %v792
    %v794 = vpop.f32.mrf.mxu0
    %795 = vmatprep.mubr.bf16.mxu0 0
    %796 = vmatmul.mubr.bf16.gmra.mxu0 %v749
    %v797 = vpop.f32.mrf.mxu0
    %v798 = vadd.f32 0.0, %v797
    %v799 = vpop.f32.mrf.mxu0
    %v800 = vpop.f32.mrf.mxu0
    %v801 = vadd.f32 0.0, %v800
    %v802 = vpop.f32.mrf.mxu0
    %803 = vdwg.mxu0
    %v804 = vpack.c.bf16 %v793, %v790
    %v805 = vpack.c.bf16 %v801, %v798
    %v806 = vld [vmem:[%s6] sm:$0xff]
    %v807 = vld [vmem:[%s6 + $0x8] sm:$0xff]
    %v808 = vld [vmem:[%s6 + $0x10] sm:$0xff]
    %v809 = vld [vmem:[%s6 + $0x18] sm:$0x11]
    %v814 = vunpack.c.l.b16 %v806
    %v815 = vunpack.c.h.b16 %v806
    %v816 = vunpack.c.l.b16 %v807
    %v817 = vunpack.c.h.b16 %v807
    %v818 = vunpack.c.l.b16 %v808
    %v819 = vunpack.c.h.b16 %v808
    %v820 = vunpack.c.l.b16 %v809
    %v821 = vunpack.c.h.b16 %v809
    %v822 = vpack.c.b16 %v816, %v814
    %v823 = vpack.c.b16 %v817, %v815
    %v824 = vpack.c.b16 %v820, %v818
    %v825 = vpack.c.b16 %v821, %v819
    %vm828 = vcmask 203776
    %v830 = vsel %vm828, %v804, 0
    %v833 = vsel %vm828, %v805, 0
    %vm835 = vcmask 1043456
    %vm836 = vcmask 1044480
    %v837 = vsel %vm835, 4294967295, 65535
    %v838 = vsel %vm836, %v837, 0
    %v840 = vand.u32 %v824, %v838
    %v843 = vand.u32 %v825, %v838
    %845 = vmatprep.subr.bf16.mxu0 0
    %846 = vmatpush1.bf16.msra.mxu0 0
    %847 = vmatprep.subr.bf16.mxu0 0
    %848 = vmatpush1.bf16.msra.mxu0 0
    %849 = vmatprep.subr.bf16.mxu0 0
    %850 = vmatpush1.bf16.msra.mxu0 0
    %851 = vmatprep.subr.bf16.mxu0 0
    %852 = vmatpush1.bf16.msra.mxu0 0
    %853 = vmatprep.subr.bf16.mxu0 0
    %854 = vmatpush1.bf16.msra.mxu0 0
    %855 = vmatprep.subr.bf16.mxu0 0
    %856 = vmatpush1.bf16.msra.mxu0 0
    %857 = vmatprep.subr.bf16.mxu0 %v843
    %858 = vmatpush1.bf16.msra.mxu0 %v840
    %859 = vmatprep.subr.bf16.mxu0 %v823
    %860 = vmatpush1.bf16.msra.mxu0 %v822
    %861 = vmatprep.subr.bf16.mxu0 0
    %862 = vmatpush2.bf16.msra.mxu0 0
    %863 = vmatprep.subr.bf16.mxu0 0
    %864 = vmatpush2.bf16.msra.mxu0 0
    %865 = vmatprep.subr.bf16.mxu0 0
    %866 = vmatpush2.bf16.msra.mxu0 0
    %867 = vmatprep.subr.bf16.mxu0 0
    %868 = vmatpush2.bf16.msra.mxu0 0
    %869 = vmatprep.subr.bf16.mxu0 0
    %870 = vmatpush2.bf16.msra.mxu0 0
    %871 = vmatprep.subr.bf16.mxu0 0
    %872 = vmatpush2.bf16.msra.mxu0 0
    %873 = vmatprep.subr.bf16.mxu0 0
    %874 = vmatpush2.bf16.msra.mxu0 0
    %875 = vmatprep.subr.bf16.mxu0 0
    %876 = vmatpush2.bf16.msra.mxu0 0
    %877 = vmatprep.mubr.bf16.mxu0 0
    %878 = vmatmul.mubr.bf16.gmra.mxu0 %v830
    %v879 = vpop.f32.mrf.mxu0
    %v880 = vadd.f32 0.0, %v879
    %v881 = vpop.f32.mrf.mxu0
    %v882 = vadd.f32 0.0, %v881
    %v883 = vpop.f32.mrf.mxu0
    %v884 = vadd.f32 0.0, %v883
    %v885 = vpop.f32.mrf.mxu0
    %v886 = vadd.f32 0.0, %v885
    %887 = vmatprep.mubr.bf16.mxu0 0
    %888 = vmatmul.mubr.bf16.gmra.mxu0 %v833
    %v889 = vpop.f32.mrf.mxu0
    %v890 = vadd.f32 0.0, %v889
    %v891 = vpop.f32.mrf.mxu0
    %v892 = vadd.f32 0.0, %v891
    %v893 = vpop.f32.mrf.mxu0
    %v894 = vadd.f32 0.0, %v893
    %v895 = vpop.f32.mrf.mxu0
    %v896 = vadd.f32 0.0, %v895
    %897 = vdwg.mxu0
    %v898 = vmul.f32 %v880, %v405
    %v899 = vmul.f32 %v882, %v406
    %v900 = vmul.f32 %v884, %v407
    %v901 = vmul.f32 %v886, %v408
    %v902 = vmul.f32 %v890, %v409
    %v903 = vmul.f32 %v892, %v410
    %v904 = vmul.f32 %v894, %v411
    %v905 = vmul.f32 %v896, %v412
    %v906 = vadd.f32 %v303, %v898
    %v907 = vadd.f32 %v304, %v899
    %v908 = vadd.f32 %v305, %v900
    %v909 = vadd.f32 %v306, %v901
    %v910 = vadd.f32 %v307, %v902
    %v911 = vadd.f32 %v308, %v903
    %v912 = vadd.f32 %v309, %v904
    %v913 = vadd.f32 %v310, %v905
    %v914 = vpack.c.bf16 %v908, %v906
    %v915 = vpack.c.bf16 %v909, %v907
    %v916 = vpack.c.bf16 %v912, %v910
    %v917 = vpack.c.bf16 %v913, %v911
    %922 = vrot.lane.b32.xlu0 %v914, 16
    %v923 = vpop.permute.xlu0 %922
    %924 = vrot.lane.b32.xlu0 %v915, 16
    %v925 = vpop.permute.xlu0 %924
    %926 = vrot.lane.b32.xlu0 %v916, 16
    %v927 = vpop.permute.xlu0 %926
    %928 = vrot.lane.b32.xlu0 %v917, 16
    %v929 = vpop.permute.xlu0 %928
    %vm930 = vcmask 130048
    %v931 = vsel %vm930, %v923, %v925
    %v932 = vsel %vm930, %v927, %v929
    %v935 = vsel %vm485, 0, %v923
    %v937 = vsel %vm485, 0, %v927
    %v939 = vsel %vm345, %v931, 0
    %v941 = vsel %vm345, %v932, 0
    %v942 = vld [vmem:[%s4] sm:$0xf]
    %v943 = vld [vmem:[%s4 + $0x4] sm:$0xf]
    %v944 = vld [vmem:[%s4 + $0x8] sm:$0xf]
    %v945 = vld [vmem:[%s4 + $0xc] sm:$0xf]
    %s946 = scalar_lea.vmem %s4, 16
    %v947 = vld [vmem:[%s946] sm:$0xf]
    %v948 = vld [vmem:[%s946 + $0x4] sm:$0xf]
    %v949 = vld [vmem:[%s946 + $0x8] sm:$0xf]
    %v950 = vld [vmem:[%s946 + $0xc] sm:$0xf]
    %v955 = vunpack.c.l.b16 %v947
    %v956 = vunpack.c.l.b16 %v948
    %v957 = vunpack.c.l.b16 %v949
    %v958 = vunpack.c.l.b16 %v950
    %v959 = vpack.c.b16 %v956, %v955
    %v960 = vpack.c.b16 %v958, %v957
    %965 = vrot.lane.b32.xlu0 %v935, 124
    %v966 = vpop.permute.xlu0 %965
    %967 = vrot.lane.b32.xlu0 %v939, 124
    %v968 = vpop.permute.xlu0 %967
    %969 = vrot.lane.b32.xlu0 %v937, 124
    %v970 = vpop.permute.xlu0 %969
    %971 = vrot.lane.b32.xlu0 %v941, 124
    %v972 = vpop.permute.xlu0 %971
    %vm973 = vcmask 1014784
    %v974 = vsel %vm973, %v966, %v968
    %v975 = vsel %vm973, %v970, %v972
    %v981 = vsel %vm345, %v959, 0
    %v984 = vsel %vm345, %v960, 0
    %986 = vmatprep.subr.bf16.mxu0 0
    %987 = vmatpush1.bf16.msra.mxu0 0
    %988 = vmatprep.subr.bf16.mxu0 0
    %989 = vmatpush1.bf16.msra.mxu0 0
    %990 = vmatprep.subr.bf16.mxu0 0
    %991 = vmatpush1.bf16.msra.mxu0 0
    %992 = vmatprep.subr.bf16.mxu0 0
    %993 = vmatpush1.bf16.msra.mxu0 0
    %994 = vmatprep.subr.bf16.mxu0 0
    %995 = vmatpush1.bf16.msra.mxu0 0
    %996 = vmatprep.subr.bf16.mxu0 0
    %997 = vmatpush1.bf16.msra.mxu0 0
    %998 = vmatprep.subr.bf16.mxu0 %v972
    %999 = vmatpush1.bf16.msra.mxu0 %v975
    %1000 = vmatprep.subr.bf16.mxu0 %v968
    %1001 = vmatpush1.bf16.msra.mxu0 %v974
    %1002 = vmatprep.subr.bf16.mxu0 0
    %1003 = vmatpush2.bf16.msra.mxu0 0
    %1004 = vmatprep.subr.bf16.mxu0 0
    %1005 = vmatpush2.bf16.msra.mxu0 0
    %1006 = vmatprep.subr.bf16.mxu0 0
    %1007 = vmatpush2.bf16.msra.mxu0 0
    %1008 = vmatprep.subr.bf16.mxu0 0
    %1009 = vmatpush2.bf16.msra.mxu0 0
    %1010 = vmatprep.subr.bf16.mxu0 0
    %1011 = vmatpush2.bf16.msra.mxu0 0
    %1012 = vmatprep.subr.bf16.mxu0 0
    %1013 = vmatpush2.bf16.msra.mxu0 0
    %1014 = vmatprep.subr.bf16.mxu0 0
    %1015 = vmatpush2.bf16.msra.mxu0 0
    %1016 = vmatprep.subr.bf16.mxu0 0
    %1017 = vmatpush2.bf16.msra.mxu0 0
    %1018 = vmatprep.mubr.bf16.mxu0 0
    %1019 = vmatmul.mubr.bf16.gmra.mxu0 %v981
    %v1020 = vpop.f32.mrf.mxu0
    %v1021 = vadd.f32 0.0, %v1020
    %v1022 = vpop.f32.mrf.mxu0
    %v1023 = vadd.f32 0.0, %v1022
    %v1024 = vpop.f32.mrf.mxu0
    %v1025 = vadd.f32 0.0, %v1024
    %v1026 = vpop.f32.mrf.mxu0
    %v1027 = vadd.f32 0.0, %v1026
    %1028 = vmatprep.mubr.bf16.mxu0 0
    %1029 = vmatmul.mubr.bf16.gmra.mxu0 %v984
    %v1030 = vpop.f32.mrf.mxu0
    %v1031 = vadd.f32 0.0, %v1030
    %v1032 = vpop.f32.mrf.mxu0
    %v1033 = vadd.f32 0.0, %v1032
    %v1034 = vpop.f32.mrf.mxu0
    %v1035 = vadd.f32 0.0, %v1034
    %v1036 = vpop.f32.mrf.mxu0
    %v1037 = vadd.f32 0.0, %v1036
    %1038 = vdwg.mxu0
    %v1043 = vunpack.c.l.b16 %v942
    %v1044 = vunpack.c.l.b16 %v943
    %v1045 = vunpack.c.l.b16 %v944
    %v1046 = vunpack.c.l.b16 %v945
    %v1047 = vpack.c.b16 %v1044, %v1043
    %v1048 = vpack.c.b16 %v1046, %v1045
    %1049 = vrot.lane.b32.xlu0 %v935, 125
    %v1050 = vpop.permute.xlu0 %1049
    %1051 = vrot.lane.b32.xlu0 %v939, 125
    %v1052 = vpop.permute.xlu0 %1051
    %1053 = vrot.lane.b32.xlu0 %v937, 125
    %v1054 = vpop.permute.xlu0 %1053
    %1055 = vrot.lane.b32.xlu0 %v941, 125
    %v1056 = vpop.permute.xlu0 %1055
    %vm1057 = vcmask 1022976
    %v1058 = vsel %vm1057, %v1050, %v1052
    %v1059 = vsel %vm1057, %v1054, %v1056
    %v1065 = vsel %vm345, %v1047, 0
    %v1068 = vsel %vm345, %v1048, 0
    %1070 = vmatprep.subr.bf16.mxu0 0
    %1071 = vmatpush1.bf16.msra.mxu0 0
    %1072 = vmatprep.subr.bf16.mxu0 0
    %1073 = vmatpush1.bf16.msra.mxu0 0
    %1074 = vmatprep.subr.bf16.mxu0 0
    %1075 = vmatpush1.bf16.msra.mxu0 0
    %1076 = vmatprep.subr.bf16.mxu0 0
    %1077 = vmatpush1.bf16.msra.mxu0 0
    %1078 = vmatprep.subr.bf16.mxu0 0
    %1079 = vmatpush1.bf16.msra.mxu0 0
    %1080 = vmatprep.subr.bf16.mxu0 0
    %1081 = vmatpush1.bf16.msra.mxu0 0
    %1082 = vmatprep.subr.bf16.mxu0 %v1056
    %1083 = vmatpush1.bf16.msra.mxu0 %v1059
    %1084 = vmatprep.subr.bf16.mxu0 %v1052
    %1085 = vmatpush1.bf16.msra.mxu0 %v1058
    %1086 = vmatprep.subr.bf16.mxu0 0
    %1087 = vmatpush2.bf16.msra.mxu0 0
    %1088 = vmatprep.subr.bf16.mxu0 0
    %1089 = vmatpush2.bf16.msra.mxu0 0
    %1090 = vmatprep.subr.bf16.mxu0 0
    %1091 = vmatpush2.bf16.msra.mxu0 0
    %1092 = vmatprep.subr.bf16.mxu0 0
    %1093 = vmatpush2.bf16.msra.mxu0 0
    %1094 = vmatprep.subr.bf16.mxu0 0
    %1095 = vmatpush2.bf16.msra.mxu0 0
    %1096 = vmatprep.subr.bf16.mxu0 0
    %1097 = vmatpush2.bf16.msra.mxu0 0
    %1098 = vmatprep.subr.bf16.mxu0 0
    %1099 = vmatpush2.bf16.msra.mxu0 0
    %1100 = vmatprep.subr.bf16.mxu0 0
    %1101 = vmatpush2.bf16.msra.mxu0 0
    %1102 = vmatprep.mubr.bf16.mxu0 0
    %1103 = vmatmul.mubr.bf16.gmra.mxu0 %v1065
    %v1104 = vpop.f32.mrf.mxu0
    %v1105 = vadd.f32 %v1021, %v1104
    %v1106 = vpop.f32.mrf.mxu0
    %v1107 = vadd.f32 %v1023, %v1106
    %v1108 = vpop.f32.mrf.mxu0
    %v1109 = vadd.f32 %v1025, %v1108
    %v1110 = vpop.f32.mrf.mxu0
    %v1111 = vadd.f32 %v1027, %v1110
    %1112 = vmatprep.mubr.bf16.mxu0 0
    %1113 = vmatmul.mubr.bf16.gmra.mxu0 %v1068
    %v1114 = vpop.f32.mrf.mxu0
    %v1115 = vadd.f32 %v1031, %v1114
    %v1116 = vpop.f32.mrf.mxu0
    %v1117 = vadd.f32 %v1033, %v1116
    %v1118 = vpop.f32.mrf.mxu0
    %v1119 = vadd.f32 %v1035, %v1118
    %v1120 = vpop.f32.mrf.mxu0
    %v1121 = vadd.f32 %v1037, %v1120
    %1122 = vdwg.mxu0
    %s1123 = scalar_lea.vmem %s4, 32
    %v1124 = vld [vmem:[%s1123] sm:$0xf]
    %v1125 = vld [vmem:[%s1123 + $0x4] sm:$0xf]
    %v1126 = vld [vmem:[%s1123 + $0x8] sm:$0xf]
    %v1127 = vld [vmem:[%s1123 + $0xc] sm:$0xf]
    %v1132 = vunpack.c.l.b16 %v1124
    %v1133 = vunpack.c.l.b16 %v1125
    %v1134 = vunpack.c.l.b16 %v1126
    %v1135 = vunpack.c.l.b16 %v1127
    %v1136 = vpack.c.b16 %v1133, %v1132
    %v1137 = vpack.c.b16 %v1135, %v1134
    %1138 = vrot.lane.b32.xlu0 %v935, 123
    %v1139 = vpop.permute.xlu0 %1138
    %1140 = vrot.lane.b32.xlu0 %v939, 123
    %v1141 = vpop.permute.xlu0 %1140
    %1142 = vrot.lane.b32.xlu0 %v937, 123
    %v1143 = vpop.permute.xlu0 %1142
    %1144 = vrot.lane.b32.xlu0 %v941, 123
    %v1145 = vpop.permute.xlu0 %1144
    %vm1146 = vcmask 1006592
    %v1147 = vsel %vm1146, %v1139, %v1141
    %v1148 = vsel %vm1146, %v1143, %v1145
    %v1154 = vsel %vm345, %v1136, 0
    %v1157 = vsel %vm345, %v1137, 0
    %1159 = vmatprep.subr.bf16.mxu0 0
    %1160 = vmatpush1.bf16.msra.mxu0 0
    %1161 = vmatprep.subr.bf16.mxu0 0
    %1162 = vmatpush1.bf16.msra.mxu0 0
    %1163 = vmatprep.subr.bf16.mxu0 0
    %1164 = vmatpush1.bf16.msra.mxu0 0
    %1165 = vmatprep.subr.bf16.mxu0 0
    %1166 = vmatpush1.bf16.msra.mxu0 0
    %1167 = vmatprep.subr.bf16.mxu0 0
    %1168 = vmatpush1.bf16.msra.mxu0 0
    %1169 = vmatprep.subr.bf16.mxu0 0
    %1170 = vmatpush1.bf16.msra.mxu0 0
    %1171 = vmatprep.subr.bf16.mxu0 %v1145
    %1172 = vmatpush1.bf16.msra.mxu0 %v1148
    %1173 = vmatprep.subr.bf16.mxu0 %v1141
    %1174 = vmatpush1.bf16.msra.mxu0 %v1147
    %1175 = vmatprep.subr.bf16.mxu0 0
    %1176 = vmatpush2.bf16.msra.mxu0 0
    %1177 = vmatprep.subr.bf16.mxu0 0
    %1178 = vmatpush2.bf16.msra.mxu0 0
    %1179 = vmatprep.subr.bf16.mxu0 0
    %1180 = vmatpush2.bf16.msra.mxu0 0
    %1181 = vmatprep.subr.bf16.mxu0 0
    %1182 = vmatpush2.bf16.msra.mxu0 0
    %1183 = vmatprep.subr.bf16.mxu0 0
    %1184 = vmatpush2.bf16.msra.mxu0 0
    %1185 = vmatprep.subr.bf16.mxu0 0
    %1186 = vmatpush2.bf16.msra.mxu0 0
    %1187 = vmatprep.subr.bf16.mxu0 0
    %1188 = vmatpush2.bf16.msra.mxu0 0
    %1189 = vmatprep.subr.bf16.mxu0 0
    %1190 = vmatpush2.bf16.msra.mxu0 0
    %1191 = vmatprep.mubr.bf16.mxu0 0
    %1192 = vmatmul.mubr.bf16.gmra.mxu0 %v1154
    %v1193 = vpop.f32.mrf.mxu0
    %v1194 = vadd.f32 0.0, %v1193
    %v1195 = vpop.f32.mrf.mxu0
    %v1196 = vadd.f32 0.0, %v1195
    %v1197 = vpop.f32.mrf.mxu0
    %v1198 = vadd.f32 0.0, %v1197
    %v1199 = vpop.f32.mrf.mxu0
    %v1200 = vadd.f32 0.0, %v1199
    %1201 = vmatprep.mubr.bf16.mxu0 0
    %1202 = vmatmul.mubr.bf16.gmra.mxu0 %v1157
    %v1203 = vpop.f32.mrf.mxu0
    %v1204 = vadd.f32 0.0, %v1203
    %v1205 = vpop.f32.mrf.mxu0
    %v1206 = vadd.f32 0.0, %v1205
    %v1207 = vpop.f32.mrf.mxu0
    %v1208 = vadd.f32 0.0, %v1207
    %v1209 = vpop.f32.mrf.mxu0
    %v1210 = vadd.f32 0.0, %v1209
    %1211 = vdwg.mxu0
    %v1212 = vadd.f32 %v1105, %v1194
    %v1213 = vadd.f32 %v1107, %v1196
    %v1214 = vadd.f32 %v1109, %v1198
    %v1215 = vadd.f32 %v1111, %v1200
    %v1216 = vadd.f32 %v1115, %v1204
    %v1217 = vadd.f32 %v1117, %v1206
    %v1218 = vadd.f32 %v1119, %v1208
    %v1219 = vadd.f32 %v1121, %v1210
    %s1220 = scalar_lea.vmem %s4, 48
    %v1221 = vld [vmem:[%s1220] sm:$0xf]
    %v1222 = vld [vmem:[%s1220 + $0x4] sm:$0xf]
    %v1223 = vld [vmem:[%s1220 + $0x8] sm:$0xf]
    %v1224 = vld [vmem:[%s1220 + $0xc] sm:$0xf]
    %v1229 = vunpack.c.l.b16 %v1221
    %v1230 = vunpack.c.l.b16 %v1222
    %v1231 = vunpack.c.l.b16 %v1223
    %v1232 = vunpack.c.l.b16 %v1224
    %v1233 = vpack.c.b16 %v1230, %v1229
    %v1234 = vpack.c.b16 %v1232, %v1231
    %1235 = vrot.lane.b32.xlu0 %v935, 113
    %v1236 = vpop.permute.xlu0 %1235
    %1237 = vrot.lane.b32.xlu0 %v939, 113
    %v1238 = vpop.permute.xlu0 %1237
    %1239 = vrot.lane.b32.xlu0 %v937, 113
    %v1240 = vpop.permute.xlu0 %1239
    %1241 = vrot.lane.b32.xlu0 %v941, 113
    %v1242 = vpop.permute.xlu0 %1241
    %vm1243 = vcmask 924672
    %v1244 = vsel %vm1243, %v1236, %v1238
    %v1245 = vsel %vm1243, %v1240, %v1242
    %v1251 = vsel %vm345, %v1233, 0
    %v1254 = vsel %vm345, %v1234, 0
    %1256 = vmatprep.subr.bf16.mxu0 0
    %1257 = vmatpush1.bf16.msra.mxu0 0
    %1258 = vmatprep.subr.bf16.mxu0 0
    %1259 = vmatpush1.bf16.msra.mxu0 0
    %1260 = vmatprep.subr.bf16.mxu0 0
    %1261 = vmatpush1.bf16.msra.mxu0 0
    %1262 = vmatprep.subr.bf16.mxu0 0
    %1263 = vmatpush1.bf16.msra.mxu0 0
    %1264 = vmatprep.subr.bf16.mxu0 0
    %1265 = vmatpush1.bf16.msra.mxu0 0
    %1266 = vmatprep.subr.bf16.mxu0 0
    %1267 = vmatpush1.bf16.msra.mxu0 0
    %1268 = vmatprep.subr.bf16.mxu0 %v1242
    %1269 = vmatpush1.bf16.msra.mxu0 %v1245
    %1270 = vmatprep.subr.bf16.mxu0 %v1238
    %1271 = vmatpush1.bf16.msra.mxu0 %v1244
    %1272 = vmatprep.subr.bf16.mxu0 0
    %1273 = vmatpush2.bf16.msra.mxu0 0
    %1274 = vmatprep.subr.bf16.mxu0 0
    %1275 = vmatpush2.bf16.msra.mxu0 0
    %1276 = vmatprep.subr.bf16.mxu0 0
    %1277 = vmatpush2.bf16.msra.mxu0 0
    %1278 = vmatprep.subr.bf16.mxu0 0
    %1279 = vmatpush2.bf16.msra.mxu0 0
    %1280 = vmatprep.subr.bf16.mxu0 0
    %1281 = vmatpush2.bf16.msra.mxu0 0
    %1282 = vmatprep.subr.bf16.mxu0 0
    %1283 = vmatpush2.bf16.msra.mxu0 0
    %1284 = vmatprep.subr.bf16.mxu0 0
    %1285 = vmatpush2.bf16.msra.mxu0 0
    %1286 = vmatprep.subr.bf16.mxu0 0
    %1287 = vmatpush2.bf16.msra.mxu0 0
    %1288 = vmatprep.mubr.bf16.mxu0 0
    %1289 = vmatmul.mubr.bf16.gmra.mxu0 %v1251
    %v1290 = vpop.f32.mrf.mxu0
    %v1291 = vadd.f32 0.0, %v1290
    %v1292 = vpop.f32.mrf.mxu0
    %v1293 = vadd.f32 0.0, %v1292
    %v1294 = vpop.f32.mrf.mxu0
    %v1295 = vadd.f32 0.0, %v1294
    %v1296 = vpop.f32.mrf.mxu0
    %v1297 = vadd.f32 0.0, %v1296
    %1298 = vmatprep.mubr.bf16.mxu0 0
    %1299 = vmatmul.mubr.bf16.gmra.mxu0 %v1254
    %v1300 = vpop.f32.mrf.mxu0
    %v1301 = vadd.f32 0.0, %v1300
    %v1302 = vpop.f32.mrf.mxu0
    %v1303 = vadd.f32 0.0, %v1302
    %v1304 = vpop.f32.mrf.mxu0
    %v1305 = vadd.f32 0.0, %v1304
    %v1306 = vpop.f32.mrf.mxu0
    %v1307 = vadd.f32 0.0, %v1306
    %1308 = vdwg.mxu0
    %v1309 = vadd.f32 %v1212, %v1291
    %v1310 = vadd.f32 %v1213, %v1293
    %v1311 = vadd.f32 %v1214, %v1295
    %v1312 = vadd.f32 %v1215, %v1297
    %v1313 = vadd.f32 %v1216, %v1301
    %v1314 = vadd.f32 %v1217, %v1303
    %v1315 = vadd.f32 %v1218, %v1305
    %v1316 = vadd.f32 %v1219, %v1307
    %s1317 = scalar_lea.vmem %s4, 64
    %v1318 = vld [vmem:[%s1317] sm:$0xf]
    %v1319 = vld [vmem:[%s1317 + $0x4] sm:$0xf]
    %v1320 = vld [vmem:[%s1317 + $0x8] sm:$0xf]
    %v1321 = vld [vmem:[%s1317 + $0xc] sm:$0xf]
    %v1326 = vunpack.c.l.b16 %v1318
    %v1327 = vunpack.c.l.b16 %v1319
    %v1328 = vunpack.c.l.b16 %v1320
    %v1329 = vunpack.c.l.b16 %v1321
    %v1330 = vpack.c.b16 %v1327, %v1326
    %v1331 = vpack.c.b16 %v1329, %v1328
    %1332 = vrot.lane.b32.xlu0 %v935, 112
    %v1333 = vpop.permute.xlu0 %1332
    %1334 = vrot.lane.b32.xlu0 %v939, 112
    %v1335 = vpop.permute.xlu0 %1334
    %1336 = vrot.lane.b32.xlu0 %v937, 112
    %v1337 = vpop.permute.xlu0 %1336
    %1338 = vrot.lane.b32.xlu0 %v941, 112
    %v1339 = vpop.permute.xlu0 %1338
    %vm1340 = vcmask 916480
    %v1341 = vsel %vm1340, %v1333, %v1335
    %v1342 = vsel %vm1340, %v1337, %v1339
    %v1348 = vsel %vm345, %v1330, 0
    %v1351 = vsel %vm345, %v1331, 0
    %1353 = vmatprep.subr.bf16.mxu0 0
    %1354 = vmatpush1.bf16.msra.mxu0 0
    %1355 = vmatprep.subr.bf16.mxu0 0
    %1356 = vmatpush1.bf16.msra.mxu0 0
    %1357 = vmatprep.subr.bf16.mxu0 0
    %1358 = vmatpush1.bf16.msra.mxu0 0
    %1359 = vmatprep.subr.bf16.mxu0 0
    %1360 = vmatpush1.bf16.msra.mxu0 0
    %1361 = vmatprep.subr.bf16.mxu0 0
    %1362 = vmatpush1.bf16.msra.mxu0 0
    %1363 = vmatprep.subr.bf16.mxu0 0
    %1364 = vmatpush1.bf16.msra.mxu0 0
    %1365 = vmatprep.subr.bf16.mxu0 %v1339
    %1366 = vmatpush1.bf16.msra.mxu0 %v1342
    %1367 = vmatprep.subr.bf16.mxu0 %v1335
    %1368 = vmatpush1.bf16.msra.mxu0 %v1341
    %1369 = vmatprep.subr.bf16.mxu0 0
    %1370 = vmatpush2.bf16.msra.mxu0 0
    %1371 = vmatprep.subr.bf16.mxu0 0
    %1372 = vmatpush2.bf16.msra.mxu0 0
    %1373 = vmatprep.subr.bf16.mxu0 0
    %1374 = vmatpush2.bf16.msra.mxu0 0
    %1375 = vmatprep.subr.bf16.mxu0 0
    %1376 = vmatpush2.bf16.msra.mxu0 0
    %1377 = vmatprep.subr.bf16.mxu0 0
    %1378 = vmatpush2.bf16.msra.mxu0 0
    %1379 = vmatprep.subr.bf16.mxu0 0
    %1380 = vmatpush2.bf16.msra.mxu0 0
    %1381 = vmatprep.subr.bf16.mxu0 0
    %1382 = vmatpush2.bf16.msra.mxu0 0
    %1383 = vmatprep.subr.bf16.mxu0 0
    %1384 = vmatpush2.bf16.msra.mxu0 0
    %1385 = vmatprep.mubr.bf16.mxu0 0
    %1386 = vmatmul.mubr.bf16.gmra.mxu0 %v1348
    %v1387 = vpop.f32.mrf.mxu0
    %v1388 = vadd.f32 0.0, %v1387
    %v1389 = vpop.f32.mrf.mxu0
    %v1390 = vadd.f32 0.0, %v1389
    %v1391 = vpop.f32.mrf.mxu0
    %v1392 = vadd.f32 0.0, %v1391
    %v1393 = vpop.f32.mrf.mxu0
    %v1394 = vadd.f32 0.0, %v1393
    %1395 = vmatprep.mubr.bf16.mxu0 0
    %1396 = vmatmul.mubr.bf16.gmra.mxu0 %v1351
    %v1397 = vpop.f32.mrf.mxu0
    %v1398 = vadd.f32 0.0, %v1397
    %v1399 = vpop.f32.mrf.mxu0
    %v1400 = vadd.f32 0.0, %v1399
    %v1401 = vpop.f32.mrf.mxu0
    %v1402 = vadd.f32 0.0, %v1401
    %v1403 = vpop.f32.mrf.mxu0
    %v1404 = vadd.f32 0.0, %v1403
    %1405 = vdwg.mxu0
    %v1406 = vadd.f32 %v1309, %v1388
    %v1407 = vadd.f32 %v1310, %v1390
    %v1408 = vadd.f32 %v1311, %v1392
    %v1409 = vadd.f32 %v1312, %v1394
    %v1410 = vadd.f32 %v1313, %v1398
    %v1411 = vadd.f32 %v1314, %v1400
    %v1412 = vadd.f32 %v1315, %v1402
    %v1413 = vadd.f32 %v1316, %v1404
    %s1414 = scalar_lea.vmem %s4, 80
    %v1415 = vld [vmem:[%s1414] sm:$0xf]
    %v1416 = vld [vmem:[%s1414 + $0x4] sm:$0xf]
    %v1417 = vld [vmem:[%s1414 + $0x8] sm:$0xf]
    %v1418 = vld [vmem:[%s1414 + $0xc] sm:$0xf]
    %v1423 = vunpack.c.l.b16 %v1415
    %v1424 = vunpack.c.l.b16 %v1416
    %v1425 = vunpack.c.l.b16 %v1417
    %v1426 = vunpack.c.l.b16 %v1418
    %v1427 = vpack.c.b16 %v1424, %v1423
    %v1428 = vpack.c.b16 %v1426, %v1425
    %1429 = vrot.lane.b32.xlu0 %v935, 111
    %v1430 = vpop.permute.xlu0 %1429
    %1431 = vrot.lane.b32.xlu0 %v939, 111
    %v1432 = vpop.permute.xlu0 %1431
    %1433 = vrot.lane.b32.xlu0 %v937, 111
    %v1434 = vpop.permute.xlu0 %1433
    %1435 = vrot.lane.b32.xlu0 %v941, 111
    %v1436 = vpop.permute.xlu0 %1435
    %vm1437 = vcmask 908288
    %v1438 = vsel %vm1437, %v1430, %v1432
    %v1439 = vsel %vm1437, %v1434, %v1436
    %v1445 = vsel %vm345, %v1427, 0
    %v1448 = vsel %vm345, %v1428, 0
    %1450 = vmatprep.subr.bf16.mxu0 0
    %1451 = vmatpush1.bf16.msra.mxu0 0
    %1452 = vmatprep.subr.bf16.mxu0 0
    %1453 = vmatpush1.bf16.msra.mxu0 0
    %1454 = vmatprep.subr.bf16.mxu0 0
    %1455 = vmatpush1.bf16.msra.mxu0 0
    %1456 = vmatprep.subr.bf16.mxu0 0
    %1457 = vmatpush1.bf16.msra.mxu0 0
    %1458 = vmatprep.subr.bf16.mxu0 0
    %1459 = vmatpush1.bf16.msra.mxu0 0
    %1460 = vmatprep.subr.bf16.mxu0 0
    %1461 = vmatpush1.bf16.msra.mxu0 0
    %1462 = vmatprep.subr.bf16.mxu0 %v1436
    %1463 = vmatpush1.bf16.msra.mxu0 %v1439
    %1464 = vmatprep.subr.bf16.mxu0 %v1432
    %1465 = vmatpush1.bf16.msra.mxu0 %v1438
    %1466 = vmatprep.subr.bf16.mxu0 0
    %1467 = vmatpush2.bf16.msra.mxu0 0
    %1468 = vmatprep.subr.bf16.mxu0 0
    %1469 = vmatpush2.bf16.msra.mxu0 0
    %1470 = vmatprep.subr.bf16.mxu0 0
    %1471 = vmatpush2.bf16.msra.mxu0 0
    %1472 = vmatprep.subr.bf16.mxu0 0
    %1473 = vmatpush2.bf16.msra.mxu0 0
    %1474 = vmatprep.subr.bf16.mxu0 0
    %1475 = vmatpush2.bf16.msra.mxu0 0
    %1476 = vmatprep.subr.bf16.mxu0 0
    %1477 = vmatpush2.bf16.msra.mxu0 0
    %1478 = vmatprep.subr.bf16.mxu0 0
    %1479 = vmatpush2.bf16.msra.mxu0 0
    %1480 = vmatprep.subr.bf16.mxu0 0
    %1481 = vmatpush2.bf16.msra.mxu0 0
    %1482 = vmatprep.mubr.bf16.mxu0 0
    %1483 = vmatmul.mubr.bf16.gmra.mxu0 %v1445
    %v1484 = vpop.f32.mrf.mxu0
    %v1485 = vadd.f32 0.0, %v1484
    %v1486 = vpop.f32.mrf.mxu0
    %v1487 = vadd.f32 0.0, %v1486
    %v1488 = vpop.f32.mrf.mxu0
    %v1489 = vadd.f32 0.0, %v1488
    %v1490 = vpop.f32.mrf.mxu0
    %v1491 = vadd.f32 0.0, %v1490
    %1492 = vmatprep.mubr.bf16.mxu0 0
    %1493 = vmatmul.mubr.bf16.gmra.mxu0 %v1448
    %v1494 = vpop.f32.mrf.mxu0
    %v1495 = vadd.f32 0.0, %v1494
    %v1496 = vpop.f32.mrf.mxu0
    %v1497 = vadd.f32 0.0, %v1496
    %v1498 = vpop.f32.mrf.mxu0
    %v1499 = vadd.f32 0.0, %v1498
    %v1500 = vpop.f32.mrf.mxu0
    %v1501 = vadd.f32 0.0, %v1500
    %1502 = vdwg.mxu0
    %v1503 = vadd.f32 %v1406, %v1485
    %v1504 = vadd.f32 %v1407, %v1487
    %v1505 = vadd.f32 %v1408, %v1489
    %v1506 = vadd.f32 %v1409, %v1491
    %v1507 = vadd.f32 %v1410, %v1495
    %v1508 = vadd.f32 %v1411, %v1497
    %v1509 = vadd.f32 %v1412, %v1499
    %v1510 = vadd.f32 %v1413, %v1501
    %s1511 = scalar_lea.vmem %s4, 96
    %v1512 = vld [vmem:[%s1511] sm:$0xf]
    %v1513 = vld [vmem:[%s1511 + $0x4] sm:$0xf]
    %v1514 = vld [vmem:[%s1511 + $0x8] sm:$0xf]
    %v1515 = vld [vmem:[%s1511 + $0xc] sm:$0xf]
    %v1520 = vunpack.c.l.b16 %v1512
    %v1521 = vunpack.c.l.b16 %v1513
    %v1522 = vunpack.c.l.b16 %v1514
    %v1523 = vunpack.c.l.b16 %v1515
    %v1524 = vpack.c.b16 %v1521, %v1520
    %v1525 = vpack.c.b16 %v1523, %v1522
    %1526 = vrot.lane.b32.xlu0 %v935, 101
    %v1527 = vpop.permute.xlu0 %1526
    %1528 = vrot.lane.b32.xlu0 %v939, 101
    %v1529 = vpop.permute.xlu0 %1528
    %1530 = vrot.lane.b32.xlu0 %v937, 101
    %v1531 = vpop.permute.xlu0 %1530
    %1532 = vrot.lane.b32.xlu0 %v941, 101
    %v1533 = vpop.permute.xlu0 %1532
    %vm1534 = vcmask 826368
    %v1535 = vsel %vm1534, %v1527, %v1529
    %v1536 = vsel %vm1534, %v1531, %v1533
    %v1542 = vsel %vm345, %v1524, 0
    %v1545 = vsel %vm345, %v1525, 0
    %1547 = vmatprep.subr.bf16.mxu0 0
    %1548 = vmatpush1.bf16.msra.mxu0 0
    %1549 = vmatprep.subr.bf16.mxu0 0
    %1550 = vmatpush1.bf16.msra.mxu0 0
    %1551 = vmatprep.subr.bf16.mxu0 0
    %1552 = vmatpush1.bf16.msra.mxu0 0
    %1553 = vmatprep.subr.bf16.mxu0 0
    %1554 = vmatpush1.bf16.msra.mxu0 0
    %1555 = vmatprep.subr.bf16.mxu0 0
    %1556 = vmatpush1.bf16.msra.mxu0 0
    %1557 = vmatprep.subr.bf16.mxu0 0
    %1558 = vmatpush1.bf16.msra.mxu0 0
    %1559 = vmatprep.subr.bf16.mxu0 %v1533
    %1560 = vmatpush1.bf16.msra.mxu0 %v1536
    %1561 = vmatprep.subr.bf16.mxu0 %v1529
    %1562 = vmatpush1.bf16.msra.mxu0 %v1535
    %1563 = vmatprep.subr.bf16.mxu0 0
    %1564 = vmatpush2.bf16.msra.mxu0 0
    %1565 = vmatprep.subr.bf16.mxu0 0
    %1566 = vmatpush2.bf16.msra.mxu0 0
    %1567 = vmatprep.subr.bf16.mxu0 0
    %1568 = vmatpush2.bf16.msra.mxu0 0
    %1569 = vmatprep.subr.bf16.mxu0 0
    %1570 = vmatpush2.bf16.msra.mxu0 0
    %1571 = vmatprep.subr.bf16.mxu0 0
    %1572 = vmatpush2.bf16.msra.mxu0 0
    %1573 = vmatprep.subr.bf16.mxu0 0
    %1574 = vmatpush2.bf16.msra.mxu0 0
    %1575 = vmatprep.subr.bf16.mxu0 0
    %1576 = vmatpush2.bf16.msra.mxu0 0
    %1577 = vmatprep.subr.bf16.mxu0 0
    %1578 = vmatpush2.bf16.msra.mxu0 0
    %1579 = vmatprep.mubr.bf16.mxu0 0
    %1580 = vmatmul.mubr.bf16.gmra.mxu0 %v1542
    %v1581 = vpop.f32.mrf.mxu0
    %v1582 = vadd.f32 0.0, %v1581
    %v1583 = vpop.f32.mrf.mxu0
    %v1584 = vadd.f32 0.0, %v1583
    %v1585 = vpop.f32.mrf.mxu0
    %v1586 = vadd.f32 0.0, %v1585
    %v1587 = vpop.f32.mrf.mxu0
    %v1588 = vadd.f32 0.0, %v1587
    %1589 = vmatprep.mubr.bf16.mxu0 0
    %1590 = vmatmul.mubr.bf16.gmra.mxu0 %v1545
    %v1591 = vpop.f32.mrf.mxu0
    %v1592 = vadd.f32 0.0, %v1591
    %v1593 = vpop.f32.mrf.mxu0
    %v1594 = vadd.f32 0.0, %v1593
    %v1595 = vpop.f32.mrf.mxu0
    %v1596 = vadd.f32 0.0, %v1595
    %v1597 = vpop.f32.mrf.mxu0
    %v1598 = vadd.f32 0.0, %v1597
    %1599 = vdwg.mxu0
    %v1600 = vadd.f32 %v1503, %v1582
    %v1601 = vadd.f32 %v1504, %v1584
    %v1602 = vadd.f32 %v1505, %v1586
    %v1603 = vadd.f32 %v1506, %v1588
    %v1604 = vadd.f32 %v1507, %v1592
    %v1605 = vadd.f32 %v1508, %v1594
    %v1606 = vadd.f32 %v1509, %v1596
    %v1607 = vadd.f32 %v1510, %v1598
    %s1608 = scalar_lea.vmem %s4, 112
    %v1609 = vld [vmem:[%s1608] sm:$0xf]
    %v1610 = vld [vmem:[%s1608 + $0x4] sm:$0xf]
    %v1611 = vld [vmem:[%s1608 + $0x8] sm:$0xf]
    %v1612 = vld [vmem:[%s1608 + $0xc] sm:$0xf]
    %v1617 = vunpack.c.l.b16 %v1609
    %v1618 = vunpack.c.l.b16 %v1610
    %v1619 = vunpack.c.l.b16 %v1611
    %v1620 = vunpack.c.l.b16 %v1612
    %v1621 = vpack.c.b16 %v1618, %v1617
    %v1622 = vpack.c.b16 %v1620, %v1619
    %1623 = vrot.lane.b32.xlu0 %v935, 100
    %v1624 = vpop.permute.xlu0 %1623
    %1625 = vrot.lane.b32.xlu0 %v939, 100
    %v1626 = vpop.permute.xlu0 %1625
    %1627 = vrot.lane.b32.xlu0 %v937, 100
    %v1628 = vpop.permute.xlu0 %1627
    %1629 = vrot.lane.b32.xlu0 %v941, 100
    %v1630 = vpop.permute.xlu0 %1629
    %vm1631 = vcmask 818176
    %v1632 = vsel %vm1631, %v1624, %v1626
    %v1633 = vsel %vm1631, %v1628, %v1630
    %v1639 = vsel %vm345, %v1621, 0
    %v1642 = vsel %vm345, %v1622, 0
    %1644 = vmatprep.subr.bf16.mxu0 0
    %1645 = vmatpush1.bf16.msra.mxu0 0
    %1646 = vmatprep.subr.bf16.mxu0 0
    %1647 = vmatpush1.bf16.msra.mxu0 0
    %1648 = vmatprep.subr.bf16.mxu0 0
    %1649 = vmatpush1.bf16.msra.mxu0 0
    %1650 = vmatprep.subr.bf16.mxu0 0
    %1651 = vmatpush1.bf16.msra.mxu0 0
    %1652 = vmatprep.subr.bf16.mxu0 0
    %1653 = vmatpush1.bf16.msra.mxu0 0
    %1654 = vmatprep.subr.bf16.mxu0 0
    %1655 = vmatpush1.bf16.msra.mxu0 0
    %1656 = vmatprep.subr.bf16.mxu0 %v1630
    %1657 = vmatpush1.bf16.msra.mxu0 %v1633
    %1658 = vmatprep.subr.bf16.mxu0 %v1626
    %1659 = vmatpush1.bf16.msra.mxu0 %v1632
    %1660 = vmatprep.subr.bf16.mxu0 0
    %1661 = vmatpush2.bf16.msra.mxu0 0
    %1662 = vmatprep.subr.bf16.mxu0 0
    %1663 = vmatpush2.bf16.msra.mxu0 0
    %1664 = vmatprep.subr.bf16.mxu0 0
    %1665 = vmatpush2.bf16.msra.mxu0 0
    %1666 = vmatprep.subr.bf16.mxu0 0
    %1667 = vmatpush2.bf16.msra.mxu0 0
    %1668 = vmatprep.subr.bf16.mxu0 0
    %1669 = vmatpush2.bf16.msra.mxu0 0
    %1670 = vmatprep.subr.bf16.mxu0 0
    %1671 = vmatpush2.bf16.msra.mxu0 0
    %1672 = vmatprep.subr.bf16.mxu0 0
    %1673 = vmatpush2.bf16.msra.mxu0 0
    %1674 = vmatprep.subr.bf16.mxu0 0
    %1675 = vmatpush2.bf16.msra.mxu0 0
    %1676 = vmatprep.mubr.bf16.mxu0 0
    %1677 = vmatmul.mubr.bf16.gmra.mxu0 %v1639
    %v1678 = vpop.f32.mrf.mxu0
    %v1679 = vadd.f32 0.0, %v1678
    %v1680 = vpop.f32.mrf.mxu0
    %v1681 = vadd.f32 0.0, %v1680
    %v1682 = vpop.f32.mrf.mxu0
    %v1683 = vadd.f32 0.0, %v1682
    %v1684 = vpop.f32.mrf.mxu0
    %v1685 = vadd.f32 0.0, %v1684
    %1686 = vmatprep.mubr.bf16.mxu0 0
    %1687 = vmatmul.mubr.bf16.gmra.mxu0 %v1642
    %v1688 = vpop.f32.mrf.mxu0
    %v1689 = vadd.f32 0.0, %v1688
    %v1690 = vpop.f32.mrf.mxu0
    %v1691 = vadd.f32 0.0, %v1690
    %v1692 = vpop.f32.mrf.mxu0
    %v1693 = vadd.f32 0.0, %v1692
    %v1694 = vpop.f32.mrf.mxu0
    %v1695 = vadd.f32 0.0, %v1694
    %1696 = vdwg.mxu0
    %v1697 = vadd.f32 %v1600, %v1679
    %v1698 = vadd.f32 %v1601, %v1681
    %v1699 = vadd.f32 %v1602, %v1683
    %v1700 = vadd.f32 %v1603, %v1685
    %v1701 = vadd.f32 %v1604, %v1689
    %v1702 = vadd.f32 %v1605, %v1691
    %v1703 = vadd.f32 %v1606, %v1693
    %v1704 = vadd.f32 %v1607, %v1695
    %s1705 = scalar_lea.vmem %s4, 128
    %v1706 = vld [vmem:[%s1705] sm:$0xf]
    %v1707 = vld [vmem:[%s1705 + $0x4] sm:$0xf]
    %v1708 = vld [vmem:[%s1705 + $0x8] sm:$0xf]
    %v1709 = vld [vmem:[%s1705 + $0xc] sm:$0xf]
    %v1714 = vunpack.c.l.b16 %v1706
    %v1715 = vunpack.c.l.b16 %v1707
    %v1716 = vunpack.c.l.b16 %v1708
    %v1717 = vunpack.c.l.b16 %v1709
    %v1718 = vpack.c.b16 %v1715, %v1714
    %v1719 = vpack.c.b16 %v1717, %v1716
    %1720 = vrot.lane.b32.xlu0 %v935, 99
    %v1721 = vpop.permute.xlu0 %1720
    %1722 = vrot.lane.b32.xlu0 %v939, 99
    %v1723 = vpop.permute.xlu0 %1722
    %1724 = vrot.lane.b32.xlu0 %v937, 99
    %v1725 = vpop.permute.xlu0 %1724
    %1726 = vrot.lane.b32.xlu0 %v941, 99
    %v1727 = vpop.permute.xlu0 %1726
    %vm1728 = vcmask 809984
    %v1729 = vsel %vm1728, %v1721, %v1723
    %v1730 = vsel %vm1728, %v1725, %v1727
    %v1736 = vsel %vm345, %v1718, 0
    %v1739 = vsel %vm345, %v1719, 0
    %1741 = vmatprep.subr.bf16.mxu0 0
    %1742 = vmatpush1.bf16.msra.mxu0 0
    %1743 = vmatprep.subr.bf16.mxu0 0
    %1744 = vmatpush1.bf16.msra.mxu0 0
    %1745 = vmatprep.subr.bf16.mxu0 0
    %1746 = vmatpush1.bf16.msra.mxu0 0
    %1747 = vmatprep.subr.bf16.mxu0 0
    %1748 = vmatpush1.bf16.msra.mxu0 0
    %1749 = vmatprep.subr.bf16.mxu0 0
    %1750 = vmatpush1.bf16.msra.mxu0 0
    %1751 = vmatprep.subr.bf16.mxu0 0
    %1752 = vmatpush1.bf16.msra.mxu0 0
    %1753 = vmatprep.subr.bf16.mxu0 %v1727
    %1754 = vmatpush1.bf16.msra.mxu0 %v1730
    %1755 = vmatprep.subr.bf16.mxu0 %v1723
    %1756 = vmatpush1.bf16.msra.mxu0 %v1729
    %1757 = vmatprep.subr.bf16.mxu0 0
    %1758 = vmatpush2.bf16.msra.mxu0 0
    %1759 = vmatprep.subr.bf16.mxu0 0
    %1760 = vmatpush2.bf16.msra.mxu0 0
    %1761 = vmatprep.subr.bf16.mxu0 0
    %1762 = vmatpush2.bf16.msra.mxu0 0
    %1763 = vmatprep.subr.bf16.mxu0 0
    %1764 = vmatpush2.bf16.msra.mxu0 0
    %1765 = vmatprep.subr.bf16.mxu0 0
    %1766 = vmatpush2.bf16.msra.mxu0 0
    %1767 = vmatprep.subr.bf16.mxu0 0
    %1768 = vmatpush2.bf16.msra.mxu0 0
    %1769 = vmatprep.subr.bf16.mxu0 0
    %1770 = vmatpush2.bf16.msra.mxu0 0
    %1771 = vmatprep.subr.bf16.mxu0 0
    %1772 = vmatpush2.bf16.msra.mxu0 0
    %1773 = vmatprep.mubr.bf16.mxu0 0
    %1774 = vmatmul.mubr.bf16.gmra.mxu0 %v1736
    %v1775 = vpop.f32.mrf.mxu0
    %v1776 = vadd.f32 0.0, %v1775
    %v1777 = vpop.f32.mrf.mxu0
    %v1778 = vadd.f32 0.0, %v1777
    %v1779 = vpop.f32.mrf.mxu0
    %v1780 = vadd.f32 0.0, %v1779
    %v1781 = vpop.f32.mrf.mxu0
    %v1782 = vadd.f32 0.0, %v1781
    %1783 = vmatprep.mubr.bf16.mxu0 0
    %1784 = vmatmul.mubr.bf16.gmra.mxu0 %v1739
    %v1785 = vpop.f32.mrf.mxu0
    %v1786 = vadd.f32 0.0, %v1785
    %v1787 = vpop.f32.mrf.mxu0
    %v1788 = vadd.f32 0.0, %v1787
    %v1789 = vpop.f32.mrf.mxu0
    %v1790 = vadd.f32 0.0, %v1789
    %v1791 = vpop.f32.mrf.mxu0
    %v1792 = vadd.f32 0.0, %v1791
    %1793 = vdwg.mxu0
    %v1794 = vadd.f32 %v1697, %v1776
    %v1795 = vadd.f32 %v1698, %v1778
    %v1796 = vadd.f32 %v1699, %v1780
    %v1797 = vadd.f32 %v1700, %v1782
    %v1798 = vadd.f32 %v1701, %v1786
    %v1799 = vadd.f32 %v1702, %v1788
    %v1800 = vadd.f32 %v1703, %v1790
    %v1801 = vadd.f32 %v1704, %v1792
    %1802 = vset.pattern.permute.xlu0 4
    %1803 = vperm.xlu0 %1802, %v46
    %v1804 = vpop.permute.xlu0 %1803
    %1806 = vset.pattern.permute.xlu0 4
    %1807 = vperm.xlu0 %1806, %v47
    %v1808 = vpop.permute.xlu0 %1807
    %1810 = vset.pattern.permute.xlu0 4
    %1811 = vperm.xlu0 %1810, %v48
    %v1812 = vpop.permute.xlu0 %1811
    %1814 = vset.pattern.permute.xlu0 4
    %1815 = vperm.xlu0 %1814, %v49
    %v1816 = vpop.permute.xlu0 %1815
    %v1818 = vadd.f32 %v1794, %v1804
    %v1819 = vadd.f32 %v1795, %v1804
    %v1820 = vadd.f32 %v1796, %v1808
    %v1821 = vadd.f32 %v1797, %v1808
    %v1822 = vadd.f32 %v1798, %v1812
    %v1823 = vadd.f32 %v1799, %v1812
    %v1824 = vadd.f32 %v1800, %v1816
    %v1825 = vadd.f32 %v1801, %v1816
    %v1826 = vmax.f32 %v1818, 0.0
    %v1827 = vmax.f32 %v1819, 0.0
    %v1828 = vmax.f32 %v1820, 0.0
    %v1829 = vmax.f32 %v1821, 0.0
    %v1830 = vmax.f32 %v1822, 0.0
    %v1831 = vmax.f32 %v1823, 0.0
    %v1832 = vmax.f32 %v1824, 0.0
    %v1833 = vmax.f32 %v1825, 0.0
    %v1834 = vmul.f32 %v1826, %v296
    %v1835 = vmul.f32 %v1827, %v300
    %v1836 = vmul.f32 %v1828, %v296
    %v1837 = vmul.f32 %v1829, %v300
    %v1838 = vmul.f32 %v1830, %v296
    %v1839 = vmul.f32 %v1831, %v300
    %v1840 = vmul.f32 %v1832, %v296
    %v1841 = vmul.f32 %v1833, %v300
    %v1842 = vadd.f32 %v906, %v1834
    %v1843 = vadd.f32 %v907, %v1835
    %v1844 = vadd.f32 %v908, %v1836
    %v1845 = vadd.f32 %v909, %v1837
    %v1846 = vadd.f32 %v910, %v1838
    %v1847 = vadd.f32 %v911, %v1839
    %v1848 = vadd.f32 %v912, %v1840
    %v1849 = vadd.f32 %v913, %v1841
    %v1850 = vpack.c.bf16 %v1844, %v1842
    %v1851 = vpack.c.bf16 %v1845, %v1843
    %v1852 = vpack.c.bf16 %v1848, %v1846
    %v1853 = vpack.c.bf16 %v1849, %v1847
    %1858 = vrot.lane.b32.xlu0 %v1850, 16
    %v1859 = vpop.permute.xlu0 %1858
    %1860 = vrot.lane.b32.xlu0 %v1851, 16
    %v1861 = vpop.permute.xlu0 %1860
    %1862 = vrot.lane.b32.xlu0 %v1852, 16
    %v1863 = vpop.permute.xlu0 %1862
    %1864 = vrot.lane.b32.xlu0 %v1853, 16
    %v1865 = vpop.permute.xlu0 %1864
    %v1866 = vsel %vm930, %v1859, %v1861
    %v1867 = vsel %vm930, %v1863, %v1865
    %v1869 = vsel %vm485, 0, %v1859
    %v1871 = vsel %vm485, 0, %v1863
    %v1873 = vsel %vm345, %v1866, 0
    %v1875 = vsel %vm345, %v1867, 0
    %1880 = vrot.lane.b32.xlu0 %v1869, 124
    %v1881 = vpop.permute.xlu0 %1880
    %1882 = vrot.lane.b32.xlu0 %v1873, 124
    %v1883 = vpop.permute.xlu0 %1882
    %1884 = vrot.lane.b32.xlu0 %v1871, 124
    %v1885 = vpop.permute.xlu0 %1884
    %1886 = vrot.lane.b32.xlu0 %v1875, 124
    %v1887 = vpop.permute.xlu0 %1886
    %v1888 = vsel %vm973, %v1881, %v1883
    %v1889 = vsel %vm973, %v1885, %v1887
    %1894 = vmatprep.subr.bf16.mxu0 0
    %1895 = vmatpush1.bf16.msra.mxu0 0
    %1896 = vmatprep.subr.bf16.mxu0 0
    %1897 = vmatpush1.bf16.msra.mxu0 0
    %1898 = vmatprep.subr.bf16.mxu0 0
    %1899 = vmatpush1.bf16.msra.mxu0 0
    %1900 = vmatprep.subr.bf16.mxu0 0
    %1901 = vmatpush1.bf16.msra.mxu0 0
    %1902 = vmatprep.subr.bf16.mxu0 0
    %1903 = vmatpush1.bf16.msra.mxu0 0
    %1904 = vmatprep.subr.bf16.mxu0 0
    %1905 = vmatpush1.bf16.msra.mxu0 0
    %1906 = vmatprep.subr.bf16.mxu0 %v1887
    %1907 = vmatpush1.bf16.msra.mxu0 %v1889
    %1908 = vmatprep.subr.bf16.mxu0 %v1883
    %1909 = vmatpush1.bf16.msra.mxu0 %v1888
    %1910 = vmatprep.subr.bf16.mxu0 0
    %1911 = vmatpush2.bf16.msra.mxu0 0
    %1912 = vmatprep.subr.bf16.mxu0 0
    %1913 = vmatpush2.bf16.msra.mxu0 0
    %1914 = vmatprep.subr.bf16.mxu0 0
    %1915 = vmatpush2.bf16.msra.mxu0 0
    %1916 = vmatprep.subr.bf16.mxu0 0
    %1917 = vmatpush2.bf16.msra.mxu0 0
    %1918 = vmatprep.subr.bf16.mxu0 0
    %1919 = vmatpush2.bf16.msra.mxu0 0
    %1920 = vmatprep.subr.bf16.mxu0 0
    %1921 = vmatpush2.bf16.msra.mxu0 0
    %1922 = vmatprep.subr.bf16.mxu0 0
    %1923 = vmatpush2.bf16.msra.mxu0 0
    %1924 = vmatprep.subr.bf16.mxu0 0
    %1925 = vmatpush2.bf16.msra.mxu0 0
    %1926 = vmatprep.mubr.bf16.mxu0 0
    %1927 = vmatmul.mubr.bf16.gmra.mxu0 %v981
    %v1928 = vpop.f32.mrf.mxu0
    %v1929 = vadd.f32 0.0, %v1928
    %v1930 = vpop.f32.mrf.mxu0
    %v1931 = vadd.f32 0.0, %v1930
    %v1932 = vpop.f32.mrf.mxu0
    %v1933 = vadd.f32 0.0, %v1932
    %v1934 = vpop.f32.mrf.mxu0
    %v1935 = vadd.f32 0.0, %v1934
    %1936 = vmatprep.mubr.bf16.mxu0 0
    %1937 = vmatmul.mubr.bf16.gmra.mxu0 %v984
    %v1938 = vpop.f32.mrf.mxu0
    %v1939 = vadd.f32 0.0, %v1938
    %v1940 = vpop.f32.mrf.mxu0
    %v1941 = vadd.f32 0.0, %v1940
    %v1942 = vpop.f32.mrf.mxu0
    %v1943 = vadd.f32 0.0, %v1942
    %v1944 = vpop.f32.mrf.mxu0
    %v1945 = vadd.f32 0.0, %v1944
    %1946 = vdwg.mxu0
    %1947 = vrot.lane.b32.xlu0 %v1869, 125
    %v1948 = vpop.permute.xlu0 %1947
    %1949 = vrot.lane.b32.xlu0 %v1873, 125
    %v1950 = vpop.permute.xlu0 %1949
    %1951 = vrot.lane.b32.xlu0 %v1871, 125
    %v1952 = vpop.permute.xlu0 %1951
    %1953 = vrot.lane.b32.xlu0 %v1875, 125
    %v1954 = vpop.permute.xlu0 %1953
    %v1955 = vsel %vm1057, %v1948, %v1950
    %v1956 = vsel %vm1057, %v1952, %v1954
    %1961 = vmatprep.subr.bf16.mxu0 0
    %1962 = vmatpush1.bf16.msra.mxu0 0
    %1963 = vmatprep.subr.bf16.mxu0 0
    %1964 = vmatpush1.bf16.msra.mxu0 0
    %1965 = vmatprep.subr.bf16.mxu0 0
    %1966 = vmatpush1.bf16.msra.mxu0 0
    %1967 = vmatprep.subr.bf16.mxu0 0
    %1968 = vmatpush1.bf16.msra.mxu0 0
    %1969 = vmatprep.subr.bf16.mxu0 0
    %1970 = vmatpush1.bf16.msra.mxu0 0
    %1971 = vmatprep.subr.bf16.mxu0 0
    %1972 = vmatpush1.bf16.msra.mxu0 0
    %1973 = vmatprep.subr.bf16.mxu0 %v1954
    %1974 = vmatpush1.bf16.msra.mxu0 %v1956
    %1975 = vmatprep.subr.bf16.mxu0 %v1950
    %1976 = vmatpush1.bf16.msra.mxu0 %v1955
    %1977 = vmatprep.subr.bf16.mxu0 0
    %1978 = vmatpush2.bf16.msra.mxu0 0
    %1979 = vmatprep.subr.bf16.mxu0 0
    %1980 = vmatpush2.bf16.msra.mxu0 0
    %1981 = vmatprep.subr.bf16.mxu0 0
    %1982 = vmatpush2.bf16.msra.mxu0 0
    %1983 = vmatprep.subr.bf16.mxu0 0
    %1984 = vmatpush2.bf16.msra.mxu0 0
    %1985 = vmatprep.subr.bf16.mxu0 0
    %1986 = vmatpush2.bf16.msra.mxu0 0
    %1987 = vmatprep.subr.bf16.mxu0 0
    %1988 = vmatpush2.bf16.msra.mxu0 0
    %1989 = vmatprep.subr.bf16.mxu0 0
    %1990 = vmatpush2.bf16.msra.mxu0 0
    %1991 = vmatprep.subr.bf16.mxu0 0
    %1992 = vmatpush2.bf16.msra.mxu0 0
    %1993 = vmatprep.mubr.bf16.mxu0 0
    %1994 = vmatmul.mubr.bf16.gmra.mxu0 %v1065
    %v1995 = vpop.f32.mrf.mxu0
    %v1996 = vadd.f32 %v1929, %v1995
    %v1997 = vpop.f32.mrf.mxu0
    %v1998 = vadd.f32 %v1931, %v1997
    %v1999 = vpop.f32.mrf.mxu0
    %v2000 = vadd.f32 %v1933, %v1999
    %v2001 = vpop.f32.mrf.mxu0
    %v2002 = vadd.f32 %v1935, %v2001
    %2003 = vmatprep.mubr.bf16.mxu0 0
    %2004 = vmatmul.mubr.bf16.gmra.mxu0 %v1068
    %v2005 = vpop.f32.mrf.mxu0
    %v2006 = vadd.f32 %v1939, %v2005
    %v2007 = vpop.f32.mrf.mxu0
    %v2008 = vadd.f32 %v1941, %v2007
    %v2009 = vpop.f32.mrf.mxu0
    %v2010 = vadd.f32 %v1943, %v2009
    %v2011 = vpop.f32.mrf.mxu0
    %v2012 = vadd.f32 %v1945, %v2011
    %2013 = vdwg.mxu0
    %2014 = vrot.lane.b32.xlu0 %v1869, 123
    %v2015 = vpop.permute.xlu0 %2014
    %2016 = vrot.lane.b32.xlu0 %v1873, 123
    %v2017 = vpop.permute.xlu0 %2016
    %2018 = vrot.lane.b32.xlu0 %v1871, 123
    %v2019 = vpop.permute.xlu0 %2018
    %2020 = vrot.lane.b32.xlu0 %v1875, 123
    %v2021 = vpop.permute.xlu0 %2020
    %v2022 = vsel %vm1146, %v2015, %v2017
    %v2023 = vsel %vm1146, %v2019, %v2021
    %2028 = vmatprep.subr.bf16.mxu0 0
    %2029 = vmatpush1.bf16.msra.mxu0 0
    %2030 = vmatprep.subr.bf16.mxu0 0
    %2031 = vmatpush1.bf16.msra.mxu0 0
    %2032 = vmatprep.subr.bf16.mxu0 0
    %2033 = vmatpush1.bf16.msra.mxu0 0
    %2034 = vmatprep.subr.bf16.mxu0 0
    %2035 = vmatpush1.bf16.msra.mxu0 0
    %2036 = vmatprep.subr.bf16.mxu0 0
    %2037 = vmatpush1.bf16.msra.mxu0 0
    %2038 = vmatprep.subr.bf16.mxu0 0
    %2039 = vmatpush1.bf16.msra.mxu0 0
    %2040 = vmatprep.subr.bf16.mxu0 %v2021
    %2041 = vmatpush1.bf16.msra.mxu0 %v2023
    %2042 = vmatprep.subr.bf16.mxu0 %v2017
    %2043 = vmatpush1.bf16.msra.mxu0 %v2022
    %2044 = vmatprep.subr.bf16.mxu0 0
    %2045 = vmatpush2.bf16.msra.mxu0 0
    %2046 = vmatprep.subr.bf16.mxu0 0
    %2047 = vmatpush2.bf16.msra.mxu0 0
    %2048 = vmatprep.subr.bf16.mxu0 0
    %2049 = vmatpush2.bf16.msra.mxu0 0
    %2050 = vmatprep.subr.bf16.mxu0 0
    %2051 = vmatpush2.bf16.msra.mxu0 0
    %2052 = vmatprep.subr.bf16.mxu0 0
    %2053 = vmatpush2.bf16.msra.mxu0 0
    %2054 = vmatprep.subr.bf16.mxu0 0
    %2055 = vmatpush2.bf16.msra.mxu0 0
    %2056 = vmatprep.subr.bf16.mxu0 0
    %2057 = vmatpush2.bf16.msra.mxu0 0
    %2058 = vmatprep.subr.bf16.mxu0 0
    %2059 = vmatpush2.bf16.msra.mxu0 0
    %2060 = vmatprep.mubr.bf16.mxu0 0
    %2061 = vmatmul.mubr.bf16.gmra.mxu0 %v1154
    %v2062 = vpop.f32.mrf.mxu0
    %v2063 = vadd.f32 0.0, %v2062
    %v2064 = vpop.f32.mrf.mxu0
    %v2065 = vadd.f32 0.0, %v2064
    %v2066 = vpop.f32.mrf.mxu0
    %v2067 = vadd.f32 0.0, %v2066
    %v2068 = vpop.f32.mrf.mxu0
    %v2069 = vadd.f32 0.0, %v2068
    %2070 = vmatprep.mubr.bf16.mxu0 0
    %2071 = vmatmul.mubr.bf16.gmra.mxu0 %v1157
    %v2072 = vpop.f32.mrf.mxu0
    %v2073 = vadd.f32 0.0, %v2072
    %v2074 = vpop.f32.mrf.mxu0
    %v2075 = vadd.f32 0.0, %v2074
    %v2076 = vpop.f32.mrf.mxu0
    %v2077 = vadd.f32 0.0, %v2076
    %v2078 = vpop.f32.mrf.mxu0
    %v2079 = vadd.f32 0.0, %v2078
    %2080 = vdwg.mxu0
    %v2081 = vadd.f32 %v1996, %v2063
    %v2082 = vadd.f32 %v1998, %v2065
    %v2083 = vadd.f32 %v2000, %v2067
    %v2084 = vadd.f32 %v2002, %v2069
    %v2085 = vadd.f32 %v2006, %v2073
    %v2086 = vadd.f32 %v2008, %v2075
    %v2087 = vadd.f32 %v2010, %v2077
    %v2088 = vadd.f32 %v2012, %v2079
    %2089 = vrot.lane.b32.xlu0 %v1869, 113
    %v2090 = vpop.permute.xlu0 %2089
    %2091 = vrot.lane.b32.xlu0 %v1873, 113
    %v2092 = vpop.permute.xlu0 %2091
    %2093 = vrot.lane.b32.xlu0 %v1871, 113
    %v2094 = vpop.permute.xlu0 %2093
    %2095 = vrot.lane.b32.xlu0 %v1875, 113
    %v2096 = vpop.permute.xlu0 %2095
    %v2097 = vsel %vm1243, %v2090, %v2092
    %v2098 = vsel %vm1243, %v2094, %v2096
    %2103 = vmatprep.subr.bf16.mxu0 0
    %2104 = vmatpush1.bf16.msra.mxu0 0
    %2105 = vmatprep.subr.bf16.mxu0 0
    %2106 = vmatpush1.bf16.msra.mxu0 0
    %2107 = vmatprep.subr.bf16.mxu0 0
    %2108 = vmatpush1.bf16.msra.mxu0 0
    %2109 = vmatprep.subr.bf16.mxu0 0
    %2110 = vmatpush1.bf16.msra.mxu0 0
    %2111 = vmatprep.subr.bf16.mxu0 0
    %2112 = vmatpush1.bf16.msra.mxu0 0
    %2113 = vmatprep.subr.bf16.mxu0 0
    %2114 = vmatpush1.bf16.msra.mxu0 0
    %2115 = vmatprep.subr.bf16.mxu0 %v2096
    %2116 = vmatpush1.bf16.msra.mxu0 %v2098
    %2117 = vmatprep.subr.bf16.mxu0 %v2092
    %2118 = vmatpush1.bf16.msra.mxu0 %v2097
    %2119 = vmatprep.subr.bf16.mxu0 0
    %2120 = vmatpush2.bf16.msra.mxu0 0
    %2121 = vmatprep.subr.bf16.mxu0 0
    %2122 = vmatpush2.bf16.msra.mxu0 0
    %2123 = vmatprep.subr.bf16.mxu0 0
    %2124 = vmatpush2.bf16.msra.mxu0 0
    %2125 = vmatprep.subr.bf16.mxu0 0
    %2126 = vmatpush2.bf16.msra.mxu0 0
    %2127 = vmatprep.subr.bf16.mxu0 0
    %2128 = vmatpush2.bf16.msra.mxu0 0
    %2129 = vmatprep.subr.bf16.mxu0 0
    %2130 = vmatpush2.bf16.msra.mxu0 0
    %2131 = vmatprep.subr.bf16.mxu0 0
    %2132 = vmatpush2.bf16.msra.mxu0 0
    %2133 = vmatprep.subr.bf16.mxu0 0
    %2134 = vmatpush2.bf16.msra.mxu0 0
    %2135 = vmatprep.mubr.bf16.mxu0 0
    %2136 = vmatmul.mubr.bf16.gmra.mxu0 %v1251
    %v2137 = vpop.f32.mrf.mxu0
    %v2138 = vadd.f32 0.0, %v2137
    %v2139 = vpop.f32.mrf.mxu0
    %v2140 = vadd.f32 0.0, %v2139
    %v2141 = vpop.f32.mrf.mxu0
    %v2142 = vadd.f32 0.0, %v2141
    %v2143 = vpop.f32.mrf.mxu0
    %v2144 = vadd.f32 0.0, %v2143
    %2145 = vmatprep.mubr.bf16.mxu0 0
    %2146 = vmatmul.mubr.bf16.gmra.mxu0 %v1254
    %v2147 = vpop.f32.mrf.mxu0
    %v2148 = vadd.f32 0.0, %v2147
    %v2149 = vpop.f32.mrf.mxu0
    %v2150 = vadd.f32 0.0, %v2149
    %v2151 = vpop.f32.mrf.mxu0
    %v2152 = vadd.f32 0.0, %v2151
    %v2153 = vpop.f32.mrf.mxu0
    %v2154 = vadd.f32 0.0, %v2153
    %2155 = vdwg.mxu0
    %v2156 = vadd.f32 %v2081, %v2138
    %v2157 = vadd.f32 %v2082, %v2140
    %v2158 = vadd.f32 %v2083, %v2142
    %v2159 = vadd.f32 %v2084, %v2144
    %v2160 = vadd.f32 %v2085, %v2148
    %v2161 = vadd.f32 %v2086, %v2150
    %v2162 = vadd.f32 %v2087, %v2152
    %v2163 = vadd.f32 %v2088, %v2154
    %2164 = vrot.lane.b32.xlu0 %v1869, 112
    %v2165 = vpop.permute.xlu0 %2164
    %2166 = vrot.lane.b32.xlu0 %v1873, 112
    %v2167 = vpop.permute.xlu0 %2166
    %2168 = vrot.lane.b32.xlu0 %v1871, 112
    %v2169 = vpop.permute.xlu0 %2168
    %2170 = vrot.lane.b32.xlu0 %v1875, 112
    %v2171 = vpop.permute.xlu0 %2170
    %v2172 = vsel %vm1340, %v2165, %v2167
    %v2173 = vsel %vm1340, %v2169, %v2171
    %2178 = vmatprep.subr.bf16.mxu0 0
    %2179 = vmatpush1.bf16.msra.mxu0 0
    %2180 = vmatprep.subr.bf16.mxu0 0
    %2181 = vmatpush1.bf16.msra.mxu0 0
    %2182 = vmatprep.subr.bf16.mxu0 0
    %2183 = vmatpush1.bf16.msra.mxu0 0
    %2184 = vmatprep.subr.bf16.mxu0 0
    %2185 = vmatpush1.bf16.msra.mxu0 0
    %2186 = vmatprep.subr.bf16.mxu0 0
    %2187 = vmatpush1.bf16.msra.mxu0 0
    %2188 = vmatprep.subr.bf16.mxu0 0
    %2189 = vmatpush1.bf16.msra.mxu0 0
    %2190 = vmatprep.subr.bf16.mxu0 %v2171
    %2191 = vmatpush1.bf16.msra.mxu0 %v2173
    %2192 = vmatprep.subr.bf16.mxu0 %v2167
    %2193 = vmatpush1.bf16.msra.mxu0 %v2172
    %2194 = vmatprep.subr.bf16.mxu0 0
    %2195 = vmatpush2.bf16.msra.mxu0 0
    %2196 = vmatprep.subr.bf16.mxu0 0
    %2197 = vmatpush2.bf16.msra.mxu0 0
    %2198 = vmatprep.subr.bf16.mxu0 0
    %2199 = vmatpush2.bf16.msra.mxu0 0
    %2200 = vmatprep.subr.bf16.mxu0 0
    %2201 = vmatpush2.bf16.msra.mxu0 0
    %2202 = vmatprep.subr.bf16.mxu0 0
    %2203 = vmatpush2.bf16.msra.mxu0 0
    %2204 = vmatprep.subr.bf16.mxu0 0
    %2205 = vmatpush2.bf16.msra.mxu0 0
    %2206 = vmatprep.subr.bf16.mxu0 0
    %2207 = vmatpush2.bf16.msra.mxu0 0
    %2208 = vmatprep.subr.bf16.mxu0 0
    %2209 = vmatpush2.bf16.msra.mxu0 0
    %2210 = vmatprep.mubr.bf16.mxu0 0
    %2211 = vmatmul.mubr.bf16.gmra.mxu0 %v1348
    %v2212 = vpop.f32.mrf.mxu0
    %v2213 = vadd.f32 0.0, %v2212
    %v2214 = vpop.f32.mrf.mxu0
    %v2215 = vadd.f32 0.0, %v2214
    %v2216 = vpop.f32.mrf.mxu0
    %v2217 = vadd.f32 0.0, %v2216
    %v2218 = vpop.f32.mrf.mxu0
    %v2219 = vadd.f32 0.0, %v2218
    %2220 = vmatprep.mubr.bf16.mxu0 0
    %2221 = vmatmul.mubr.bf16.gmra.mxu0 %v1351
    %v2222 = vpop.f32.mrf.mxu0
    %v2223 = vadd.f32 0.0, %v2222
    %v2224 = vpop.f32.mrf.mxu0
    %v2225 = vadd.f32 0.0, %v2224
    %v2226 = vpop.f32.mrf.mxu0
    %v2227 = vadd.f32 0.0, %v2226
    %v2228 = vpop.f32.mrf.mxu0
    %v2229 = vadd.f32 0.0, %v2228
    %2230 = vdwg.mxu0
    %v2231 = vadd.f32 %v2156, %v2213
    %v2232 = vadd.f32 %v2157, %v2215
    %v2233 = vadd.f32 %v2158, %v2217
    %v2234 = vadd.f32 %v2159, %v2219
    %v2235 = vadd.f32 %v2160, %v2223
    %v2236 = vadd.f32 %v2161, %v2225
    %v2237 = vadd.f32 %v2162, %v2227
    %v2238 = vadd.f32 %v2163, %v2229
    %2239 = vrot.lane.b32.xlu0 %v1869, 111
    %v2240 = vpop.permute.xlu0 %2239
    %2241 = vrot.lane.b32.xlu0 %v1873, 111
    %v2242 = vpop.permute.xlu0 %2241
    %2243 = vrot.lane.b32.xlu0 %v1871, 111
    %v2244 = vpop.permute.xlu0 %2243
    %2245 = vrot.lane.b32.xlu0 %v1875, 111
    %v2246 = vpop.permute.xlu0 %2245
    %v2247 = vsel %vm1437, %v2240, %v2242
    %v2248 = vsel %vm1437, %v2244, %v2246
    %2253 = vmatprep.subr.bf16.mxu0 0
    %2254 = vmatpush1.bf16.msra.mxu0 0
    %2255 = vmatprep.subr.bf16.mxu0 0
    %2256 = vmatpush1.bf16.msra.mxu0 0
    %2257 = vmatprep.subr.bf16.mxu0 0
    %2258 = vmatpush1.bf16.msra.mxu0 0
    %2259 = vmatprep.subr.bf16.mxu0 0
    %2260 = vmatpush1.bf16.msra.mxu0 0
    %2261 = vmatprep.subr.bf16.mxu0 0
    %2262 = vmatpush1.bf16.msra.mxu0 0
    %2263 = vmatprep.subr.bf16.mxu0 0
    %2264 = vmatpush1.bf16.msra.mxu0 0
    %2265 = vmatprep.subr.bf16.mxu0 %v2246
    %2266 = vmatpush1.bf16.msra.mxu0 %v2248
    %2267 = vmatprep.subr.bf16.mxu0 %v2242
    %2268 = vmatpush1.bf16.msra.mxu0 %v2247
    %2269 = vmatprep.subr.bf16.mxu0 0
    %2270 = vmatpush2.bf16.msra.mxu0 0
    %2271 = vmatprep.subr.bf16.mxu0 0
    %2272 = vmatpush2.bf16.msra.mxu0 0
    %2273 = vmatprep.subr.bf16.mxu0 0
    %2274 = vmatpush2.bf16.msra.mxu0 0
    %2275 = vmatprep.subr.bf16.mxu0 0
    %2276 = vmatpush2.bf16.msra.mxu0 0
    %2277 = vmatprep.subr.bf16.mxu0 0
    %2278 = vmatpush2.bf16.msra.mxu0 0
    %2279 = vmatprep.subr.bf16.mxu0 0
    %2280 = vmatpush2.bf16.msra.mxu0 0
    %2281 = vmatprep.subr.bf16.mxu0 0
    %2282 = vmatpush2.bf16.msra.mxu0 0
    %2283 = vmatprep.subr.bf16.mxu0 0
    %2284 = vmatpush2.bf16.msra.mxu0 0
    %2285 = vmatprep.mubr.bf16.mxu0 0
    %2286 = vmatmul.mubr.bf16.gmra.mxu0 %v1445
    %v2287 = vpop.f32.mrf.mxu0
    %v2288 = vadd.f32 0.0, %v2287
    %v2289 = vpop.f32.mrf.mxu0
    %v2290 = vadd.f32 0.0, %v2289
    %v2291 = vpop.f32.mrf.mxu0
    %v2292 = vadd.f32 0.0, %v2291
    %v2293 = vpop.f32.mrf.mxu0
    %v2294 = vadd.f32 0.0, %v2293
    %2295 = vmatprep.mubr.bf16.mxu0 0
    %2296 = vmatmul.mubr.bf16.gmra.mxu0 %v1448
    %v2297 = vpop.f32.mrf.mxu0
    %v2298 = vadd.f32 0.0, %v2297
    %v2299 = vpop.f32.mrf.mxu0
    %v2300 = vadd.f32 0.0, %v2299
    %v2301 = vpop.f32.mrf.mxu0
    %v2302 = vadd.f32 0.0, %v2301
    %v2303 = vpop.f32.mrf.mxu0
    %v2304 = vadd.f32 0.0, %v2303
    %2305 = vdwg.mxu0
    %v2306 = vadd.f32 %v2231, %v2288
    %v2307 = vadd.f32 %v2232, %v2290
    %v2308 = vadd.f32 %v2233, %v2292
    %v2309 = vadd.f32 %v2234, %v2294
    %v2310 = vadd.f32 %v2235, %v2298
    %v2311 = vadd.f32 %v2236, %v2300
    %v2312 = vadd.f32 %v2237, %v2302
    %v2313 = vadd.f32 %v2238, %v2304
    %2314 = vrot.lane.b32.xlu0 %v1869, 101
    %v2315 = vpop.permute.xlu0 %2314
    %2316 = vrot.lane.b32.xlu0 %v1873, 101
    %v2317 = vpop.permute.xlu0 %2316
    %2318 = vrot.lane.b32.xlu0 %v1871, 101
    %v2319 = vpop.permute.xlu0 %2318
    %2320 = vrot.lane.b32.xlu0 %v1875, 101
    %v2321 = vpop.permute.xlu0 %2320
    %v2322 = vsel %vm1534, %v2315, %v2317
    %v2323 = vsel %vm1534, %v2319, %v2321
    %2328 = vmatprep.subr.bf16.mxu0 0
    %2329 = vmatpush1.bf16.msra.mxu0 0
    %2330 = vmatprep.subr.bf16.mxu0 0
    %2331 = vmatpush1.bf16.msra.mxu0 0
    %2332 = vmatprep.subr.bf16.mxu0 0
    %2333 = vmatpush1.bf16.msra.mxu0 0
    %2334 = vmatprep.subr.bf16.mxu0 0
    %2335 = vmatpush1.bf16.msra.mxu0 0
    %2336 = vmatprep.subr.bf16.mxu0 0
    %2337 = vmatpush1.bf16.msra.mxu0 0
    %2338 = vmatprep.subr.bf16.mxu0 0
    %2339 = vmatpush1.bf16.msra.mxu0 0
    %2340 = vmatprep.subr.bf16.mxu0 %v2321
    %2341 = vmatpush1.bf16.msra.mxu0 %v2323
    %2342 = vmatprep.subr.bf16.mxu0 %v2317
    %2343 = vmatpush1.bf16.msra.mxu0 %v2322
    %2344 = vmatprep.subr.bf16.mxu0 0
    %2345 = vmatpush2.bf16.msra.mxu0 0
    %2346 = vmatprep.subr.bf16.mxu0 0
    %2347 = vmatpush2.bf16.msra.mxu0 0
    %2348 = vmatprep.subr.bf16.mxu0 0
    %2349 = vmatpush2.bf16.msra.mxu0 0
    %2350 = vmatprep.subr.bf16.mxu0 0
    %2351 = vmatpush2.bf16.msra.mxu0 0
    %2352 = vmatprep.subr.bf16.mxu0 0
    %2353 = vmatpush2.bf16.msra.mxu0 0
    %2354 = vmatprep.subr.bf16.mxu0 0
    %2355 = vmatpush2.bf16.msra.mxu0 0
    %2356 = vmatprep.subr.bf16.mxu0 0
    %2357 = vmatpush2.bf16.msra.mxu0 0
    %2358 = vmatprep.subr.bf16.mxu0 0
    %2359 = vmatpush2.bf16.msra.mxu0 0
    %2360 = vmatprep.mubr.bf16.mxu0 0
    %2361 = vmatmul.mubr.bf16.gmra.mxu0 %v1542
    %v2362 = vpop.f32.mrf.mxu0
    %v2363 = vadd.f32 0.0, %v2362
    %v2364 = vpop.f32.mrf.mxu0
    %v2365 = vadd.f32 0.0, %v2364
    %v2366 = vpop.f32.mrf.mxu0
    %v2367 = vadd.f32 0.0, %v2366
    %v2368 = vpop.f32.mrf.mxu0
    %v2369 = vadd.f32 0.0, %v2368
    %2370 = vmatprep.mubr.bf16.mxu0 0
    %2371 = vmatmul.mubr.bf16.gmra.mxu0 %v1545
    %v2372 = vpop.f32.mrf.mxu0
    %v2373 = vadd.f32 0.0, %v2372
    %v2374 = vpop.f32.mrf.mxu0
    %v2375 = vadd.f32 0.0, %v2374
    %v2376 = vpop.f32.mrf.mxu0
    %v2377 = vadd.f32 0.0, %v2376
    %v2378 = vpop.f32.mrf.mxu0
    %v2379 = vadd.f32 0.0, %v2378
    %2380 = vdwg.mxu0
    %v2381 = vadd.f32 %v2306, %v2363
    %v2382 = vadd.f32 %v2307, %v2365
    %v2383 = vadd.f32 %v2308, %v2367
    %v2384 = vadd.f32 %v2309, %v2369
    %v2385 = vadd.f32 %v2310, %v2373
    %v2386 = vadd.f32 %v2311, %v2375
    %v2387 = vadd.f32 %v2312, %v2377
    %v2388 = vadd.f32 %v2313, %v2379
    %2389 = vrot.lane.b32.xlu0 %v1869, 100
    %v2390 = vpop.permute.xlu0 %2389
    %2391 = vrot.lane.b32.xlu0 %v1873, 100
    %v2392 = vpop.permute.xlu0 %2391
    %2393 = vrot.lane.b32.xlu0 %v1871, 100
    %v2394 = vpop.permute.xlu0 %2393
    %2395 = vrot.lane.b32.xlu0 %v1875, 100
    %v2396 = vpop.permute.xlu0 %2395
    %v2397 = vsel %vm1631, %v2390, %v2392
    %v2398 = vsel %vm1631, %v2394, %v2396
    %2403 = vmatprep.subr.bf16.mxu0 0
    %2404 = vmatpush1.bf16.msra.mxu0 0
    %2405 = vmatprep.subr.bf16.mxu0 0
    %2406 = vmatpush1.bf16.msra.mxu0 0
    %2407 = vmatprep.subr.bf16.mxu0 0
    %2408 = vmatpush1.bf16.msra.mxu0 0
    %2409 = vmatprep.subr.bf16.mxu0 0
    %2410 = vmatpush1.bf16.msra.mxu0 0
    %2411 = vmatprep.subr.bf16.mxu0 0
    %2412 = vmatpush1.bf16.msra.mxu0 0
    %2413 = vmatprep.subr.bf16.mxu0 0
    %2414 = vmatpush1.bf16.msra.mxu0 0
    %2415 = vmatprep.subr.bf16.mxu0 %v2396
    %2416 = vmatpush1.bf16.msra.mxu0 %v2398
    %2417 = vmatprep.subr.bf16.mxu0 %v2392
    %2418 = vmatpush1.bf16.msra.mxu0 %v2397
    %2419 = vmatprep.subr.bf16.mxu0 0
    %2420 = vmatpush2.bf16.msra.mxu0 0
    %2421 = vmatprep.subr.bf16.mxu0 0
    %2422 = vmatpush2.bf16.msra.mxu0 0
    %2423 = vmatprep.subr.bf16.mxu0 0
    %2424 = vmatpush2.bf16.msra.mxu0 0
    %2425 = vmatprep.subr.bf16.mxu0 0
    %2426 = vmatpush2.bf16.msra.mxu0 0
    %2427 = vmatprep.subr.bf16.mxu0 0
    %2428 = vmatpush2.bf16.msra.mxu0 0
    %2429 = vmatprep.subr.bf16.mxu0 0
    %2430 = vmatpush2.bf16.msra.mxu0 0
    %2431 = vmatprep.subr.bf16.mxu0 0
    %2432 = vmatpush2.bf16.msra.mxu0 0
    %2433 = vmatprep.subr.bf16.mxu0 0
    %2434 = vmatpush2.bf16.msra.mxu0 0
    %2435 = vmatprep.mubr.bf16.mxu0 0
    %2436 = vmatmul.mubr.bf16.gmra.mxu0 %v1639
    %v2437 = vpop.f32.mrf.mxu0
    %v2438 = vadd.f32 0.0, %v2437
    %v2439 = vpop.f32.mrf.mxu0
    %v2440 = vadd.f32 0.0, %v2439
    %v2441 = vpop.f32.mrf.mxu0
    %v2442 = vadd.f32 0.0, %v2441
    %v2443 = vpop.f32.mrf.mxu0
    %v2444 = vadd.f32 0.0, %v2443
    %2445 = vmatprep.mubr.bf16.mxu0 0
    %2446 = vmatmul.mubr.bf16.gmra.mxu0 %v1642
    %v2447 = vpop.f32.mrf.mxu0
    %v2448 = vadd.f32 0.0, %v2447
    %v2449 = vpop.f32.mrf.mxu0
    %v2450 = vadd.f32 0.0, %v2449
    %v2451 = vpop.f32.mrf.mxu0
    %v2452 = vadd.f32 0.0, %v2451
    %v2453 = vpop.f32.mrf.mxu0
    %v2454 = vadd.f32 0.0, %v2453
    %2455 = vdwg.mxu0
    %v2456 = vadd.f32 %v2381, %v2438
    %v2457 = vadd.f32 %v2382, %v2440
    %v2458 = vadd.f32 %v2383, %v2442
    %v2459 = vadd.f32 %v2384, %v2444
    %v2460 = vadd.f32 %v2385, %v2448
    %v2461 = vadd.f32 %v2386, %v2450
    %v2462 = vadd.f32 %v2387, %v2452
    %v2463 = vadd.f32 %v2388, %v2454
    %2464 = vrot.lane.b32.xlu0 %v1869, 99
    %v2465 = vpop.permute.xlu0 %2464
    %2466 = vrot.lane.b32.xlu0 %v1873, 99
    %v2467 = vpop.permute.xlu0 %2466
    %2468 = vrot.lane.b32.xlu0 %v1871, 99
    %v2469 = vpop.permute.xlu0 %2468
    %2470 = vrot.lane.b32.xlu0 %v1875, 99
    %v2471 = vpop.permute.xlu0 %2470
    %v2472 = vsel %vm1728, %v2465, %v2467
    %v2473 = vsel %vm1728, %v2469, %v2471
    %2478 = vmatprep.subr.bf16.mxu0 0
    %2479 = vmatpush1.bf16.msra.mxu0 0
    %2480 = vmatprep.subr.bf16.mxu0 0
    %2481 = vmatpush1.bf16.msra.mxu0 0
    %2482 = vmatprep.subr.bf16.mxu0 0
    %2483 = vmatpush1.bf16.msra.mxu0 0
    %2484 = vmatprep.subr.bf16.mxu0 0
    %2485 = vmatpush1.bf16.msra.mxu0 0
    %2486 = vmatprep.subr.bf16.mxu0 0
    %2487 = vmatpush1.bf16.msra.mxu0 0
    %2488 = vmatprep.subr.bf16.mxu0 0
    %2489 = vmatpush1.bf16.msra.mxu0 0
    %2490 = vmatprep.subr.bf16.mxu0 %v2471
    %2491 = vmatpush1.bf16.msra.mxu0 %v2473
    %2492 = vmatprep.subr.bf16.mxu0 %v2467
    %2493 = vmatpush1.bf16.msra.mxu0 %v2472
    %2494 = vmatprep.subr.bf16.mxu0 0
    %2495 = vmatpush2.bf16.msra.mxu0 0
    %2496 = vmatprep.subr.bf16.mxu0 0
    %2497 = vmatpush2.bf16.msra.mxu0 0
    %2498 = vmatprep.subr.bf16.mxu0 0
    %2499 = vmatpush2.bf16.msra.mxu0 0
    %2500 = vmatprep.subr.bf16.mxu0 0
    %2501 = vmatpush2.bf16.msra.mxu0 0
    %2502 = vmatprep.subr.bf16.mxu0 0
    %2503 = vmatpush2.bf16.msra.mxu0 0
    %2504 = vmatprep.subr.bf16.mxu0 0
    %2505 = vmatpush2.bf16.msra.mxu0 0
    %2506 = vmatprep.subr.bf16.mxu0 0
    %2507 = vmatpush2.bf16.msra.mxu0 0
    %2508 = vmatprep.subr.bf16.mxu0 0
    %2509 = vmatpush2.bf16.msra.mxu0 0
    %2510 = vmatprep.mubr.bf16.mxu0 0
    %2511 = vmatmul.mubr.bf16.gmra.mxu0 %v1736
    %v2512 = vpop.f32.mrf.mxu0
    %v2513 = vadd.f32 0.0, %v2512
    %v2514 = vpop.f32.mrf.mxu0
    %v2515 = vadd.f32 0.0, %v2514
    %v2516 = vpop.f32.mrf.mxu0
    %v2517 = vadd.f32 0.0, %v2516
    %v2518 = vpop.f32.mrf.mxu0
    %v2519 = vadd.f32 0.0, %v2518
    %2520 = vmatprep.mubr.bf16.mxu0 0
    %2521 = vmatmul.mubr.bf16.gmra.mxu0 %v1739
    %v2522 = vpop.f32.mrf.mxu0
    %v2523 = vadd.f32 0.0, %v2522
    %v2524 = vpop.f32.mrf.mxu0
    %v2525 = vadd.f32 0.0, %v2524
    %v2526 = vpop.f32.mrf.mxu0
    %v2527 = vadd.f32 0.0, %v2526
    %v2528 = vpop.f32.mrf.mxu0
    %v2529 = vadd.f32 0.0, %v2528
    %2530 = vdwg.mxu0
    %v2531 = vadd.f32 %v2456, %v2513
    %v2532 = vadd.f32 %v2457, %v2515
    %v2533 = vadd.f32 %v2458, %v2517
    %v2534 = vadd.f32 %v2459, %v2519
    %v2535 = vadd.f32 %v2460, %v2523
    %v2536 = vadd.f32 %v2461, %v2525
    %v2537 = vadd.f32 %v2462, %v2527
    %v2538 = vadd.f32 %v2463, %v2529
    %v2539 = vadd.f32 %v2531, %v1804
    %v2540 = vadd.f32 %v2532, %v1804
    %v2541 = vadd.f32 %v2533, %v1808
    %v2542 = vadd.f32 %v2534, %v1808
    %v2543 = vadd.f32 %v2535, %v1812
    %v2544 = vadd.f32 %v2536, %v1812
    %v2545 = vadd.f32 %v2537, %v1816
    %v2546 = vadd.f32 %v2538, %v1816
    %v2547 = vmax.f32 %v2539, 0.0
    %v2548 = vmax.f32 %v2540, 0.0
    %v2549 = vmax.f32 %v2541, 0.0
    %v2550 = vmax.f32 %v2542, 0.0
    %v2551 = vmax.f32 %v2543, 0.0
    %v2552 = vmax.f32 %v2544, 0.0
    %v2553 = vmax.f32 %v2545, 0.0
    %v2554 = vmax.f32 %v2546, 0.0
    %v2555 = vmul.f32 %v2547, %v296
    %v2556 = vmul.f32 %v2548, %v300
    %v2557 = vmul.f32 %v2549, %v296
    %v2558 = vmul.f32 %v2550, %v300
    %v2559 = vmul.f32 %v2551, %v296
    %v2560 = vmul.f32 %v2552, %v300
    %v2561 = vmul.f32 %v2553, %v296
    %v2562 = vmul.f32 %v2554, %v300
    %v2563 = vadd.f32 %v1842, %v2555
    %v2564 = vadd.f32 %v1843, %v2556
    %v2565 = vadd.f32 %v1844, %v2557
    %v2566 = vadd.f32 %v1845, %v2558
    %v2567 = vadd.f32 %v1846, %v2559
    %v2568 = vadd.f32 %v1847, %v2560
    %v2569 = vadd.f32 %v1848, %v2561
    %v2570 = vadd.f32 %v1849, %v2562
    %v2571 = vpack.c.bf16 %v2565, %v2563
    %v2572 = vpack.c.bf16 %v2566, %v2564
    %v2573 = vpack.c.bf16 %v2569, %v2567
    %v2574 = vpack.c.bf16 %v2570, %v2568
    %2579 = vrot.lane.b32.xlu0 %v2571, 16
    %v2580 = vpop.permute.xlu0 %2579
    %2581 = vrot.lane.b32.xlu0 %v2572, 16
    %v2582 = vpop.permute.xlu0 %2581
    %2583 = vrot.lane.b32.xlu0 %v2573, 16
    %v2584 = vpop.permute.xlu0 %2583
    %2585 = vrot.lane.b32.xlu0 %v2574, 16
    %v2586 = vpop.permute.xlu0 %2585
    %v2587 = vsel %vm930, %v2580, %v2582
    %v2588 = vsel %vm930, %v2584, %v2586
    %v2590 = vsel %vm485, 0, %v2580
    %v2592 = vsel %vm485, 0, %v2584
    %v2594 = vsel %vm345, %v2587, 0
    %v2596 = vsel %vm345, %v2588, 0
    %2601 = vrot.lane.b32.xlu0 %v2590, 124
    %v2602 = vpop.permute.xlu0 %2601
    %2603 = vrot.lane.b32.xlu0 %v2594, 124
    %v2604 = vpop.permute.xlu0 %2603
    %2605 = vrot.lane.b32.xlu0 %v2592, 124
    %v2606 = vpop.permute.xlu0 %2605
    %2607 = vrot.lane.b32.xlu0 %v2596, 124
    %v2608 = vpop.permute.xlu0 %2607
    %v2609 = vsel %vm973, %v2602, %v2604
    %v2610 = vsel %vm973, %v2606, %v2608
    %2615 = vmatprep.subr.bf16.mxu0 0
    %2616 = vmatpush1.bf16.msra.mxu0 0
    %2617 = vmatprep.subr.bf16.mxu0 0
    %2618 = vmatpush1.bf16.msra.mxu0 0
    %2619 = vmatprep.subr.bf16.mxu0 0
    %2620 = vmatpush1.bf16.msra.mxu0 0
    %2621 = vmatprep.subr.bf16.mxu0 0
    %2622 = vmatpush1.bf16.msra.mxu0 0
    %2623 = vmatprep.subr.bf16.mxu0 0
    %2624 = vmatpush1.bf16.msra.mxu0 0
    %2625 = vmatprep.subr.bf16.mxu0 0
    %2626 = vmatpush1.bf16.msra.mxu0 0
    %2627 = vmatprep.subr.bf16.mxu0 %v2608
    %2628 = vmatpush1.bf16.msra.mxu0 %v2610
    %2629 = vmatprep.subr.bf16.mxu0 %v2604
    %2630 = vmatpush1.bf16.msra.mxu0 %v2609
    %2631 = vmatprep.subr.bf16.mxu0 0
    %2632 = vmatpush2.bf16.msra.mxu0 0
    %2633 = vmatprep.subr.bf16.mxu0 0
    %2634 = vmatpush2.bf16.msra.mxu0 0
    %2635 = vmatprep.subr.bf16.mxu0 0
    %2636 = vmatpush2.bf16.msra.mxu0 0
    %2637 = vmatprep.subr.bf16.mxu0 0
    %2638 = vmatpush2.bf16.msra.mxu0 0
    %2639 = vmatprep.subr.bf16.mxu0 0
    %2640 = vmatpush2.bf16.msra.mxu0 0
    %2641 = vmatprep.subr.bf16.mxu0 0
    %2642 = vmatpush2.bf16.msra.mxu0 0
    %2643 = vmatprep.subr.bf16.mxu0 0
    %2644 = vmatpush2.bf16.msra.mxu0 0
    %2645 = vmatprep.subr.bf16.mxu0 0
    %2646 = vmatpush2.bf16.msra.mxu0 0
    %2647 = vmatprep.mubr.bf16.mxu0 0
    %2648 = vmatmul.mubr.bf16.gmra.mxu0 %v981
    %v2649 = vpop.f32.mrf.mxu0
    %v2650 = vadd.f32 0.0, %v2649
    %v2651 = vpop.f32.mrf.mxu0
    %v2652 = vadd.f32 0.0, %v2651
    %v2653 = vpop.f32.mrf.mxu0
    %v2654 = vadd.f32 0.0, %v2653
    %v2655 = vpop.f32.mrf.mxu0
    %v2656 = vadd.f32 0.0, %v2655
    %2657 = vmatprep.mubr.bf16.mxu0 0
    %2658 = vmatmul.mubr.bf16.gmra.mxu0 %v984
    %v2659 = vpop.f32.mrf.mxu0
    %v2660 = vadd.f32 0.0, %v2659
    %v2661 = vpop.f32.mrf.mxu0
    %v2662 = vadd.f32 0.0, %v2661
    %v2663 = vpop.f32.mrf.mxu0
    %v2664 = vadd.f32 0.0, %v2663
    %v2665 = vpop.f32.mrf.mxu0
    %v2666 = vadd.f32 0.0, %v2665
    %2667 = vdwg.mxu0
    %2668 = vrot.lane.b32.xlu0 %v2590, 125
    %v2669 = vpop.permute.xlu0 %2668
    %2670 = vrot.lane.b32.xlu0 %v2594, 125
    %v2671 = vpop.permute.xlu0 %2670
    %2672 = vrot.lane.b32.xlu0 %v2592, 125
    %v2673 = vpop.permute.xlu0 %2672
    %2674 = vrot.lane.b32.xlu0 %v2596, 125
    %v2675 = vpop.permute.xlu0 %2674
    %v2676 = vsel %vm1057, %v2669, %v2671
    %v2677 = vsel %vm1057, %v2673, %v2675
    %2682 = vmatprep.subr.bf16.mxu0 0
    %2683 = vmatpush1.bf16.msra.mxu0 0
    %2684 = vmatprep.subr.bf16.mxu0 0
    %2685 = vmatpush1.bf16.msra.mxu0 0
    %2686 = vmatprep.subr.bf16.mxu0 0
    %2687 = vmatpush1.bf16.msra.mxu0 0
    %2688 = vmatprep.subr.bf16.mxu0 0
    %2689 = vmatpush1.bf16.msra.mxu0 0
    %2690 = vmatprep.subr.bf16.mxu0 0
    %2691 = vmatpush1.bf16.msra.mxu0 0
    %2692 = vmatprep.subr.bf16.mxu0 0
    %2693 = vmatpush1.bf16.msra.mxu0 0
    %2694 = vmatprep.subr.bf16.mxu0 %v2675
    %2695 = vmatpush1.bf16.msra.mxu0 %v2677
    %2696 = vmatprep.subr.bf16.mxu0 %v2671
    %2697 = vmatpush1.bf16.msra.mxu0 %v2676
    %2698 = vmatprep.subr.bf16.mxu0 0
    %2699 = vmatpush2.bf16.msra.mxu0 0
    %2700 = vmatprep.subr.bf16.mxu0 0
    %2701 = vmatpush2.bf16.msra.mxu0 0
    %2702 = vmatprep.subr.bf16.mxu0 0
    %2703 = vmatpush2.bf16.msra.mxu0 0
    %2704 = vmatprep.subr.bf16.mxu0 0
    %2705 = vmatpush2.bf16.msra.mxu0 0
    %2706 = vmatprep.subr.bf16.mxu0 0
    %2707 = vmatpush2.bf16.msra.mxu0 0
    %2708 = vmatprep.subr.bf16.mxu0 0
    %2709 = vmatpush2.bf16.msra.mxu0 0
    %2710 = vmatprep.subr.bf16.mxu0 0
    %2711 = vmatpush2.bf16.msra.mxu0 0
    %2712 = vmatprep.subr.bf16.mxu0 0
    %2713 = vmatpush2.bf16.msra.mxu0 0
    %2714 = vmatprep.mubr.bf16.mxu0 0
    %2715 = vmatmul.mubr.bf16.gmra.mxu0 %v1065
    %v2716 = vpop.f32.mrf.mxu0
    %v2717 = vadd.f32 %v2650, %v2716
    %v2718 = vpop.f32.mrf.mxu0
    %v2719 = vadd.f32 %v2652, %v2718
    %v2720 = vpop.f32.mrf.mxu0
    %v2721 = vadd.f32 %v2654, %v2720
    %v2722 = vpop.f32.mrf.mxu0
    %v2723 = vadd.f32 %v2656, %v2722
    %2724 = vmatprep.mubr.bf16.mxu0 0
    %2725 = vmatmul.mubr.bf16.gmra.mxu0 %v1068
    %v2726 = vpop.f32.mrf.mxu0
    %v2727 = vadd.f32 %v2660, %v2726
    %v2728 = vpop.f32.mrf.mxu0
    %v2729 = vadd.f32 %v2662, %v2728
    %v2730 = vpop.f32.mrf.mxu0
    %v2731 = vadd.f32 %v2664, %v2730
    %v2732 = vpop.f32.mrf.mxu0
    %v2733 = vadd.f32 %v2666, %v2732
    %2734 = vdwg.mxu0
    %2735 = vrot.lane.b32.xlu0 %v2590, 123
    %v2736 = vpop.permute.xlu0 %2735
    %2737 = vrot.lane.b32.xlu0 %v2594, 123
    %v2738 = vpop.permute.xlu0 %2737
    %2739 = vrot.lane.b32.xlu0 %v2592, 123
    %v2740 = vpop.permute.xlu0 %2739
    %2741 = vrot.lane.b32.xlu0 %v2596, 123
    %v2742 = vpop.permute.xlu0 %2741
    %v2743 = vsel %vm1146, %v2736, %v2738
    %v2744 = vsel %vm1146, %v2740, %v2742
    %2749 = vmatprep.subr.bf16.mxu0 0
    %2750 = vmatpush1.bf16.msra.mxu0 0
    %2751 = vmatprep.subr.bf16.mxu0 0
    %2752 = vmatpush1.bf16.msra.mxu0 0
    %2753 = vmatprep.subr.bf16.mxu0 0
    %2754 = vmatpush1.bf16.msra.mxu0 0
    %2755 = vmatprep.subr.bf16.mxu0 0
    %2756 = vmatpush1.bf16.msra.mxu0 0
    %2757 = vmatprep.subr.bf16.mxu0 0
    %2758 = vmatpush1.bf16.msra.mxu0 0
    %2759 = vmatprep.subr.bf16.mxu0 0
    %2760 = vmatpush1.bf16.msra.mxu0 0
    %2761 = vmatprep.subr.bf16.mxu0 %v2742
    %2762 = vmatpush1.bf16.msra.mxu0 %v2744
    %2763 = vmatprep.subr.bf16.mxu0 %v2738
    %2764 = vmatpush1.bf16.msra.mxu0 %v2743
    %2765 = vmatprep.subr.bf16.mxu0 0
    %2766 = vmatpush2.bf16.msra.mxu0 0
    %2767 = vmatprep.subr.bf16.mxu0 0
    %2768 = vmatpush2.bf16.msra.mxu0 0
    %2769 = vmatprep.subr.bf16.mxu0 0
    %2770 = vmatpush2.bf16.msra.mxu0 0
    %2771 = vmatprep.subr.bf16.mxu0 0
    %2772 = vmatpush2.bf16.msra.mxu0 0
    %2773 = vmatprep.subr.bf16.mxu0 0
    %2774 = vmatpush2.bf16.msra.mxu0 0
    %2775 = vmatprep.subr.bf16.mxu0 0
    %2776 = vmatpush2.bf16.msra.mxu0 0
    %2777 = vmatprep.subr.bf16.mxu0 0
    %2778 = vmatpush2.bf16.msra.mxu0 0
    %2779 = vmatprep.subr.bf16.mxu0 0
    %2780 = vmatpush2.bf16.msra.mxu0 0
    %2781 = vmatprep.mubr.bf16.mxu0 0
    %2782 = vmatmul.mubr.bf16.gmra.mxu0 %v1154
    %v2783 = vpop.f32.mrf.mxu0
    %v2784 = vadd.f32 0.0, %v2783
    %v2785 = vpop.f32.mrf.mxu0
    %v2786 = vadd.f32 0.0, %v2785
    %v2787 = vpop.f32.mrf.mxu0
    %v2788 = vadd.f32 0.0, %v2787
    %v2789 = vpop.f32.mrf.mxu0
    %v2790 = vadd.f32 0.0, %v2789
    %2791 = vmatprep.mubr.bf16.mxu0 0
    %2792 = vmatmul.mubr.bf16.gmra.mxu0 %v1157
    %v2793 = vpop.f32.mrf.mxu0
    %v2794 = vadd.f32 0.0, %v2793
    %v2795 = vpop.f32.mrf.mxu0
    %v2796 = vadd.f32 0.0, %v2795
    %v2797 = vpop.f32.mrf.mxu0
    %v2798 = vadd.f32 0.0, %v2797
    %v2799 = vpop.f32.mrf.mxu0
    %v2800 = vadd.f32 0.0, %v2799
    %2801 = vdwg.mxu0
    %v2802 = vadd.f32 %v2717, %v2784
    %v2803 = vadd.f32 %v2719, %v2786
    %v2804 = vadd.f32 %v2721, %v2788
    %v2805 = vadd.f32 %v2723, %v2790
    %v2806 = vadd.f32 %v2727, %v2794
    %v2807 = vadd.f32 %v2729, %v2796
    %v2808 = vadd.f32 %v2731, %v2798
    %v2809 = vadd.f32 %v2733, %v2800
    %2810 = vrot.lane.b32.xlu0 %v2590, 113
    %v2811 = vpop.permute.xlu0 %2810
    %2812 = vrot.lane.b32.xlu0 %v2594, 113
    %v2813 = vpop.permute.xlu0 %2812
    %2814 = vrot.lane.b32.xlu0 %v2592, 113
    %v2815 = vpop.permute.xlu0 %2814
    %2816 = vrot.lane.b32.xlu0 %v2596, 113
    %v2817 = vpop.permute.xlu0 %2816
    %v2818 = vsel %vm1243, %v2811, %v2813
    %v2819 = vsel %vm1243, %v2815, %v2817
    %2824 = vmatprep.subr.bf16.mxu0 0
    %2825 = vmatpush1.bf16.msra.mxu0 0
    %2826 = vmatprep.subr.bf16.mxu0 0
    %2827 = vmatpush1.bf16.msra.mxu0 0
    %2828 = vmatprep.subr.bf16.mxu0 0
    %2829 = vmatpush1.bf16.msra.mxu0 0
    %2830 = vmatprep.subr.bf16.mxu0 0
    %2831 = vmatpush1.bf16.msra.mxu0 0
    %2832 = vmatprep.subr.bf16.mxu0 0
    %2833 = vmatpush1.bf16.msra.mxu0 0
    %2834 = vmatprep.subr.bf16.mxu0 0
    %2835 = vmatpush1.bf16.msra.mxu0 0
    %2836 = vmatprep.subr.bf16.mxu0 %v2817
    %2837 = vmatpush1.bf16.msra.mxu0 %v2819
    %2838 = vmatprep.subr.bf16.mxu0 %v2813
    %2839 = vmatpush1.bf16.msra.mxu0 %v2818
    %2840 = vmatprep.subr.bf16.mxu0 0
    %2841 = vmatpush2.bf16.msra.mxu0 0
    %2842 = vmatprep.subr.bf16.mxu0 0
    %2843 = vmatpush2.bf16.msra.mxu0 0
    %2844 = vmatprep.subr.bf16.mxu0 0
    %2845 = vmatpush2.bf16.msra.mxu0 0
    %2846 = vmatprep.subr.bf16.mxu0 0
    %2847 = vmatpush2.bf16.msra.mxu0 0
    %2848 = vmatprep.subr.bf16.mxu0 0
    %2849 = vmatpush2.bf16.msra.mxu0 0
    %2850 = vmatprep.subr.bf16.mxu0 0
    %2851 = vmatpush2.bf16.msra.mxu0 0
    %2852 = vmatprep.subr.bf16.mxu0 0
    %2853 = vmatpush2.bf16.msra.mxu0 0
    %2854 = vmatprep.subr.bf16.mxu0 0
    %2855 = vmatpush2.bf16.msra.mxu0 0
    %2856 = vmatprep.mubr.bf16.mxu0 0
    %2857 = vmatmul.mubr.bf16.gmra.mxu0 %v1251
    %v2858 = vpop.f32.mrf.mxu0
    %v2859 = vadd.f32 0.0, %v2858
    %v2860 = vpop.f32.mrf.mxu0
    %v2861 = vadd.f32 0.0, %v2860
    %v2862 = vpop.f32.mrf.mxu0
    %v2863 = vadd.f32 0.0, %v2862
    %v2864 = vpop.f32.mrf.mxu0
    %v2865 = vadd.f32 0.0, %v2864
    %2866 = vmatprep.mubr.bf16.mxu0 0
    %2867 = vmatmul.mubr.bf16.gmra.mxu0 %v1254
    %v2868 = vpop.f32.mrf.mxu0
    %v2869 = vadd.f32 0.0, %v2868
    %v2870 = vpop.f32.mrf.mxu0
    %v2871 = vadd.f32 0.0, %v2870
    %v2872 = vpop.f32.mrf.mxu0
    %v2873 = vadd.f32 0.0, %v2872
    %v2874 = vpop.f32.mrf.mxu0
    %v2875 = vadd.f32 0.0, %v2874
    %2876 = vdwg.mxu0
    %v2877 = vadd.f32 %v2802, %v2859
    %v2878 = vadd.f32 %v2803, %v2861
    %v2879 = vadd.f32 %v2804, %v2863
    %v2880 = vadd.f32 %v2805, %v2865
    %v2881 = vadd.f32 %v2806, %v2869
    %v2882 = vadd.f32 %v2807, %v2871
    %v2883 = vadd.f32 %v2808, %v2873
    %v2884 = vadd.f32 %v2809, %v2875
    %2885 = vrot.lane.b32.xlu0 %v2590, 112
    %v2886 = vpop.permute.xlu0 %2885
    %2887 = vrot.lane.b32.xlu0 %v2594, 112
    %v2888 = vpop.permute.xlu0 %2887
    %2889 = vrot.lane.b32.xlu0 %v2592, 112
    %v2890 = vpop.permute.xlu0 %2889
    %2891 = vrot.lane.b32.xlu0 %v2596, 112
    %v2892 = vpop.permute.xlu0 %2891
    %v2893 = vsel %vm1340, %v2886, %v2888
    %v2894 = vsel %vm1340, %v2890, %v2892
    %2899 = vmatprep.subr.bf16.mxu0 0
    %2900 = vmatpush1.bf16.msra.mxu0 0
    %2901 = vmatprep.subr.bf16.mxu0 0
    %2902 = vmatpush1.bf16.msra.mxu0 0
    %2903 = vmatprep.subr.bf16.mxu0 0
    %2904 = vmatpush1.bf16.msra.mxu0 0
    %2905 = vmatprep.subr.bf16.mxu0 0
    %2906 = vmatpush1.bf16.msra.mxu0 0
    %2907 = vmatprep.subr.bf16.mxu0 0
    %2908 = vmatpush1.bf16.msra.mxu0 0
    %2909 = vmatprep.subr.bf16.mxu0 0
    %2910 = vmatpush1.bf16.msra.mxu0 0
    %2911 = vmatprep.subr.bf16.mxu0 %v2892
    %2912 = vmatpush1.bf16.msra.mxu0 %v2894
    %2913 = vmatprep.subr.bf16.mxu0 %v2888
    %2914 = vmatpush1.bf16.msra.mxu0 %v2893
    %2915 = vmatprep.subr.bf16.mxu0 0
    %2916 = vmatpush2.bf16.msra.mxu0 0
    %2917 = vmatprep.subr.bf16.mxu0 0
    %2918 = vmatpush2.bf16.msra.mxu0 0
    %2919 = vmatprep.subr.bf16.mxu0 0
    %2920 = vmatpush2.bf16.msra.mxu0 0
    %2921 = vmatprep.subr.bf16.mxu0 0
    %2922 = vmatpush2.bf16.msra.mxu0 0
    %2923 = vmatprep.subr.bf16.mxu0 0
    %2924 = vmatpush2.bf16.msra.mxu0 0
    %2925 = vmatprep.subr.bf16.mxu0 0
    %2926 = vmatpush2.bf16.msra.mxu0 0
    %2927 = vmatprep.subr.bf16.mxu0 0
    %2928 = vmatpush2.bf16.msra.mxu0 0
    %2929 = vmatprep.subr.bf16.mxu0 0
    %2930 = vmatpush2.bf16.msra.mxu0 0
    %2931 = vmatprep.mubr.bf16.mxu0 0
    %2932 = vmatmul.mubr.bf16.gmra.mxu0 %v1348
    %v2933 = vpop.f32.mrf.mxu0
    %v2934 = vadd.f32 0.0, %v2933
    %v2935 = vpop.f32.mrf.mxu0
    %v2936 = vadd.f32 0.0, %v2935
    %v2937 = vpop.f32.mrf.mxu0
    %v2938 = vadd.f32 0.0, %v2937
    %v2939 = vpop.f32.mrf.mxu0
    %v2940 = vadd.f32 0.0, %v2939
    %2941 = vmatprep.mubr.bf16.mxu0 0
    %2942 = vmatmul.mubr.bf16.gmra.mxu0 %v1351
    %v2943 = vpop.f32.mrf.mxu0
    %v2944 = vadd.f32 0.0, %v2943
    %v2945 = vpop.f32.mrf.mxu0
    %v2946 = vadd.f32 0.0, %v2945
    %v2947 = vpop.f32.mrf.mxu0
    %v2948 = vadd.f32 0.0, %v2947
    %v2949 = vpop.f32.mrf.mxu0
    %v2950 = vadd.f32 0.0, %v2949
    %2951 = vdwg.mxu0
    %v2952 = vadd.f32 %v2877, %v2934
    %v2953 = vadd.f32 %v2878, %v2936
    %v2954 = vadd.f32 %v2879, %v2938
    %v2955 = vadd.f32 %v2880, %v2940
    %v2956 = vadd.f32 %v2881, %v2944
    %v2957 = vadd.f32 %v2882, %v2946
    %v2958 = vadd.f32 %v2883, %v2948
    %v2959 = vadd.f32 %v2884, %v2950
    %2960 = vrot.lane.b32.xlu0 %v2590, 111
    %v2961 = vpop.permute.xlu0 %2960
    %2962 = vrot.lane.b32.xlu0 %v2594, 111
    %v2963 = vpop.permute.xlu0 %2962
    %2964 = vrot.lane.b32.xlu0 %v2592, 111
    %v2965 = vpop.permute.xlu0 %2964
    %2966 = vrot.lane.b32.xlu0 %v2596, 111
    %v2967 = vpop.permute.xlu0 %2966
    %v2968 = vsel %vm1437, %v2961, %v2963
    %v2969 = vsel %vm1437, %v2965, %v2967
    %2974 = vmatprep.subr.bf16.mxu0 0
    %2975 = vmatpush1.bf16.msra.mxu0 0
    %2976 = vmatprep.subr.bf16.mxu0 0
    %2977 = vmatpush1.bf16.msra.mxu0 0
    %2978 = vmatprep.subr.bf16.mxu0 0
    %2979 = vmatpush1.bf16.msra.mxu0 0
    %2980 = vmatprep.subr.bf16.mxu0 0
    %2981 = vmatpush1.bf16.msra.mxu0 0
    %2982 = vmatprep.subr.bf16.mxu0 0
    %2983 = vmatpush1.bf16.msra.mxu0 0
    %2984 = vmatprep.subr.bf16.mxu0 0
    %2985 = vmatpush1.bf16.msra.mxu0 0
    %2986 = vmatprep.subr.bf16.mxu0 %v2967
    %2987 = vmatpush1.bf16.msra.mxu0 %v2969
    %2988 = vmatprep.subr.bf16.mxu0 %v2963
    %2989 = vmatpush1.bf16.msra.mxu0 %v2968
    %2990 = vmatprep.subr.bf16.mxu0 0
    %2991 = vmatpush2.bf16.msra.mxu0 0
    %2992 = vmatprep.subr.bf16.mxu0 0
    %2993 = vmatpush2.bf16.msra.mxu0 0
    %2994 = vmatprep.subr.bf16.mxu0 0
    %2995 = vmatpush2.bf16.msra.mxu0 0
    %2996 = vmatprep.subr.bf16.mxu0 0
    %2997 = vmatpush2.bf16.msra.mxu0 0
    %2998 = vmatprep.subr.bf16.mxu0 0
    %2999 = vmatpush2.bf16.msra.mxu0 0
    %3000 = vmatprep.subr.bf16.mxu0 0
    %3001 = vmatpush2.bf16.msra.mxu0 0
    %3002 = vmatprep.subr.bf16.mxu0 0
    %3003 = vmatpush2.bf16.msra.mxu0 0
    %3004 = vmatprep.subr.bf16.mxu0 0
    %3005 = vmatpush2.bf16.msra.mxu0 0
    %3006 = vmatprep.mubr.bf16.mxu0 0
    %3007 = vmatmul.mubr.bf16.gmra.mxu0 %v1445
    %v3008 = vpop.f32.mrf.mxu0
    %v3009 = vadd.f32 0.0, %v3008
    %v3010 = vpop.f32.mrf.mxu0
    %v3011 = vadd.f32 0.0, %v3010
    %v3012 = vpop.f32.mrf.mxu0
    %v3013 = vadd.f32 0.0, %v3012
    %v3014 = vpop.f32.mrf.mxu0
    %v3015 = vadd.f32 0.0, %v3014
    %3016 = vmatprep.mubr.bf16.mxu0 0
    %3017 = vmatmul.mubr.bf16.gmra.mxu0 %v1448
    %v3018 = vpop.f32.mrf.mxu0
    %v3019 = vadd.f32 0.0, %v3018
    %v3020 = vpop.f32.mrf.mxu0
    %v3021 = vadd.f32 0.0, %v3020
    %v3022 = vpop.f32.mrf.mxu0
    %v3023 = vadd.f32 0.0, %v3022
    %v3024 = vpop.f32.mrf.mxu0
    %v3025 = vadd.f32 0.0, %v3024
    %3026 = vdwg.mxu0
    %v3027 = vadd.f32 %v2952, %v3009
    %v3028 = vadd.f32 %v2953, %v3011
    %v3029 = vadd.f32 %v2954, %v3013
    %v3030 = vadd.f32 %v2955, %v3015
    %v3031 = vadd.f32 %v2956, %v3019
    %v3032 = vadd.f32 %v2957, %v3021
    %v3033 = vadd.f32 %v2958, %v3023
    %v3034 = vadd.f32 %v2959, %v3025
    %3035 = vrot.lane.b32.xlu0 %v2590, 101
    %v3036 = vpop.permute.xlu0 %3035
    %3037 = vrot.lane.b32.xlu0 %v2594, 101
    %v3038 = vpop.permute.xlu0 %3037
    %3039 = vrot.lane.b32.xlu0 %v2592, 101
    %v3040 = vpop.permute.xlu0 %3039
    %3041 = vrot.lane.b32.xlu0 %v2596, 101
    %v3042 = vpop.permute.xlu0 %3041
    %v3043 = vsel %vm1534, %v3036, %v3038
    %v3044 = vsel %vm1534, %v3040, %v3042
    %3049 = vmatprep.subr.bf16.mxu0 0
    %3050 = vmatpush1.bf16.msra.mxu0 0
    %3051 = vmatprep.subr.bf16.mxu0 0
    %3052 = vmatpush1.bf16.msra.mxu0 0
    %3053 = vmatprep.subr.bf16.mxu0 0
    %3054 = vmatpush1.bf16.msra.mxu0 0
    %3055 = vmatprep.subr.bf16.mxu0 0
    %3056 = vmatpush1.bf16.msra.mxu0 0
    %3057 = vmatprep.subr.bf16.mxu0 0
    %3058 = vmatpush1.bf16.msra.mxu0 0
    %3059 = vmatprep.subr.bf16.mxu0 0
    %3060 = vmatpush1.bf16.msra.mxu0 0
    %3061 = vmatprep.subr.bf16.mxu0 %v3042
    %3062 = vmatpush1.bf16.msra.mxu0 %v3044
    %3063 = vmatprep.subr.bf16.mxu0 %v3038
    %3064 = vmatpush1.bf16.msra.mxu0 %v3043
    %3065 = vmatprep.subr.bf16.mxu0 0
    %3066 = vmatpush2.bf16.msra.mxu0 0
    %3067 = vmatprep.subr.bf16.mxu0 0
    %3068 = vmatpush2.bf16.msra.mxu0 0
    %3069 = vmatprep.subr.bf16.mxu0 0
    %3070 = vmatpush2.bf16.msra.mxu0 0
    %3071 = vmatprep.subr.bf16.mxu0 0
    %3072 = vmatpush2.bf16.msra.mxu0 0
    %3073 = vmatprep.subr.bf16.mxu0 0
    %3074 = vmatpush2.bf16.msra.mxu0 0
    %3075 = vmatprep.subr.bf16.mxu0 0
    %3076 = vmatpush2.bf16.msra.mxu0 0
    %3077 = vmatprep.subr.bf16.mxu0 0
    %3078 = vmatpush2.bf16.msra.mxu0 0
    %3079 = vmatprep.subr.bf16.mxu0 0
    %3080 = vmatpush2.bf16.msra.mxu0 0
    %3081 = vmatprep.mubr.bf16.mxu0 0
    %3082 = vmatmul.mubr.bf16.gmra.mxu0 %v1542
    %v3083 = vpop.f32.mrf.mxu0
    %v3084 = vadd.f32 0.0, %v3083
    %v3085 = vpop.f32.mrf.mxu0
    %v3086 = vadd.f32 0.0, %v3085
    %v3087 = vpop.f32.mrf.mxu0
    %v3088 = vadd.f32 0.0, %v3087
    %v3089 = vpop.f32.mrf.mxu0
    %v3090 = vadd.f32 0.0, %v3089
    %3091 = vmatprep.mubr.bf16.mxu0 0
    %3092 = vmatmul.mubr.bf16.gmra.mxu0 %v1545
    %v3093 = vpop.f32.mrf.mxu0
    %v3094 = vadd.f32 0.0, %v3093
    %v3095 = vpop.f32.mrf.mxu0
    %v3096 = vadd.f32 0.0, %v3095
    %v3097 = vpop.f32.mrf.mxu0
    %v3098 = vadd.f32 0.0, %v3097
    %v3099 = vpop.f32.mrf.mxu0
    %v3100 = vadd.f32 0.0, %v3099
    %3101 = vdwg.mxu0
    %v3102 = vadd.f32 %v3027, %v3084
    %v3103 = vadd.f32 %v3028, %v3086
    %v3104 = vadd.f32 %v3029, %v3088
    %v3105 = vadd.f32 %v3030, %v3090
    %v3106 = vadd.f32 %v3031, %v3094
    %v3107 = vadd.f32 %v3032, %v3096
    %v3108 = vadd.f32 %v3033, %v3098
    %v3109 = vadd.f32 %v3034, %v3100
    %3110 = vrot.lane.b32.xlu0 %v2590, 100
    %v3111 = vpop.permute.xlu0 %3110
    %3112 = vrot.lane.b32.xlu0 %v2594, 100
    %v3113 = vpop.permute.xlu0 %3112
    %3114 = vrot.lane.b32.xlu0 %v2592, 100
    %v3115 = vpop.permute.xlu0 %3114
    %3116 = vrot.lane.b32.xlu0 %v2596, 100
    %v3117 = vpop.permute.xlu0 %3116
    %v3118 = vsel %vm1631, %v3111, %v3113
    %v3119 = vsel %vm1631, %v3115, %v3117
    %3124 = vmatprep.subr.bf16.mxu0 0
    %3125 = vmatpush1.bf16.msra.mxu0 0
    %3126 = vmatprep.subr.bf16.mxu0 0
    %3127 = vmatpush1.bf16.msra.mxu0 0
    %3128 = vmatprep.subr.bf16.mxu0 0
    %3129 = vmatpush1.bf16.msra.mxu0 0
    %3130 = vmatprep.subr.bf16.mxu0 0
    %3131 = vmatpush1.bf16.msra.mxu0 0
    %3132 = vmatprep.subr.bf16.mxu0 0
    %3133 = vmatpush1.bf16.msra.mxu0 0
    %3134 = vmatprep.subr.bf16.mxu0 0
    %3135 = vmatpush1.bf16.msra.mxu0 0
    %3136 = vmatprep.subr.bf16.mxu0 %v3117
    %3137 = vmatpush1.bf16.msra.mxu0 %v3119
    %3138 = vmatprep.subr.bf16.mxu0 %v3113
    %3139 = vmatpush1.bf16.msra.mxu0 %v3118
    %3140 = vmatprep.subr.bf16.mxu0 0
    %3141 = vmatpush2.bf16.msra.mxu0 0
    %3142 = vmatprep.subr.bf16.mxu0 0
    %3143 = vmatpush2.bf16.msra.mxu0 0
    %3144 = vmatprep.subr.bf16.mxu0 0
    %3145 = vmatpush2.bf16.msra.mxu0 0
    %3146 = vmatprep.subr.bf16.mxu0 0
    %3147 = vmatpush2.bf16.msra.mxu0 0
    %3148 = vmatprep.subr.bf16.mxu0 0
    %3149 = vmatpush2.bf16.msra.mxu0 0
    %3150 = vmatprep.subr.bf16.mxu0 0
    %3151 = vmatpush2.bf16.msra.mxu0 0
    %3152 = vmatprep.subr.bf16.mxu0 0
    %3153 = vmatpush2.bf16.msra.mxu0 0
    %3154 = vmatprep.subr.bf16.mxu0 0
    %3155 = vmatpush2.bf16.msra.mxu0 0
    %3156 = vmatprep.mubr.bf16.mxu0 0
    %3157 = vmatmul.mubr.bf16.gmra.mxu0 %v1639
    %v3158 = vpop.f32.mrf.mxu0
    %v3159 = vadd.f32 0.0, %v3158
    %v3160 = vpop.f32.mrf.mxu0
    %v3161 = vadd.f32 0.0, %v3160
    %v3162 = vpop.f32.mrf.mxu0
    %v3163 = vadd.f32 0.0, %v3162
    %v3164 = vpop.f32.mrf.mxu0
    %v3165 = vadd.f32 0.0, %v3164
    %3166 = vmatprep.mubr.bf16.mxu0 0
    %3167 = vmatmul.mubr.bf16.gmra.mxu0 %v1642
    %v3168 = vpop.f32.mrf.mxu0
    %v3169 = vadd.f32 0.0, %v3168
    %v3170 = vpop.f32.mrf.mxu0
    %v3171 = vadd.f32 0.0, %v3170
    %v3172 = vpop.f32.mrf.mxu0
    %v3173 = vadd.f32 0.0, %v3172
    %v3174 = vpop.f32.mrf.mxu0
    %v3175 = vadd.f32 0.0, %v3174
    %3176 = vdwg.mxu0
    %v3177 = vadd.f32 %v3102, %v3159
    %v3178 = vadd.f32 %v3103, %v3161
    %v3179 = vadd.f32 %v3104, %v3163
    %v3180 = vadd.f32 %v3105, %v3165
    %v3181 = vadd.f32 %v3106, %v3169
    %v3182 = vadd.f32 %v3107, %v3171
    %v3183 = vadd.f32 %v3108, %v3173
    %v3184 = vadd.f32 %v3109, %v3175
    %3185 = vrot.lane.b32.xlu0 %v2590, 99
    %v3186 = vpop.permute.xlu0 %3185
    %3187 = vrot.lane.b32.xlu0 %v2594, 99
    %v3188 = vpop.permute.xlu0 %3187
    %3189 = vrot.lane.b32.xlu0 %v2592, 99
    %v3190 = vpop.permute.xlu0 %3189
    %3191 = vrot.lane.b32.xlu0 %v2596, 99
    %v3192 = vpop.permute.xlu0 %3191
    %v3193 = vsel %vm1728, %v3186, %v3188
    %v3194 = vsel %vm1728, %v3190, %v3192
    %3199 = vmatprep.subr.bf16.mxu0 0
    %3200 = vmatpush1.bf16.msra.mxu0 0
    %3201 = vmatprep.subr.bf16.mxu0 0
    %3202 = vmatpush1.bf16.msra.mxu0 0
    %3203 = vmatprep.subr.bf16.mxu0 0
    %3204 = vmatpush1.bf16.msra.mxu0 0
    %3205 = vmatprep.subr.bf16.mxu0 0
    %3206 = vmatpush1.bf16.msra.mxu0 0
    %3207 = vmatprep.subr.bf16.mxu0 0
    %3208 = vmatpush1.bf16.msra.mxu0 0
    %3209 = vmatprep.subr.bf16.mxu0 0
    %3210 = vmatpush1.bf16.msra.mxu0 0
    %3211 = vmatprep.subr.bf16.mxu0 %v3192
    %3212 = vmatpush1.bf16.msra.mxu0 %v3194
    %3213 = vmatprep.subr.bf16.mxu0 %v3188
    %3214 = vmatpush1.bf16.msra.mxu0 %v3193
    %3215 = vmatprep.subr.bf16.mxu0 0
    %3216 = vmatpush2.bf16.msra.mxu0 0
    %3217 = vmatprep.subr.bf16.mxu0 0
    %3218 = vmatpush2.bf16.msra.mxu0 0
    %3219 = vmatprep.subr.bf16.mxu0 0
    %3220 = vmatpush2.bf16.msra.mxu0 0
    %3221 = vmatprep.subr.bf16.mxu0 0
    %3222 = vmatpush2.bf16.msra.mxu0 0
    %3223 = vmatprep.subr.bf16.mxu0 0
    %3224 = vmatpush2.bf16.msra.mxu0 0
    %3225 = vmatprep.subr.bf16.mxu0 0
    %3226 = vmatpush2.bf16.msra.mxu0 0
    %3227 = vmatprep.subr.bf16.mxu0 0
    %3228 = vmatpush2.bf16.msra.mxu0 0
    %3229 = vmatprep.subr.bf16.mxu0 0
    %3230 = vmatpush2.bf16.msra.mxu0 0
    %3231 = vmatprep.mubr.bf16.mxu0 0
    %3232 = vmatmul.mubr.bf16.gmra.mxu0 %v1736
    %v3233 = vpop.f32.mrf.mxu0
    %v3234 = vadd.f32 0.0, %v3233
    %v3235 = vpop.f32.mrf.mxu0
    %v3236 = vadd.f32 0.0, %v3235
    %v3237 = vpop.f32.mrf.mxu0
    %v3238 = vadd.f32 0.0, %v3237
    %v3239 = vpop.f32.mrf.mxu0
    %v3240 = vadd.f32 0.0, %v3239
    %3241 = vmatprep.mubr.bf16.mxu0 0
    %3242 = vmatmul.mubr.bf16.gmra.mxu0 %v1739
    %v3243 = vpop.f32.mrf.mxu0
    %v3244 = vadd.f32 0.0, %v3243
    %v3245 = vpop.f32.mrf.mxu0
    %v3246 = vadd.f32 0.0, %v3245
    %v3247 = vpop.f32.mrf.mxu0
    %v3248 = vadd.f32 0.0, %v3247
    %v3249 = vpop.f32.mrf.mxu0
    %v3250 = vadd.f32 0.0, %v3249
    %3251 = vdwg.mxu0
    %v3252 = vadd.f32 %v3177, %v3234
    %v3253 = vadd.f32 %v3178, %v3236
    %v3254 = vadd.f32 %v3179, %v3238
    %v3255 = vadd.f32 %v3180, %v3240
    %v3256 = vadd.f32 %v3181, %v3244
    %v3257 = vadd.f32 %v3182, %v3246
    %v3258 = vadd.f32 %v3183, %v3248
    %v3259 = vadd.f32 %v3184, %v3250
    %v3260 = vadd.f32 %v3252, %v1804
    %v3261 = vadd.f32 %v3253, %v1804
    %v3262 = vadd.f32 %v3254, %v1808
    %v3263 = vadd.f32 %v3255, %v1808
    %v3264 = vadd.f32 %v3256, %v1812
    %v3265 = vadd.f32 %v3257, %v1812
    %v3266 = vadd.f32 %v3258, %v1816
    %v3267 = vadd.f32 %v3259, %v1816
    %v3268 = vmax.f32 %v3260, 0.0
    %v3269 = vmax.f32 %v3261, 0.0
    %v3270 = vmax.f32 %v3262, 0.0
    %v3271 = vmax.f32 %v3263, 0.0
    %v3272 = vmax.f32 %v3264, 0.0
    %v3273 = vmax.f32 %v3265, 0.0
    %v3274 = vmax.f32 %v3266, 0.0
    %v3275 = vmax.f32 %v3267, 0.0
    %v3276 = vmul.f32 %v3268, %v296
    %v3277 = vmul.f32 %v3269, %v300
    %v3278 = vmul.f32 %v3270, %v296
    %v3279 = vmul.f32 %v3271, %v300
    %v3280 = vmul.f32 %v3272, %v296
    %v3281 = vmul.f32 %v3273, %v300
    %v3282 = vmul.f32 %v3274, %v296
    %v3283 = vmul.f32 %v3275, %v300
    %v3284 = vpack.c.bf16 %v3278, %v3276
    %v3285 = vpack.c.bf16 %v3279, %v3277
    %v3286 = vpack.c.bf16 %v3282, %v3280
    %v3287 = vpack.c.bf16 %v3283, %v3281
    %v3288 = vld [vmem:[%s7] sm:$0xf]
    %v3289 = vld [vmem:[%s7 + $0x4] sm:$0xf]
    %v3290 = vld [vmem:[%s7 + $0x8] sm:$0xf]
    %v3291 = vld [vmem:[%s7 + $0xc] sm:$0xf]
    %v3292 = vld [vmem:[%s7 + $0x10] sm:$0xf]
    %v3293 = vld [vmem:[%s7 + $0x14] sm:$0xf]
    %v3294 = vld [vmem:[%s7 + $0x18] sm:$0xf]
    %v3295 = vld [vmem:[%s7 + $0x1c] sm:$0xf]
    %v3296 = vld [vmem:[%s7 + $0x20] sm:$0xf]
    %v3297 = vld [vmem:[%s7 + $0x24] sm:$0xf]
    %v3298 = vld [vmem:[%s7 + $0x28] sm:$0xf]
    %v3299 = vld [vmem:[%s7 + $0x2c] sm:$0xf]
    %v3300 = vld [vmem:[%s7 + $0x30] sm:$0xf]
    %v3301 = vld [vmem:[%s7 + $0x34] sm:$0xf]
    %v3302 = vld [vmem:[%s7 + $0x38] sm:$0xf]
    %v3303 = vld [vmem:[%s7 + $0x3c] sm:$0xf]
    %v3304 = vld [vmem:[%s7 + $0x40] sm:$0xf]
    %v3305 = vld [vmem:[%s7 + $0x44] sm:$0xf]
    %v3324 = vunpack.c.l.b16 %v3288
    %v3325 = vunpack.c.l.b16 %v3289
    %v3326 = vunpack.c.l.b16 %v3290
    %v3327 = vunpack.c.l.b16 %v3291
    %v3328 = vunpack.c.l.b16 %v3292
    %v3329 = vunpack.c.l.b16 %v3293
    %v3330 = vunpack.c.l.b16 %v3294
    %v3331 = vunpack.c.l.b16 %v3295
    %v3332 = vunpack.c.l.b16 %v3296
    %v3333 = vunpack.c.l.b16 %v3297
    %v3334 = vunpack.c.l.b16 %v3298
    %v3335 = vunpack.c.l.b16 %v3299
    %v3336 = vunpack.c.l.b16 %v3300
    %v3337 = vunpack.c.l.b16 %v3301
    %v3338 = vunpack.c.l.b16 %v3302
    %v3339 = vunpack.c.l.b16 %v3303
    %v3340 = vunpack.c.l.b16 %v3304
    %v3341 = vunpack.c.l.b16 %v3305
    %v3342 = vpack.c.b16 %v3325, %v3324
    %v3343 = vpack.c.b16 %v3327, %v3326
    %v3344 = vpack.c.b16 %v3329, %v3328
    %v3345 = vpack.c.b16 %v3331, %v3330
    %v3346 = vpack.c.b16 %v3333, %v3332
    %v3347 = vpack.c.b16 %v3335, %v3334
    %v3348 = vpack.c.b16 %v3337, %v3336
    %v3349 = vpack.c.b16 %v3339, %v3338
    %v3350 = vpack.c.b16 %v3341, %v3340
    %v3361 = vsel %vm485, %v3285, 0
    %v3364 = vsel %vm485, %v3287, 0
    %3366 = vmatprep.subr.bf16.mxu0 0
    %3367 = vmatpush1.bf16.msra.mxu0 %v3349
    %3368 = vmatprep.subr.bf16.mxu0 0
    %3369 = vmatpush1.bf16.msra.mxu0 %v3348
    %3370 = vmatprep.subr.bf16.mxu0 0
    %3371 = vmatpush1.bf16.msra.mxu0 %v3347
    %3372 = vmatprep.subr.bf16.mxu0 0
    %3373 = vmatpush1.bf16.msra.mxu0 %v3346
    %3374 = vmatprep.subr.bf16.mxu0 0
    %3375 = vmatpush1.bf16.msra.mxu0 %v3345
    %3376 = vmatprep.subr.bf16.mxu0 0
    %3377 = vmatpush1.bf16.msra.mxu0 %v3344
    %3378 = vmatprep.subr.bf16.mxu0 0
    %3379 = vmatpush1.bf16.msra.mxu0 %v3343
    %3380 = vmatprep.subr.bf16.mxu0 0
    %3381 = vmatpush1.bf16.msra.mxu0 %v3342
    %3382 = vmatprep.subr.bf16.mxu0 0
    %3383 = vmatpush2.bf16.msra.mxu0 0
    %3384 = vmatprep.subr.bf16.mxu0 0
    %3385 = vmatpush2.bf16.msra.mxu0 0
    %3386 = vmatprep.subr.bf16.mxu0 0
    %3387 = vmatpush2.bf16.msra.mxu0 0
    %3388 = vmatprep.subr.bf16.mxu0 0
    %3389 = vmatpush2.bf16.msra.mxu0 0
    %3390 = vmatprep.subr.bf16.mxu0 0
    %3391 = vmatpush2.bf16.msra.mxu0 0
    %3392 = vmatprep.subr.bf16.mxu0 0
    %3393 = vmatpush2.bf16.msra.mxu0 0
    %3394 = vmatprep.subr.bf16.mxu0 0
    %3395 = vmatpush2.bf16.msra.mxu0 0
    %3396 = vmatprep.subr.bf16.mxu0 0
    %3397 = vmatpush2.bf16.msra.mxu0 %v3350
    %3398 = vmatprep.mubr.bf16.mxu0 %v3361
    %3399 = vmatmul.mubr.bf16.gmra.mxu0 %v3284
    %v3400 = vpop.f32.mrf.mxu0
    %v3401 = vadd.f32 0.0, %v3400
    %v3402 = vpop.f32.mrf.mxu0
    %v3403 = vpop.f32.mrf.mxu0
    %v3404 = vadd.f32 0.0, %v3403
    %v3405 = vpop.f32.mrf.mxu0
    %3406 = vmatprep.mubr.bf16.mxu0 %v3364
    %3407 = vmatmul.mubr.bf16.gmra.mxu0 %v3286
    %v3408 = vpop.f32.mrf.mxu0
    %v3409 = vadd.f32 0.0, %v3408
    %v3410 = vpop.f32.mrf.mxu0
    %v3411 = vpop.f32.mrf.mxu0
    %v3412 = vadd.f32 0.0, %v3411
    %v3413 = vpop.f32.mrf.mxu0
    %3414 = vdwg.mxu0
    %s3415 = scalar_lea.vmem %s7, 72
    %v3416 = vld [vmem:[%s3415] sm:$0xf]
    %v3417 = vld [vmem:[%s3415 + $0x4] sm:$0xf]
    %v3418 = vld [vmem:[%s3415 + $0x8] sm:$0xf]
    %v3419 = vld [vmem:[%s3415 + $0xc] sm:$0xf]
    %v3420 = vld [vmem:[%s3415 + $0x10] sm:$0xf]
    %v3421 = vld [vmem:[%s3415 + $0x14] sm:$0xf]
    %v3422 = vld [vmem:[%s3415 + $0x18] sm:$0xf]
    %v3423 = vld [vmem:[%s3415 + $0x1c] sm:$0xf]
    %v3424 = vld [vmem:[%s3415 + $0x20] sm:$0xf]
    %v3425 = vld [vmem:[%s3415 + $0x24] sm:$0xf]
    %v3426 = vld [vmem:[%s3415 + $0x28] sm:$0xf]
    %v3427 = vld [vmem:[%s3415 + $0x2c] sm:$0xf]
    %v3428 = vld [vmem:[%s3415 + $0x30] sm:$0xf]
    %v3429 = vld [vmem:[%s3415 + $0x34] sm:$0xf]
    %v3430 = vld [vmem:[%s3415 + $0x38] sm:$0xf]
    %v3431 = vld [vmem:[%s3415 + $0x3c] sm:$0xf]
    %v3432 = vld [vmem:[%s3415 + $0x40] sm:$0xf]
    %v3433 = vld [vmem:[%s3415 + $0x44] sm:$0xf]
    %v3452 = vunpack.c.l.b16 %v3416
    %v3453 = vunpack.c.l.b16 %v3417
    %v3454 = vunpack.c.l.b16 %v3418
    %v3455 = vunpack.c.l.b16 %v3419
    %v3456 = vunpack.c.l.b16 %v3420
    %v3457 = vunpack.c.l.b16 %v3421
    %v3458 = vunpack.c.l.b16 %v3422
    %v3459 = vunpack.c.l.b16 %v3423
    %v3460 = vunpack.c.l.b16 %v3424
    %v3461 = vunpack.c.l.b16 %v3425
    %v3462 = vunpack.c.l.b16 %v3426
    %v3463 = vunpack.c.l.b16 %v3427
    %v3464 = vunpack.c.l.b16 %v3428
    %v3465 = vunpack.c.l.b16 %v3429
    %v3466 = vunpack.c.l.b16 %v3430
    %v3467 = vunpack.c.l.b16 %v3431
    %v3468 = vunpack.c.l.b16 %v3432
    %v3469 = vunpack.c.l.b16 %v3433
    %v3470 = vpack.c.b16 %v3453, %v3452
    %v3471 = vpack.c.b16 %v3455, %v3454
    %v3472 = vpack.c.b16 %v3457, %v3456
    %v3473 = vpack.c.b16 %v3459, %v3458
    %v3474 = vpack.c.b16 %v3461, %v3460
    %v3475 = vpack.c.b16 %v3463, %v3462
    %v3476 = vpack.c.b16 %v3465, %v3464
    %v3477 = vpack.c.b16 %v3467, %v3466
    %v3478 = vpack.c.b16 %v3469, %v3468
    %3488 = vmatprep.subr.bf16.mxu0 0
    %3489 = vmatpush1.bf16.msra.mxu0 %v3477
    %3490 = vmatprep.subr.bf16.mxu0 0
    %3491 = vmatpush1.bf16.msra.mxu0 %v3476
    %3492 = vmatprep.subr.bf16.mxu0 0
    %3493 = vmatpush1.bf16.msra.mxu0 %v3475
    %3494 = vmatprep.subr.bf16.mxu0 0
    %3495 = vmatpush1.bf16.msra.mxu0 %v3474
    %3496 = vmatprep.subr.bf16.mxu0 0
    %3497 = vmatpush1.bf16.msra.mxu0 %v3473
    %3498 = vmatprep.subr.bf16.mxu0 0
    %3499 = vmatpush1.bf16.msra.mxu0 %v3472
    %3500 = vmatprep.subr.bf16.mxu0 0
    %3501 = vmatpush1.bf16.msra.mxu0 %v3471
    %3502 = vmatprep.subr.bf16.mxu0 0
    %3503 = vmatpush1.bf16.msra.mxu0 %v3470
    %3504 = vmatprep.subr.bf16.mxu0 0
    %3505 = vmatpush2.bf16.msra.mxu0 0
    %3506 = vmatprep.subr.bf16.mxu0 0
    %3507 = vmatpush2.bf16.msra.mxu0 0
    %3508 = vmatprep.subr.bf16.mxu0 0
    %3509 = vmatpush2.bf16.msra.mxu0 0
    %3510 = vmatprep.subr.bf16.mxu0 0
    %3511 = vmatpush2.bf16.msra.mxu0 0
    %3512 = vmatprep.subr.bf16.mxu0 0
    %3513 = vmatpush2.bf16.msra.mxu0 0
    %3514 = vmatprep.subr.bf16.mxu0 0
    %3515 = vmatpush2.bf16.msra.mxu0 0
    %3516 = vmatprep.subr.bf16.mxu0 0
    %3517 = vmatpush2.bf16.msra.mxu0 0
    %3518 = vmatprep.subr.bf16.mxu0 0
    %3519 = vmatpush2.bf16.msra.mxu0 %v3478
    %3520 = vmatprep.mubr.bf16.mxu0 %v3361
    %3521 = vmatmul.mubr.bf16.gmra.mxu0 %v3284
    %v3522 = vpop.f32.mrf.mxu0
    %v3523 = vadd.f32 0.0, %v3522
    %v3524 = vpop.f32.mrf.mxu0
    %v3525 = vpop.f32.mrf.mxu0
    %v3526 = vadd.f32 0.0, %v3525
    %v3527 = vpop.f32.mrf.mxu0
    %3528 = vmatprep.mubr.bf16.mxu0 %v3364
    %3529 = vmatmul.mubr.bf16.gmra.mxu0 %v3286
    %v3530 = vpop.f32.mrf.mxu0
    %v3531 = vadd.f32 0.0, %v3530
    %v3532 = vpop.f32.mrf.mxu0
    %v3533 = vpop.f32.mrf.mxu0
    %v3534 = vadd.f32 0.0, %v3533
    %v3535 = vpop.f32.mrf.mxu0
    %3536 = vdwg.mxu0
    %v3537 = vmax.f32 %v3401, %v3523
    %v3538 = vmax.f32 %v3404, %v3526
    %v3539 = vmax.f32 %v3409, %v3531
    %v3540 = vmax.f32 %v3412, %v3534
    %s3541 = scalar_lea.vmem %s7, 144
    %v3542 = vld [vmem:[%s3541] sm:$0xf]
    %v3543 = vld [vmem:[%s3541 + $0x4] sm:$0xf]
    %v3544 = vld [vmem:[%s3541 + $0x8] sm:$0xf]
    %v3545 = vld [vmem:[%s3541 + $0xc] sm:$0xf]
    %v3546 = vld [vmem:[%s3541 + $0x10] sm:$0xf]
    %v3547 = vld [vmem:[%s3541 + $0x14] sm:$0xf]
    %v3548 = vld [vmem:[%s3541 + $0x18] sm:$0xf]
    %v3549 = vld [vmem:[%s3541 + $0x1c] sm:$0xf]
    %v3550 = vld [vmem:[%s3541 + $0x20] sm:$0xf]
    %v3551 = vld [vmem:[%s3541 + $0x24] sm:$0xf]
    %v3552 = vld [vmem:[%s3541 + $0x28] sm:$0xf]
    %v3553 = vld [vmem:[%s3541 + $0x2c] sm:$0xf]
    %v3554 = vld [vmem:[%s3541 + $0x30] sm:$0xf]
    %v3555 = vld [vmem:[%s3541 + $0x34] sm:$0xf]
    %v3556 = vld [vmem:[%s3541 + $0x38] sm:$0xf]
    %v3557 = vld [vmem:[%s3541 + $0x3c] sm:$0xf]
    %v3558 = vld [vmem:[%s3541 + $0x40] sm:$0xf]
    %v3559 = vld [vmem:[%s3541 + $0x44] sm:$0xf]
    %v3578 = vunpack.c.l.b16 %v3542
    %v3579 = vunpack.c.l.b16 %v3543
    %v3580 = vunpack.c.l.b16 %v3544
    %v3581 = vunpack.c.l.b16 %v3545
    %v3582 = vunpack.c.l.b16 %v3546
    %v3583 = vunpack.c.l.b16 %v3547
    %v3584 = vunpack.c.l.b16 %v3548
    %v3585 = vunpack.c.l.b16 %v3549
    %v3586 = vunpack.c.l.b16 %v3550
    %v3587 = vunpack.c.l.b16 %v3551
    %v3588 = vunpack.c.l.b16 %v3552
    %v3589 = vunpack.c.l.b16 %v3553
    %v3590 = vunpack.c.l.b16 %v3554
    %v3591 = vunpack.c.l.b16 %v3555
    %v3592 = vunpack.c.l.b16 %v3556
    %v3593 = vunpack.c.l.b16 %v3557
    %v3594 = vunpack.c.l.b16 %v3558
    %v3595 = vunpack.c.l.b16 %v3559
    %v3596 = vpack.c.b16 %v3579, %v3578
    %v3597 = vpack.c.b16 %v3581, %v3580
    %v3598 = vpack.c.b16 %v3583, %v3582
    %v3599 = vpack.c.b16 %v3585, %v3584
    %v3600 = vpack.c.b16 %v3587, %v3586
    %v3601 = vpack.c.b16 %v3589, %v3588
    %v3602 = vpack.c.b16 %v3591, %v3590
    %v3603 = vpack.c.b16 %v3593, %v3592
    %v3604 = vpack.c.b16 %v3595, %v3594
    %3614 = vmatprep.subr.bf16.mxu0 0
    %3615 = vmatpush1.bf16.msra.mxu0 %v3603
    %3616 = vmatprep.subr.bf16.mxu0 0
    %3617 = vmatpush1.bf16.msra.mxu0 %v3602
    %3618 = vmatprep.subr.bf16.mxu0 0
    %3619 = vmatpush1.bf16.msra.mxu0 %v3601
    %3620 = vmatprep.subr.bf16.mxu0 0
    %3621 = vmatpush1.bf16.msra.mxu0 %v3600
    %3622 = vmatprep.subr.bf16.mxu0 0
    %3623 = vmatpush1.bf16.msra.mxu0 %v3599
    %3624 = vmatprep.subr.bf16.mxu0 0
    %3625 = vmatpush1.bf16.msra.mxu0 %v3598
    %3626 = vmatprep.subr.bf16.mxu0 0
    %3627 = vmatpush1.bf16.msra.mxu0 %v3597
    %3628 = vmatprep.subr.bf16.mxu0 0
    %3629 = vmatpush1.bf16.msra.mxu0 %v3596
    %3630 = vmatprep.subr.bf16.mxu0 0
    %3631 = vmatpush2.bf16.msra.mxu0 0
    %3632 = vmatprep.subr.bf16.mxu0 0
    %3633 = vmatpush2.bf16.msra.mxu0 0
    %3634 = vmatprep.subr.bf16.mxu0 0
    %3635 = vmatpush2.bf16.msra.mxu0 0
    %3636 = vmatprep.subr.bf16.mxu0 0
    %3637 = vmatpush2.bf16.msra.mxu0 0
    %3638 = vmatprep.subr.bf16.mxu0 0
    %3639 = vmatpush2.bf16.msra.mxu0 0
    %3640 = vmatprep.subr.bf16.mxu0 0
    %3641 = vmatpush2.bf16.msra.mxu0 0
    %3642 = vmatprep.subr.bf16.mxu0 0
    %3643 = vmatpush2.bf16.msra.mxu0 0
    %3644 = vmatprep.subr.bf16.mxu0 0
    %3645 = vmatpush2.bf16.msra.mxu0 %v3604
    %3646 = vmatprep.mubr.bf16.mxu0 %v3361
    %3647 = vmatmul.mubr.bf16.gmra.mxu0 %v3284
    %v3648 = vpop.f32.mrf.mxu0
    %v3649 = vadd.f32 0.0, %v3648
    %v3650 = vpop.f32.mrf.mxu0
    %v3651 = vpop.f32.mrf.mxu0
    %v3652 = vadd.f32 0.0, %v3651
    %v3653 = vpop.f32.mrf.mxu0
    %3654 = vmatprep.mubr.bf16.mxu0 %v3364
    %3655 = vmatmul.mubr.bf16.gmra.mxu0 %v3286
    %v3656 = vpop.f32.mrf.mxu0
    %v3657 = vadd.f32 0.0, %v3656
    %v3658 = vpop.f32.mrf.mxu0
    %v3659 = vpop.f32.mrf.mxu0
    %v3660 = vadd.f32 0.0, %v3659
    %v3661 = vpop.f32.mrf.mxu0
    %3662 = vdwg.mxu0
    %v3663 = vmax.f32 %v3537, %v3649
    %v3664 = vmax.f32 %v3538, %v3652
    %v3665 = vmax.f32 %v3539, %v3657
    %v3666 = vmax.f32 %v3540, %v3660
    %s3667 = scalar_lea.vmem %s7, 216
    %v3668 = vld [vmem:[%s3667] sm:$0xf]
    %v3669 = vld [vmem:[%s3667 + $0x4] sm:$0xf]
    %v3670 = vld [vmem:[%s3667 + $0x8] sm:$0xf]
    %v3671 = vld [vmem:[%s3667 + $0xc] sm:$0xf]
    %v3672 = vld [vmem:[%s3667 + $0x10] sm:$0xf]
    %v3673 = vld [vmem:[%s3667 + $0x14] sm:$0xf]
    %v3674 = vld [vmem:[%s3667 + $0x18] sm:$0xf]
    %v3675 = vld [vmem:[%s3667 + $0x1c] sm:$0xf]
    %v3676 = vld [vmem:[%s3667 + $0x20] sm:$0xf]
    %v3677 = vld [vmem:[%s3667 + $0x24] sm:$0xf]
    %v3678 = vld [vmem:[%s3667 + $0x28] sm:$0xf]
    %v3679 = vld [vmem:[%s3667 + $0x2c] sm:$0xf]
    %v3680 = vld [vmem:[%s3667 + $0x30] sm:$0xf]
    %v3681 = vld [vmem:[%s3667 + $0x34] sm:$0xf]
    %v3682 = vld [vmem:[%s3667 + $0x38] sm:$0xf]
    %v3683 = vld [vmem:[%s3667 + $0x3c] sm:$0xf]
    %v3684 = vld [vmem:[%s3667 + $0x40] sm:$0xf]
    %v3685 = vld [vmem:[%s3667 + $0x44] sm:$0xf]
    %v3704 = vunpack.c.l.b16 %v3668
    %v3705 = vunpack.c.l.b16 %v3669
    %v3706 = vunpack.c.l.b16 %v3670
    %v3707 = vunpack.c.l.b16 %v3671
    %v3708 = vunpack.c.l.b16 %v3672
    %v3709 = vunpack.c.l.b16 %v3673
    %v3710 = vunpack.c.l.b16 %v3674
    %v3711 = vunpack.c.l.b16 %v3675
    %v3712 = vunpack.c.l.b16 %v3676
    %v3713 = vunpack.c.l.b16 %v3677
    %v3714 = vunpack.c.l.b16 %v3678
    %v3715 = vunpack.c.l.b16 %v3679
    %v3716 = vunpack.c.l.b16 %v3680
    %v3717 = vunpack.c.l.b16 %v3681
    %v3718 = vunpack.c.l.b16 %v3682
    %v3719 = vunpack.c.l.b16 %v3683
    %v3720 = vunpack.c.l.b16 %v3684
    %v3721 = vunpack.c.l.b16 %v3685
    %v3722 = vpack.c.b16 %v3705, %v3704
    %v3723 = vpack.c.b16 %v3707, %v3706
    %v3724 = vpack.c.b16 %v3709, %v3708
    %v3725 = vpack.c.b16 %v3711, %v3710
    %v3726 = vpack.c.b16 %v3713, %v3712
    %v3727 = vpack.c.b16 %v3715, %v3714
    %v3728 = vpack.c.b16 %v3717, %v3716
    %v3729 = vpack.c.b16 %v3719, %v3718
    %v3730 = vpack.c.b16 %v3721, %v3720
    %3740 = vmatprep.subr.bf16.mxu0 0
    %3741 = vmatpush1.bf16.msra.mxu0 %v3729
    %3742 = vmatprep.subr.bf16.mxu0 0
    %3743 = vmatpush1.bf16.msra.mxu0 %v3728
    %3744 = vmatprep.subr.bf16.mxu0 0
    %3745 = vmatpush1.bf16.msra.mxu0 %v3727
    %3746 = vmatprep.subr.bf16.mxu0 0
    %3747 = vmatpush1.bf16.msra.mxu0 %v3726
    %3748 = vmatprep.subr.bf16.mxu0 0
    %3749 = vmatpush1.bf16.msra.mxu0 %v3725
    %3750 = vmatprep.subr.bf16.mxu0 0
    %3751 = vmatpush1.bf16.msra.mxu0 %v3724
    %3752 = vmatprep.subr.bf16.mxu0 0
    %3753 = vmatpush1.bf16.msra.mxu0 %v3723
    %3754 = vmatprep.subr.bf16.mxu0 0
    %3755 = vmatpush1.bf16.msra.mxu0 %v3722
    %3756 = vmatprep.subr.bf16.mxu0 0
    %3757 = vmatpush2.bf16.msra.mxu0 0
    %3758 = vmatprep.subr.bf16.mxu0 0
    %3759 = vmatpush2.bf16.msra.mxu0 0
    %3760 = vmatprep.subr.bf16.mxu0 0
    %3761 = vmatpush2.bf16.msra.mxu0 0
    %3762 = vmatprep.subr.bf16.mxu0 0
    %3763 = vmatpush2.bf16.msra.mxu0 0
    %3764 = vmatprep.subr.bf16.mxu0 0
    %3765 = vmatpush2.bf16.msra.mxu0 0
    %3766 = vmatprep.subr.bf16.mxu0 0
    %3767 = vmatpush2.bf16.msra.mxu0 0
    %3768 = vmatprep.subr.bf16.mxu0 0
    %3769 = vmatpush2.bf16.msra.mxu0 0
    %3770 = vmatprep.subr.bf16.mxu0 0
    %3771 = vmatpush2.bf16.msra.mxu0 %v3730
    %3772 = vmatprep.mubr.bf16.mxu0 %v3361
    %3773 = vmatmul.mubr.bf16.gmra.mxu0 %v3284
    %v3774 = vpop.f32.mrf.mxu0
    %v3775 = vadd.f32 0.0, %v3774
    %v3776 = vpop.f32.mrf.mxu0
    %v3777 = vpop.f32.mrf.mxu0
    %v3778 = vadd.f32 0.0, %v3777
    %v3779 = vpop.f32.mrf.mxu0
    %3780 = vmatprep.mubr.bf16.mxu0 %v3364
    %3781 = vmatmul.mubr.bf16.gmra.mxu0 %v3286
    %v3782 = vpop.f32.mrf.mxu0
    %v3783 = vadd.f32 0.0, %v3782
    %v3784 = vpop.f32.mrf.mxu0
    %v3785 = vpop.f32.mrf.mxu0
    %v3786 = vadd.f32 0.0, %v3785
    %v3787 = vpop.f32.mrf.mxu0
    %3788 = vdwg.mxu0
    %v3789 = vmax.f32 %v3663, %v3775
    %v3790 = vmax.f32 %v3664, %v3778
    %v3791 = vmax.f32 %v3665, %v3783
    %v3792 = vmax.f32 %v3666, %v3786
    %v3793 = vmul.f32 %v542, %v3789
    %v3794 = vmul.f32 %v543, %v3790
    %v3795 = vmul.f32 %v544, %v3791
    %v3796 = vmul.f32 %v545, %v3792
    %v3797 = vsel %vm828, %v3793, 0.0
    %3798 = vadd.xlane.f32.xlu0 %v3797
    %v3799 = vpop.xlane.xlu0 %3798
    %v3800 = vsel %vm828, %v3794, 0.0
    %3801 = vadd.xlane.f32.xlu0 %v3800
    %v3802 = vpop.xlane.xlu0 %3801
    %v3803 = vsel %vm828, %v3795, 0.0
    %3804 = vadd.xlane.f32.xlu0 %v3803
    %v3805 = vpop.xlane.xlu0 %3804
    %v3806 = vsel %vm828, %v3796, 0.0
    %3807 = vadd.xlane.f32.xlu0 %v3806
    %v3808 = vpop.xlane.xlu0 %3807
    %v3809 = vpack.c.bf16 %v3802, %v3799
    %v3810 = vpack.c.bf16 %v3808, %v3805
    %v3811 = vmul.f32 %v607, %v3789
    %v3812 = vmul.f32 %v608, %v3790
    %v3813 = vmul.f32 %v609, %v3791
    %v3814 = vmul.f32 %v610, %v3792
    %v3815 = vsel %vm828, %v3811, 0.0
    %3816 = vadd.xlane.f32.xlu0 %v3815
    %v3817 = vpop.xlane.xlu0 %3816
    %v3818 = vsel %vm828, %v3812, 0.0
    %3819 = vadd.xlane.f32.xlu0 %v3818
    %v3820 = vpop.xlane.xlu0 %3819
    %v3821 = vsel %vm828, %v3813, 0.0
    %3822 = vadd.xlane.f32.xlu0 %v3821
    %v3823 = vpop.xlane.xlu0 %3822
    %v3824 = vsel %vm828, %v3814, 0.0
    %3825 = vadd.xlane.f32.xlu0 %v3824
    %v3826 = vpop.xlane.xlu0 %3825
    %v3827 = vpack.c.bf16 %v3820, %v3817
    %v3828 = vpack.c.bf16 %v3826, %v3823
    %v3829 = vmul.f32 %v668, %v3789
    %v3830 = vmul.f32 %v669, %v3790
    %v3831 = vmul.f32 %v670, %v3791
    %v3832 = vmul.f32 %v671, %v3792
    %v3833 = vsel %vm828, %v3829, 0.0
    %3834 = vadd.xlane.f32.xlu0 %v3833
    %v3835 = vpop.xlane.xlu0 %3834
    %v3836 = vsel %vm828, %v3830, 0.0
    %3837 = vadd.xlane.f32.xlu0 %v3836
    %v3838 = vpop.xlane.xlu0 %3837
    %v3839 = vsel %vm828, %v3831, 0.0
    %3840 = vadd.xlane.f32.xlu0 %v3839
    %v3841 = vpop.xlane.xlu0 %3840
    %v3842 = vsel %vm828, %v3832, 0.0
    %3843 = vadd.xlane.f32.xlu0 %v3842
    %v3844 = vpop.xlane.xlu0 %3843
    %v3845 = vpack.c.bf16 %v3838, %v3835
    %v3846 = vpack.c.bf16 %v3844, %v3841
    %vm3847 = vcmask 7168
    %v3850 = vsel %vm3847, %v3809, %v3827
    %v3853 = vsel %vm3847, %v3810, %v3828
    %v3855 = vsel %vm744, %v3850, %v3845
    %v3858 = vsel %vm744, %v3853, %v3846
    %3860 = vmatprep.subr.bf16.mxu0 0
    %3861 = vmatpush1.bf16.msra.mxu0 0
    %3862 = vmatprep.subr.bf16.mxu0 0
    %3863 = vmatpush1.bf16.msra.mxu0 0
    %3864 = vmatprep.subr.bf16.mxu0 0
    %3865 = vmatpush1.bf16.msra.mxu0 0
    %3866 = vmatprep.subr.bf16.mxu0 0
    %3867 = vmatpush1.bf16.msra.mxu0 0
    %3868 = vmatprep.subr.bf16.mxu0 0
    %3869 = vmatpush1.bf16.msra.mxu0 0
    %3870 = vmatprep.subr.bf16.mxu0 0
    %3871 = vmatpush1.bf16.msra.mxu0 0
    %3872 = vmatprep.subr.bf16.mxu0 0
    %3873 = vmatpush1.bf16.msra.mxu0 %v3858
    %3874 = vmatprep.subr.bf16.mxu0 0
    %3875 = vmatpush1.bf16.msra.mxu0 %v3855
    %3876 = vmatprep.subr.bf16.mxu0 0
    %3877 = vmatpush2.bf16.msra.mxu0 0
    %3878 = vmatprep.subr.bf16.mxu0 0
    %3879 = vmatpush2.bf16.msra.mxu0 0
    %3880 = vmatprep.subr.bf16.mxu0 0
    %3881 = vmatpush2.bf16.msra.mxu0 0
    %3882 = vmatprep.subr.bf16.mxu0 0
    %3883 = vmatpush2.bf16.msra.mxu0 0
    %3884 = vmatprep.subr.bf16.mxu0 0
    %3885 = vmatpush2.bf16.msra.mxu0 0
    %3886 = vmatprep.subr.bf16.mxu0 0
    %3887 = vmatpush2.bf16.msra.mxu0 0
    %3888 = vmatprep.subr.bf16.mxu0 0
    %3889 = vmatpush2.bf16.msra.mxu0 0
    %3890 = vmatprep.subr.bf16.mxu0 0
    %3891 = vmatpush2.bf16.msra.mxu0 0
    %3892 = vmatprep.mubr.bf16.mxu0 0
    %3893 = vmatmul.mubr.bf16.gmra.mxu0 %v553
    %v3894 = vpop.f32.mrf.mxu0
    %v3895 = vadd.f32 0.0, %v3894
    %v3896 = vpop.f32.mrf.mxu0
    %v3897 = vpop.f32.mrf.mxu0
    %v3898 = vpop.f32.mrf.mxu0
    %3899 = vdwg.mxu0
    %v3900 = vmul.f32 %v3895, 16.0
    %v3901 = vld [vmem:[%s11] sm:$0x1]
    %v3903 = vlaneseq
    %v3904 = vshrl.u32 %v3903, 7
    %v3905 = vsub.s32 0, %v3904
    %v3906 = vrot.slane %v3901, %v3905
    %v3908 = vadd.f32 %v3900, %v3906
    %vm3909 = vcmask 23552
    %v3910 = vsel %vm3909, %v3908, 0.0
    %3911 = vst [vmem:[#allocation2] sm:$0x3] %v3910
    // Predicated region
    $region54: #{rcnfnet_forward.1} parent=1 // pred_check
      _
    $region55: #{rcnfnet_forward.1} parent=1 // pred_check_branch
      %3913 = sbr.rel (0) target = $region57
    $region56: #{rcnfnet_forward.1} parent=1 // pred_region
      %s3915 = ssub.s32 32, 32
      %3916 = vsyncadd [#allocation3], %s3915
      %s3918 = sshll.u32 [#allocation2], 4
      %s3919 = int_to_ptr.vmem [resolvable:$true] %s3918
      %3921 = dma.vmem_to_hbm [thread:$0]  %s3919, 32, %s13, [#allocation3]
    $region57: #{rcnfnet_forward.1} parent=1 // pred_fallthru
      _
    // Predicated region
    $region58: #{rcnfnet_forward.1} parent=1 // pred_check
      _
    $region59: #{rcnfnet_forward.1} parent=1 // pred_check_branch
      %3923 = sbr.rel (0) target = $region61
    $region60: #{rcnfnet_forward.1} parent=1 // pred_region
      %3924 = dma.done [#allocation3], 32
    $region61: #{rcnfnet_forward.1} parent=1 // pred_fallthru
      _
    %3925 = vsyncpa [#allocation3], 1

</llo_original>
